<compile_context>
chip_gen: v7x
topology: tpu7x:2x2x1
jax: 0.10.0
libtpu: 0.0.40
codegen_flags: <defaults>
</compile_context>

<pallas_src>
import jax
import jax.numpy as jnp
from jax.experimental import pallas as pl
from jax.experimental.pallas import tpu as pltpu


# ---------------------------------------------------------------------------
# Small helpers.
# ---------------------------------------------------------------------------
def _round_up(n, m):
    return ((n + m - 1) // m) * m


def _pick_tile(n, preferred):
    for t in preferred:
        if n >= t and n % t == 0:
            return t
    return n  # small / awkward dims: single full-extent block


def _pick_time_chunk(tp):
    for t in (128, 64, 32, 16, 8):
        if tp % t == 0:
            return t
    return tp


def _vmem_limit(block_bytes, scratch_bytes=0):
    # Double-buffered pipeline blocks + persistent scratch + headroom,
    # clamped to v7x's 64 MiB physical VMEM.
    need = 2 * block_bytes + scratch_bytes
    return int(min(max(need + (4 << 20), 16 << 20), 64 << 20))


# ---------------------------------------------------------------------------
# Tiled matmul + bias kernel (used for both hoisted projections).
#   x: (tm, tk) bf16, w: (tk, tn) bf16, b: (1, tn) f32 -> o: (tm, tn) out_dtype
# K axis is a reduction grid axis with an f32 VMEM accumulator.
# ---------------------------------------------------------------------------
def _matmul_bias_kernel(x_ref, w_ref, b_ref, o_ref, acc_ref):
    @pl.when(pl.program_id(2) == 0)
    def _():
        acc_ref[...] = jnp.zeros_like(acc_ref)

    acc_ref[...] += jnp.dot(x_ref[...], w_ref[...],
                            preferred_element_type=jnp.float32)

    @pl.when(pl.program_id(2) == pl.num_programs(2) - 1)
    def _():
        o_ref[...] = (acc_ref[...] + b_ref[...]).astype(o_ref.dtype)


def _matmul_bias(x, w, b, *, out_dtype):
    """x: (M, K) bf16, w: (K, N) bf16, b: (1, N) f32 -> (M, N) out_dtype."""
    M, K = x.shape
    _, N = w.shape
    tm = _pick_tile(M, (1024, 512, 256, 128))   # large tm -> fewer W re-streams
    tn = _pick_tile(N, (512, 256, 128))
    tk = _pick_tile(K, (1024, 512, 256, 128))
    grid = (M // tm, N // tn, K // tk)

    out_bytes = jnp.dtype(out_dtype).itemsize
    block_bytes = tm * tk * 2 + tk * tn * 2 + tn * 4 + tm * tn * out_bytes

    return pl.pallas_call(
        _matmul_bias_kernel,
        out_shape=jax.ShapeDtypeStruct((M, N), out_dtype),
        grid_spec=pltpu.PrefetchScalarGridSpec(
            num_scalar_prefetch=0,
            grid=grid,
            in_specs=[
                pl.BlockSpec((tm, tk), lambda i, j, k: (i, k)),   # activations
                pl.BlockSpec((tk, tn), lambda i, j, k: (k, j)),   # weight
                pl.BlockSpec((1, tn), lambda i, j, k: (0, j)),    # bias
            ],
            out_specs=pl.BlockSpec((tm, tn), lambda i, j, k: (i, j)),
            scratch_shapes=[pltpu.VMEM((tm, tn), jnp.float32)],
        ),
        compiler_params=pltpu.CompilerParams(
            dimension_semantics=("parallel", "parallel", "arbitrary"),
            vmem_limit_bytes=_vmem_limit(block_bytes, tm * tn * 4),
        ),
    )(x, w, b)


# ---------------------------------------------------------------------------
# Sequential recurrence kernel, tiled over time with a carried hidden state.
#   pre_ref:   (tT, Bs, H) bf16  -- time-major chunk of input projections
#   whh_ref:   (H, H)      bf16  -- W_hh^T, constant across the grid
#   h_out_ref: (Bs, tT, H) bf16  -- batch-major hidden states for this chunk
#   h_carry:   (Bs, H)     f32   -- VMEM scratch, persists across grid steps
# ---------------------------------------------------------------------------
def _rnn_recurrence_kernel(pre_ref, whh_ref, h_out_ref, h_carry):
    @pl.when(pl.program_id(1) == 0)          # start of each batch-slice sweep
    def _():
        h_carry[...] = jnp.zeros_like(h_carry)

    whh = whh_ref[...]                        # hoist weight load out of the loop
    t_chunk = pre_ref.shape[0]

    # TODO(synk): hold W_hh resident in the MXU across steps via
    # pltpu.matmul_push_rhs / matmul_acc_lhs / matmul_pop to trim per-step
    # weight-push latency on the serial critical path.
    for i in range(t_chunk):                  # static unroll over the chunk only
        rec = jnp.dot(h_carry[...].astype(jnp.bfloat16), whh,
                      preferred_element_type=jnp.float32)
        h_new = jnp.tanh(pre_ref[i].astype(jnp.float32) + rec)
        h_carry[...] = h_new
        h_out_ref[:, i, :] = h_new.astype(h_out_ref.dtype)


# ---------------------------------------------------------------------------
# Parameter preparation (one-time): kernel-friendly layouts & dtypes.
# ---------------------------------------------------------------------------
def prepare_params(params):
    return {
        "emb": params["emb"].astype(jnp.bfloat16),                       # (V, E)
        "wih_t": params["w_ih"].T.astype(jnp.bfloat16),                  # (E, H)
        "whh_t": params["w_hh"].T.astype(jnp.bfloat16),                  # (H, H)
        "b_in": (params["b_ih"] + params["b_hh"]).astype(jnp.float32).reshape(1, -1),
        "wfc_t": params["w_fc"].T.astype(jnp.bfloat16),                  # (H, V)
        "b_fc": params["b_fc"].astype(jnp.float32).reshape(1, -1),       # (1, V)
    }


# ---------------------------------------------------------------------------
# Forward pass wrapper.
# ---------------------------------------------------------------------------
def rnn_forward(tokens, p):
    """tokens: (B, T) int32. Returns logits (B, T, V) float32."""
    emb = p["emb"]            # (V, E) bf16
    wih_t = p["wih_t"]        # (E, H) bf16
    whh_t = p["whh_t"]        # (H, H) bf16
    b_in = p["b_in"]          # (1, H) f32
    wfc_t = p["wfc_t"]        # (H, V) bf16
    b_fc = p["b_fc"]          # (1, V) f32

    B, T = tokens.shape
    V, E = emb.shape
    H = whh_t.shape[0]

    # Pad batch to a multiple of 16 (bf16 sublane packing), time to a multiple of 8.
    Bp = max(16, _round_up(B, 16))
    Tp = _round_up(T, 8)
    if (Bp, Tp) != (B, T):
        tokens = jnp.pad(tokens, ((0, Bp - B), (0, Tp - T)))

    tT = _pick_time_chunk(Tp)                       # time chunk for the recurrence
    n_bsplit = 2 if Bp >= 32 else 1                 # v7x: split batch across 2 TCs
    Bs = Bp // n_bsplit

    # ---- embedding lookup (plain-JAX gather), directly time-major & bf16 ----
    x_tm = jnp.take(emb, tokens.T, axis=0)          # (Tp, Bp, E) bf16

    # ---- hoisted input projection: pre = X @ W_ih^T + (b_ih + b_hh) ----
    pre_tm = _matmul_bias(x_tm.reshape(Tp * Bp, E), wih_t, b_in,
                          out_dtype=jnp.bfloat16).reshape(Tp, Bp, H)

    # ---- sequential recurrence, time-chunked, hidden carried in VMEM scratch ----
    rec_block_bytes = tT * Bs * H * 2 + H * H * 2 + Bs * tT * H * 2
    hidden = pl.pallas_call(
        _rnn_recurrence_kernel,
        out_shape=jax.ShapeDtypeStruct((Bp, Tp, H), jnp.bfloat16),
        grid_spec=pltpu.PrefetchScalarGridSpec(
            num_scalar_prefetch=0,
            grid=(n_bsplit, Tp // tT),
            in_specs=[
                pl.BlockSpec((tT, Bs, H), lambda b, t: (t, b, 0)),   # pre chunk
                pl.BlockSpec((H, H), lambda b, t: (0, 0)),           # W_hh^T
            ],
            out_specs=pl.BlockSpec((Bs, tT, H), lambda b, t: (b, t, 0)),
            scratch_shapes=[pltpu.VMEM((Bs, H), jnp.float32)],        # carried h
        ),
        compiler_params=pltpu.CompilerParams(
            dimension_semantics=("parallel", "arbitrary"),
            vmem_limit_bytes=_vmem_limit(rec_block_bytes, Bs * H * 4),
        ),
    )(pre_tm, whh_t)                                # (Bp, Tp, H) bf16, batch-major

    # ---- hoisted output projection: logits = H @ W_fc^T + b_fc ----
    # Hidden is already batch-major, so the (B, T, V) logits come out directly
    # in batch_first layout with no transpose pass.
    logits = _matmul_bias(hidden.reshape(Bp * Tp, H), wfc_t, b_fc,
                          out_dtype=jnp.float32)
    # TODO(synk): for real vocab sizes emit bf16 logits or fuse the downstream
    # softmax/loss to halve the dominant (B*T, V) HBM write.
    return logits.reshape(Bp, Tp, V)[:B, :T]


# ---------------------------------------------------------------------------
# Pure-JAX reference matching torch semantics (f32 throughout).
# ---------------------------------------------------------------------------
def reference_forward(tokens, params):
    emb = jnp.take(params["emb"], tokens, axis=0)                  # (B, T, E)
    B, T, _ = emb.shape
    H = params["w_hh"].shape[0]

    def step(h, x_t):
        h_new = jnp.tanh(x_t @ params["w_ih"].T + params["b_ih"]
                         + h @ params["w_hh"].T + params["b_hh"])
        return h_new, h_new

    h0 = jnp.zeros((B, H), jnp.float32)
    _, hs = jax.lax.scan(step, h0, jnp.transpose(emb, (1, 0, 2)))  # (T, B, H)
    hs = jnp.transpose(hs, (1, 0, 2))                              # (B, T, H)
    return hs @ params["w_fc"].T + params["b_fc"]


if __name__ == "__main__":
    # Small, module-consistent sizes.
    vocab_size = 256
    embedding_dim = 128
    hidden_dim = 128
    batch = 2
    seq = 8

    key = jax.random.PRNGKey(0)
    ks = jax.random.split(key, 8)
    scale = 0.05
    params = {
        "emb": scale * jax.random.normal(ks[0], (vocab_size, embedding_dim), jnp.float32),
        "w_ih": scale * jax.random.normal(ks[1], (hidden_dim, embedding_dim), jnp.float32),
        "w_hh": scale * jax.random.normal(ks[2], (hidden_dim, hidden_dim), jnp.float32),
        "b_ih": scale * jax.random.normal(ks[3], (hidden_dim,), jnp.float32),
        "b_hh": scale * jax.random.normal(ks[4], (hidden_dim,), jnp.float32),
        "w_fc": scale * jax.random.normal(ks[5], (vocab_size, hidden_dim), jnp.float32),
        "b_fc": scale * jax.random.normal(ks[6], (vocab_size,), jnp.float32),
    }
    tokens = jax.random.randint(ks[7], (batch, seq), 0, vocab_size, dtype=jnp.int32)

    prepared = prepare_params(params)           # one-time weight relayout (bf16, transposed)
    forward = jax.jit(rnn_forward)

    logits = jax.block_until_ready(forward(tokens, prepared))
    assert logits.shape == (batch, seq, vocab_size)

    ref = jax.block_until_ready(reference_forward(tokens, params))
    # bf16 weights / intermediates (f32 accumulation) -> slightly looser
    # tolerance than a pure-f32 implementation.
    assert jnp.allclose(logits, ref, atol=1e-2, rtol=1e-2), "mismatch vs reference"

    print("KERNEL_OK")
</pallas_src>

<mosaic_0001>
module attributes {stable_mosaic.version = 11 : i64} {
  func.func @_matmul_bias_kernel(%arg0: i32, %arg1: i32, %arg2: i32, %arg3: memref<128x128xbf16, #tpu.memory_space<vmem>>, %arg4: memref<128x128xbf16, #tpu.memory_space<vmem>>, %arg5: memref<1x128xf32, #tpu.memory_space<vmem>>, %arg6: memref<128x128xbf16, #tpu.memory_space<vmem>>, %arg7: memref<128x128xf32, #tpu.memory_space<vmem>>) attributes {dimension_semantics = [#tpu.dimension_semantics<parallel>, #tpu.dimension_semantics<parallel>, #tpu.dimension_semantics<arbitrary>], iteration_bounds = array<i64: 1, 1, 1>, scalar_prefetch = 0 : i64, scratch_operands = 1 : i64, tpu.core_type = #tpu.core_type<tc>, window_params = [{transform_indices = @transform_0, window_bounds = array<i64: 128, 128>}, {transform_indices = @transform_1, window_bounds = array<i64: 128, 128>}, {transform_indices = @transform_2, window_bounds = array<i64: 1, 128>}, {transform_indices = @transform_3, window_bounds = array<i64: 128, 128>}]} {
    %c0_i32 = arith.constant 0 : i32
    %0 = arith.cmpi eq, %arg2, %c0_i32 : i32
    %1 = arith.extui %0 : i1 to i32
    %c0_i32_0 = arith.constant 0 : i32
    %2 = arith.cmpi ne, %1, %c0_i32_0 : i32
    scf.if %2 {
      %cst_10 = arith.constant 0.000000e+00 : f32
      %12 = vector.broadcast %cst_10 : f32 to vector<128x128xf32>
      %c0_11 = arith.constant 0 : index
      %c0_12 = arith.constant 0 : index
      %13 = vector.load %arg7[%c0_11, %c0_12] : memref<128x128xf32, #tpu.memory_space<vmem>>, vector<128x128xf32>
      tpu.vector_store %arg7[%c0_11, %c0_12], %12 {strides = array<i32>} : memref<128x128xf32, #tpu.memory_space<vmem>>, vector<128x128xf32>,
    } else {
    }
    %c0 = arith.constant 0 : index
    %c0_1 = arith.constant 0 : index
    %3 = vector.load %arg7[%c0, %c0_1] : memref<128x128xf32, #tpu.memory_space<vmem>>, vector<128x128xf32>
    %c0_2 = arith.constant 0 : index
    %c0_3 = arith.constant 0 : index
    %4 = vector.load %arg3[%c0_2, %c0_3] : memref<128x128xbf16, #tpu.memory_space<vmem>>, vector<128x128xbf16>
    %c0_4 = arith.constant 0 : index
    %c0_5 = arith.constant 0 : index
    %5 = vector.load %arg4[%c0_4, %c0_5] : memref<128x128xbf16, #tpu.memory_space<vmem>>, vector<128x128xbf16>
    %cst = arith.constant dense<0.000000e+00> : vector<128x128xf32>
    %6 = tpu.matmul %4, %5, %cst {dimension_numbers = #tpu.dot_dimension_numbers<[1], [0], [0], [1], [0, 0, 1, 1], [], []>} : vector<128x128xbf16>, vector<128x128xbf16>, vector<128x128xf32> -> vector<128x128xf32>
    %7 = arith.addf %3, %6 : vector<128x128xf32>
    %c0_6 = arith.constant 0 : index
    %c0_7 = arith.constant 0 : index
    %8 = vector.load %arg7[%c0_6, %c0_7] : memref<128x128xf32, #tpu.memory_space<vmem>>, vector<128x128xf32>
    tpu.vector_store %arg7[%c0_6, %c0_7], %7 {strides = array<i32>} : memref<128x128xf32, #tpu.memory_space<vmem>>, vector<128x128xf32>,
    %c0_i32_8 = arith.constant 0 : i32
    %9 = arith.cmpi eq, %arg2, %c0_i32_8 : i32
    %10 = arith.extui %9 : i1 to i32
    %c0_i32_9 = arith.constant 0 : i32
    %11 = arith.cmpi ne, %10, %c0_i32_9 : i32
    scf.if %11 {
      %c0_10 = arith.constant 0 : index
      %c0_11 = arith.constant 0 : index
      %12 = vector.load %arg7[%c0_10, %c0_11] : memref<128x128xf32, #tpu.memory_space<vmem>>, vector<128x128xf32>
      %c0_12 = arith.constant 0 : index
      %c0_13 = arith.constant 0 : index
      %13 = vector.load %arg5[%c0_12, %c0_13] : memref<1x128xf32, #tpu.memory_space<vmem>>, vector<1x128xf32>
      %14 = vector.broadcast %13 : vector<1x128xf32> to vector<128x128xf32>
      %15 = arith.addf %12, %14 : vector<128x128xf32>
      %16 = arith.truncf %15 : vector<128x128xf32> to vector<128x128xbf16>
      %c0_14 = arith.constant 0 : index
      %c0_15 = arith.constant 0 : index
      %17 = vector.load %arg6[%c0_14, %c0_15] : memref<128x128xbf16, #tpu.memory_space<vmem>>, vector<128x128xbf16>
      tpu.vector_store %arg6[%c0_14, %c0_15], %16 {strides = array<i32>} : memref<128x128xbf16, #tpu.memory_space<vmem>>, vector<128x128xbf16>,
    } else {
    }
    return
  }
  func.func @transform_0(%arg0: i32, %arg1: i32, %arg2: i32) -> (i32, i32) {
    %c0_i32 = arith.constant 0 : i32
    return %arg0, %arg2 : i32, i32
  }
  func.func @transform_1(%arg0: i32, %arg1: i32, %arg2: i32) -> (i32, i32) {
    %c0_i32 = arith.constant 0 : i32
    return %arg2, %arg1 : i32, i32
  }
  func.func @transform_2(%arg0: i32, %arg1: i32, %arg2: i32) -> (i32, i32) {
    %c0_i32 = arith.constant 0 : i32
    %c0_i32_0 = arith.constant 0 : i32
    return %c0_i32, %arg1 : i32, i32
  }
  func.func @transform_3(%arg0: i32, %arg1: i32, %arg2: i32) -> (i32, i32) {
    %c0_i32 = arith.constant 0 : i32
    return %arg0, %arg1 : i32, i32
  }
}

module attributes {stable_mosaic.version = 11 : i64} {
  func.func @_matmul_bias_kernel(%arg0: i32, %arg1: i32, %arg2: i32, %arg3: memref<128x128xbf16, #tpu.memory_space<vmem>>, %arg4: memref<128x256xbf16, #tpu.memory_space<vmem>>, %arg5: memref<1x256xf32, #tpu.memory_space<vmem>>, %arg6: memref<128x256xf32, #tpu.memory_space<vmem>>, %arg7: memref<128x256xf32, #tpu.memory_space<vmem>>) attributes {dimension_semantics = [#tpu.dimension_semantics<parallel>, #tpu.dimension_semantics<parallel>, #tpu.dimension_semantics<arbitrary>], iteration_bounds = array<i64: 1, 1, 1>, scalar_prefetch = 0 : i64, scratch_operands = 1 : i64, tpu.core_type = #tpu.core_type<tc>, window_params = [{transform_indices = @transform_0, window_bounds = array<i64: 128, 128>}, {transform_indices = @transform_1, window_bounds = array<i64: 128, 256>}, {transform_indices = @transform_2, window_bounds = array<i64: 1, 256>}, {transform_indices = @transform_3, window_bounds = array<i64: 128, 256>}]} {
    %c0_i32 = arith.constant 0 : i32
    %0 = arith.cmpi eq, %arg2, %c0_i32 : i32
    %1 = arith.extui %0 : i1 to i32
    %c0_i32_0 = arith.constant 0 : i32
    %2 = arith.cmpi ne, %1, %c0_i32_0 : i32
    scf.if %2 {
      %cst_10 = arith.constant 0.000000e+00 : f32
      %12 = vector.broadcast %cst_10 : f32 to vector<128x256xf32>
      %c0_11 = arith.constant 0 : index
      %c0_12 = arith.constant 0 : index
      %13 = vector.load %arg7[%c0_11, %c0_12] : memref<128x256xf32, #tpu.memory_space<vmem>>, vector<128x256xf32>
      tpu.vector_store %arg7[%c0_11, %c0_12], %12 {strides = array<i32>} : memref<128x256xf32, #tpu.memory_space<vmem>>, vector<128x256xf32>,
    } else {
    }
    %c0 = arith.constant 0 : index
    %c0_1 = arith.constant 0 : index
    %3 = vector.load %arg7[%c0, %c0_1] : memref<128x256xf32, #tpu.memory_space<vmem>>, vector<128x256xf32>
    %c0_2 = arith.constant 0 : index
    %c0_3 = arith.constant 0 : index
    %4 = vector.load %arg3[%c0_2, %c0_3] : memref<128x128xbf16, #tpu.memory_space<vmem>>, vector<128x128xbf16>
    %c0_4 = arith.constant 0 : index
    %c0_5 = arith.constant 0 : index
    %5 = vector.load %arg4[%c0_4, %c0_5] : memref<128x256xbf16, #tpu.memory_space<vmem>>, vector<128x256xbf16>
    %cst = arith.constant dense<0.000000e+00> : vector<128x256xf32>
    %6 = tpu.matmul %4, %5, %cst {dimension_numbers = #tpu.dot_dimension_numbers<[1], [0], [0], [1], [0, 0, 1, 1], [], []>} : vector<128x128xbf16>, vector<128x256xbf16>, vector<128x256xf32> -> vector<128x256xf32>
    %7 = arith.addf %3, %6 : vector<128x256xf32>
    %c0_6 = arith.constant 0 : index
    %c0_7 = arith.constant 0 : index
    %8 = vector.load %arg7[%c0_6, %c0_7] : memref<128x256xf32, #tpu.memory_space<vmem>>, vector<128x256xf32>
    tpu.vector_store %arg7[%c0_6, %c0_7], %7 {strides = array<i32>} : memref<128x256xf32, #tpu.memory_space<vmem>>, vector<128x256xf32>,
    %c0_i32_8 = arith.constant 0 : i32
    %9 = arith.cmpi eq, %arg2, %c0_i32_8 : i32
    %10 = arith.extui %9 : i1 to i32
    %c0_i32_9 = arith.constant 0 : i32
    %11 = arith.cmpi ne, %10, %c0_i32_9 : i32
    scf.if %11 {
      %c0_10 = arith.constant 0 : index
      %c0_11 = arith.constant 0 : index
      %12 = vector.load %arg7[%c0_10, %c0_11] : memref<128x256xf32, #tpu.memory_space<vmem>>, vector<128x256xf32>
      %c0_12 = arith.constant 0 : index
      %c0_13 = arith.constant 0 : index
      %13 = vector.load %arg5[%c0_12, %c0_13] : memref<1x256xf32, #tpu.memory_space<vmem>>, vector<1x256xf32>
      %14 = vector.broadcast %13 : vector<1x256xf32> to vector<128x256xf32>
      %15 = arith.addf %12, %14 : vector<128x256xf32>
      %c0_14 = arith.constant 0 : index
      %c0_15 = arith.constant 0 : index
      %16 = vector.load %arg6[%c0_14, %c0_15] : memref<128x256xf32, #tpu.memory_space<vmem>>, vector<128x256xf32>
      tpu.vector_store %arg6[%c0_14, %c0_15], %15 {strides = array<i32>} : memref<128x256xf32, #tpu.memory_space<vmem>>, vector<128x256xf32>,
    } else {
    }
    return
  }
  func.func @transform_0(%arg0: i32, %arg1: i32, %arg2: i32) -> (i32, i32) {
    %c0_i32 = arith.constant 0 : i32
    return %arg0, %arg2 : i32, i32
  }
  func.func @transform_1(%arg0: i32, %arg1: i32, %arg2: i32) -> (i32, i32) {
    %c0_i32 = arith.constant 0 : i32
    return %arg2, %arg1 : i32, i32
  }
  func.func @transform_2(%arg0: i32, %arg1: i32, %arg2: i32) -> (i32, i32) {
    %c0_i32 = arith.constant 0 : i32
    %c0_i32_0 = arith.constant 0 : i32
    return %c0_i32, %arg1 : i32, i32
  }
  func.func @transform_3(%arg0: i32, %arg1: i32, %arg2: i32) -> (i32, i32) {
    %c0_i32 = arith.constant 0 : i32
    return %arg0, %arg1 : i32, i32
  }
}

module attributes {stable_mosaic.version = 11 : i64} {
  func.func @_rnn_recurrence_kernel(%arg0: i32, %arg1: i32, %arg2: memref<8x16x128xbf16, #tpu.memory_space<vmem>>, %arg3: memref<128x128xbf16, #tpu.memory_space<vmem>>, %arg4: memref<16x8x128xbf16, #tpu.memory_space<vmem>>, %arg5: memref<16x128xf32, #tpu.memory_space<vmem>>) attributes {dimension_semantics = [#tpu.dimension_semantics<parallel>, #tpu.dimension_semantics<arbitrary>], iteration_bounds = array<i64: 1, 1>, scalar_prefetch = 0 : i64, scratch_operands = 1 : i64, tpu.core_type = #tpu.core_type<tc>, window_params = [{transform_indices = @transform_0, window_bounds = array<i64: 8, 16, 128>}, {pipeline_mode = #tpu.pipeline_mode<synchronous>, transform_indices = @transform_1, window_bounds = array<i64: 128, 128>}, {transform_indices = @transform_2, window_bounds = array<i64: 16, 8, 128>}]} {
    %c0_i32 = arith.constant 0 : i32
    %0 = arith.cmpi eq, %arg1, %c0_i32 : i32
    %1 = arith.extui %0 : i1 to i32
    %c0_i32_0 = arith.constant 0 : i32
    %2 = arith.cmpi ne, %1, %c0_i32_0 : i32
    scf.if %2 {
      %cst_82 = arith.constant 0.000000e+00 : f32
      %108 = vector.broadcast %cst_82 : f32 to vector<16x128xf32>
      %c0_83 = arith.constant 0 : index
      %c0_84 = arith.constant 0 : index
      %109 = vector.load %arg5[%c0_83, %c0_84] : memref<16x128xf32, #tpu.memory_space<vmem>>, vector<16x128xf32>
      tpu.vector_store %arg5[%c0_83, %c0_84], %108 {strides = array<i32>} : memref<16x128xf32, #tpu.memory_space<vmem>>, vector<16x128xf32>,
    } else {
    }
    %c0 = arith.constant 0 : index
    %c0_1 = arith.constant 0 : index
    %3 = vector.load %arg3[%c0, %c0_1] : memref<128x128xbf16, #tpu.memory_space<vmem>>, vector<128x128xbf16>
    %c0_2 = arith.constant 0 : index
    %c0_3 = arith.constant 0 : index
    %4 = vector.load %arg5[%c0_2, %c0_3] : memref<16x128xf32, #tpu.memory_space<vmem>>, vector<16x128xf32>
    %5 = arith.truncf %4 : vector<16x128xf32> to vector<16x128xbf16>
    %cst = arith.constant dense<0.000000e+00> : vector<16x128xf32>
    %6 = tpu.matmul %5, %3, %cst {dimension_numbers = #tpu.dot_dimension_numbers<[1], [0], [0], [1], [0, 0, 1, 1], [], []>} : vector<16x128xbf16>, vector<128x128xbf16>, vector<16x128xf32> -> vector<16x128xf32>
    %c0_4 = arith.constant 0 : index
    %c0_5 = arith.constant 0 : index
    %c0_6 = arith.constant 0 : index
    %7 = vector.load %arg2[%c0_4, %c0_5, %c0_6] : memref<8x16x128xbf16, #tpu.memory_space<vmem>>, vector<1x16x128xbf16>
    %8 = vector.shape_cast %7 : vector<1x16x128xbf16> to vector<16x128xbf16>
    %9 = arith.extf %8 : vector<16x128xbf16> to vector<16x128xf32>
    %10 = arith.addf %9, %6 : vector<16x128xf32>
    %11 = math.tanh %10 : vector<16x128xf32>
    %c0_7 = arith.constant 0 : index
    %c0_8 = arith.constant 0 : index
    %12 = vector.load %arg5[%c0_7, %c0_8] : memref<16x128xf32, #tpu.memory_space<vmem>>, vector<16x128xf32>
    tpu.vector_store %arg5[%c0_7, %c0_8], %11 {strides = array<i32>} : memref<16x128xf32, #tpu.memory_space<vmem>>, vector<16x128xf32>,
    %13 = arith.truncf %11 : vector<16x128xf32> to vector<16x128xbf16>
    %c0_9 = arith.constant 0 : index
    %c0_10 = arith.constant 0 : index
    %c0_11 = arith.constant 0 : index
    %14 = vector.load %arg4[%c0_9, %c0_10, %c0_11] : memref<16x8x128xbf16, #tpu.memory_space<vmem>>, vector<16x1x128xbf16>
    %15 = vector.shape_cast %14 : vector<16x1x128xbf16> to vector<16x128xbf16>
    %16 = vector.shape_cast %13 : vector<16x128xbf16> to vector<16x1x128xbf16>
    tpu.vector_store %arg4[%c0_9, %c0_10, %c0_11], %16 {strides = array<i32>} : memref<16x8x128xbf16, #tpu.memory_space<vmem>>, vector<16x1x128xbf16>,
    %c0_12 = arith.constant 0 : index
    %c0_13 = arith.constant 0 : index
    %17 = vector.load %arg5[%c0_12, %c0_13] : memref<16x128xf32, #tpu.memory_space<vmem>>, vector<16x128xf32>
    %18 = arith.truncf %17 : vector<16x128xf32> to vector<16x128xbf16>
    %cst_14 = arith.constant dense<0.000000e+00> : vector<16x128xf32>
    %19 = tpu.matmul %18, %3, %cst_14 {dimension_numbers = #tpu.dot_dimension_numbers<[1], [0], [0], [1], [0, 0, 1, 1], [], []>} : vector<16x128xbf16>, vector<128x128xbf16>, vector<16x128xf32> -> vector<16x128xf32>
    %c1 = arith.constant 1 : index
    %c0_15 = arith.constant 0 : index
    %c0_16 = arith.constant 0 : index
    %20 = vector.load %arg2[%c1, %c0_15, %c0_16] : memref<8x16x128xbf16, #tpu.memory_space<vmem>>, vector<1x16x128xbf16>
    %21 = vector.shape_cast %20 : vector<1x16x128xbf16> to vector<16x128xbf16>
    %22 = arith.extf %21 : vector<16x128xbf16> to vector<16x128xf32>
    %23 = arith.addf %22, %19 : vector<16x128xf32>
    %24 = math.tanh %23 : vector<16x128xf32>
    %c0_17 = arith.constant 0 : index
    %c0_18 = arith.constant 0 : index
    %25 = vector.load %arg5[%c0_17, %c0_18] : memref<16x128xf32, #tpu.memory_space<vmem>>, vector<16x128xf32>
    tpu.vector_store %arg5[%c0_17, %c0_18], %24 {strides = array<i32>} : memref<16x128xf32, #tpu.memory_space<vmem>>, vector<16x128xf32>,
    %26 = arith.truncf %24 : vector<16x128xf32> to vector<16x128xbf16>
    %c0_19 = arith.constant 0 : index
    %c1_20 = arith.constant 1 : index
    %c0_21 = arith.constant 0 : index
    %27 = vector.load %arg4[%c0_19, %c1_20, %c0_21] : memref<16x8x128xbf16, #tpu.memory_space<vmem>>, vector<16x1x128xbf16>
    %28 = vector.shape_cast %27 : vector<16x1x128xbf16> to vector<16x128xbf16>
    %29 = vector.shape_cast %26 : vector<16x128xbf16> to vector<16x1x128xbf16>
    tpu.vector_store %arg4[%c0_19, %c1_20, %c0_21], %29 {strides = array<i32>} : memref<16x8x128xbf16, #tpu.memory_space<vmem>>, vector<16x1x128xbf16>,
    %c0_22 = arith.constant 0 : index
    %c0_23 = arith.constant 0 : index
    %30 = vector.load %arg5[%c0_22, %c0_23] : memref<16x128xf32, #tpu.memory_space<vmem>>, vector<16x128xf32>
    %31 = arith.truncf %30 : vector<16x128xf32> to vector<16x128xbf16>
    %cst_24 = arith.constant dense<0.000000e+00> : vector<16x128xf32>
    %32 = tpu.matmul %31, %3, %cst_24 {dimension_numbers = #tpu.dot_dimension_numbers<[1], [0], [0], [1], [0, 0, 1, 1], [], []>} : vector<16x128xbf16>, vector<128x128xbf16>, vector<16x128xf32> -> vector<16x128xf32>
    %c2 = arith.constant 2 : index
    %c0_25 = arith.constant 0 : index
    %c0_26 = arith.constant 0 : index
    %33 = vector.load %arg2[%c2, %c0_25, %c0_26] : memref<8x16x128xbf16, #tpu.memory_space<vmem>>, vector<1x16x128xbf16>
    %34 = vector.shape_cast %33 : vector<1x16x128xbf16> to vector<16x128xbf16>
    %35 = arith.extf %34 : vector<16x128xbf16> to vector<16x128xf32>
    %36 = arith.addf %35, %32 : vector<16x128xf32>
    %37 = math.tanh %36 : vector<16x128xf32>
    %c0_27 = arith.constant 0 : index
    %c0_28 = arith.constant 0 : index
    %38 = vector.load %arg5[%c0_27, %c0_28] : memref<16x128xf32, #tpu.memory_space<vmem>>, vector<16x128xf32>
    tpu.vector_store %arg5[%c0_27, %c0_28], %37 {strides = array<i32>} : memref<16x128xf32, #tpu.memory_space<vmem>>, vector<16x128xf32>,
    %39 = arith.truncf %37 : vector<16x128xf32> to vector<16x128xbf16>
    %c0_29 = arith.constant 0 : index
    %c2_30 = arith.constant 2 : index
    %c0_31 = arith.constant 0 : index
    %40 = vector.load %arg4[%c0_29, %c2_30, %c0_31] : memref<16x8x128xbf16, #tpu.memory_space<vmem>>, vector<16x1x128xbf16>
    %41 = vector.shape_cast %40 : vector<16x1x128xbf16> to vector<16x128xbf16>
    %42 = vector.shape_cast %39 : vector<16x128xbf16> to vector<16x1x128xbf16>
    tpu.vector_store %arg4[%c0_29, %c2_30, %c0_31], %42 {strides = array<i32>} : memref<16x8x128xbf16, #tpu.memory_space<vmem>>, vector<16x1x128xbf16>,
    %c0_32 = arith.constant 0 : index
    %c0_33 = arith.constant 0 : index
    %43 = vector.load %arg5[%c0_32, %c0_33] : memref<16x128xf32, #tpu.memory_space<vmem>>, vector<16x128xf32>
    %44 = arith.truncf %43 : vector<16x128xf32> to vector<16x128xbf16>
    %cst_34 = arith.constant dense<0.000000e+00> : vector<16x128xf32>
    %45 = tpu.matmul %44, %3, %cst_34 {dimension_numbers = #tpu.dot_dimension_numbers<[1], [0], [0], [1], [0, 0, 1, 1], [], []>} : vector<16x128xbf16>, vector<128x128xbf16>, vector<16x128xf32> -> vector<16x128xf32>
    %c3 = arith.constant 3 : index
    %c0_35 = arith.constant 0 : index
    %c0_36 = arith.constant 0 : index
    %46 = vector.load %arg2[%c3, %c0_35, %c0_36] : memref<8x16x128xbf16, #tpu.memory_space<vmem>>, vector<1x16x128xbf16>
    %47 = vector.shape_cast %46 : vector<1x16x128xbf16> to vector<16x128xbf16>
    %48 = arith.extf %47 : vector<16x128xbf16> to vector<16x128xf32>
    %49 = arith.addf %48, %45 : vector<16x128xf32>
    %50 = math.tanh %49 : vector<16x128xf32>
    %c0_37 = arith.constant 0 : index
    %c0_38 = arith.constant 0 : index
    %51 = vector.load %arg5[%c0_37, %c0_38] : memref<16x128xf32, #tpu.memory_space<vmem>>, vector<16x128xf32>
    tpu.vector_store %arg5[%c0_37, %c0_38], %50 {strides = array<i32>} : memref<16x128xf32, #tpu.memory_space<vmem>>, vector<16x128xf32>,
    %52 = arith.truncf %50 : vector<16x128xf32> to vector<16x128xbf16>
    %c0_39 = arith.constant 0 : index
    %c3_40 = arith.constant 3 : index
    %c0_41 = arith.constant 0 : index
    %53 = vector.load %arg4[%c0_39, %c3_40, %c0_41] : memref<16x8x128xbf16, #tpu.memory_space<vmem>>, vector<16x1x128xbf16>
    %54 = vector.shape_cast %53 : vector<16x1x128xbf16> to vector<16x128xbf16>
    %55 = vector.shape_cast %52 : vector<16x128xbf16> to vector<16x1x128xbf16>
    tpu.vector_store %arg4[%c0_39, %c3_40, %c0_41], %55 {strides = array<i32>} : memref<16x8x128xbf16, #tpu.memory_space<vmem>>, vector<16x1x128xbf16>,
    %c0_42 = arith.constant 0 : index
    %c0_43 = arith.constant 0 : index
    %56 = vector.load %arg5[%c0_42, %c0_43] : memref<16x128xf32, #tpu.memory_space<vmem>>, vector<16x128xf32>
    %57 = arith.truncf %56 : vector<16x128xf32> to vector<16x128xbf16>
    %cst_44 = arith.constant dense<0.000000e+00> : vector<16x128xf32>
    %58 = tpu.matmul %57, %3, %cst_44 {dimension_numbers = #tpu.dot_dimension_numbers<[1], [0], [0], [1], [0, 0, 1, 1], [], []>} : vector<16x128xbf16>, vector<128x128xbf16>, vector<16x128xf32> -> vector<16x128xf32>
    %c4 = arith.constant 4 : index
    %c0_45 = arith.constant 0 : index
    %c0_46 = arith.constant 0 : index
    %59 = vector.load %arg2[%c4, %c0_45, %c0_46] : memref<8x16x128xbf16, #tpu.memory_space<vmem>>, vector<1x16x128xbf16>
    %60 = vector.shape_cast %59 : vector<1x16x128xbf16> to vector<16x128xbf16>
    %61 = arith.extf %60 : vector<16x128xbf16> to vector<16x128xf32>
    %62 = arith.addf %61, %58 : vector<16x128xf32>
    %63 = math.tanh %62 : vector<16x128xf32>
    %c0_47 = arith.constant 0 : index
    %c0_48 = arith.constant 0 : index
    %64 = vector.load %arg5[%c0_47, %c0_48] : memref<16x128xf32, #tpu.memory_space<vmem>>, vector<16x128xf32>
    tpu.vector_store %arg5[%c0_47, %c0_48], %63 {strides = array<i32>} : memref<16x128xf32, #tpu.memory_space<vmem>>, vector<16x128xf32>,
    %65 = arith.truncf %63 : vector<16x128xf32> to vector<16x128xbf16>
    %c0_49 = arith.constant 0 : index
    %c4_50 = arith.constant 4 : index
    %c0_51 = arith.constant 0 : index
    %66 = vector.load %arg4[%c0_49, %c4_50, %c0_51] : memref<16x8x128xbf16, #tpu.memory_space<vmem>>, vector<16x1x128xbf16>
    %67 = vector.shape_cast %66 : vector<16x1x128xbf16> to vector<16x128xbf16>
    %68 = vector.shape_cast %65 : vector<16x128xbf16> to vector<16x1x128xbf16>
    tpu.vector_store %arg4[%c0_49, %c4_50, %c0_51], %68 {strides = array<i32>} : memref<16x8x128xbf16, #tpu.memory_space<vmem>>, vector<16x1x128xbf16>,
    %c0_52 = arith.constant 0 : index
    %c0_53 = arith.constant 0 : index
    %69 = vector.load %arg5[%c0_52, %c0_53] : memref<16x128xf32, #tpu.memory_space<vmem>>, vector<16x128xf32>
    %70 = arith.truncf %69 : vector<16x128xf32> to vector<16x128xbf16>
    %cst_54 = arith.constant dense<0.000000e+00> : vector<16x128xf32>
    %71 = tpu.matmul %70, %3, %cst_54 {dimension_numbers = #tpu.dot_dimension_numbers<[1], [0], [0], [1], [0, 0, 1, 1], [], []>} : vector<16x128xbf16>, vector<128x128xbf16>, vector<16x128xf32> -> vector<16x128xf32>
    %c5 = arith.constant 5 : index
    %c0_55 = arith.constant 0 : index
    %c0_56 = arith.constant 0 : index
    %72 = vector.load %arg2[%c5, %c0_55, %c0_56] : memref<8x16x128xbf16, #tpu.memory_space<vmem>>, vector<1x16x128xbf16>
    %73 = vector.shape_cast %72 : vector<1x16x128xbf16> to vector<16x128xbf16>
    %74 = arith.extf %73 : vector<16x128xbf16> to vector<16x128xf32>
    %75 = arith.addf %74, %71 : vector<16x128xf32>
    %76 = math.tanh %75 : vector<16x128xf32>
    %c0_57 = arith.constant 0 : index
    %c0_58 = arith.constant 0 : index
    %77 = vector.load %arg5[%c0_57, %c0_58] : memref<16x128xf32, #tpu.memory_space<vmem>>, vector<16x128xf32>
    tpu.vector_store %arg5[%c0_57, %c0_58], %76 {strides = array<i32>} : memref<16x128xf32, #tpu.memory_space<vmem>>, vector<16x128xf32>,
    %78 = arith.truncf %76 : vector<16x128xf32> to vector<16x128xbf16>
    %c0_59 = arith.constant 0 : index
    %c5_60 = arith.constant 5 : index
    %c0_61 = arith.constant 0 : index
    %79 = vector.load %arg4[%c0_59, %c5_60, %c0_61] : memref<16x8x128xbf16, #tpu.memory_space<vmem>>, vector<16x1x128xbf16>
    %80 = vector.shape_cast %79 : vector<16x1x128xbf16> to vector<16x128xbf16>
    %81 = vector.shape_cast %78 : vector<16x128xbf16> to vector<16x1x128xbf16>
    tpu.vector_store %arg4[%c0_59, %c5_60, %c0_61], %81 {strides = array<i32>} : memref<16x8x128xbf16, #tpu.memory_space<vmem>>, vector<16x1x128xbf16>,
    %c0_62 = arith.constant 0 : index
    %c0_63 = arith.constant 0 : index
    %82 = vector.load %arg5[%c0_62, %c0_63] : memref<16x128xf32, #tpu.memory_space<vmem>>, vector<16x128xf32>
    %83 = arith.truncf %82 : vector<16x128xf32> to vector<16x128xbf16>
    %cst_64 = arith.constant dense<0.000000e+00> : vector<16x128xf32>
    %84 = tpu.matmul %83, %3, %cst_64 {dimension_numbers = #tpu.dot_dimension_numbers<[1], [0], [0], [1], [0, 0, 1, 1], [], []>} : vector<16x128xbf16>, vector<128x128xbf16>, vector<16x128xf32> -> vector<16x128xf32>
    %c6 = arith.constant 6 : index
    %c0_65 = arith.constant 0 : index
    %c0_66 = arith.constant 0 : index
    %85 = vector.load %arg2[%c6, %c0_65, %c0_66] : memref<8x16x128xbf16, #tpu.memory_space<vmem>>, vector<1x16x128xbf16>
    %86 = vector.shape_cast %85 : vector<1x16x128xbf16> to vector<16x128xbf16>
    %87 = arith.extf %86 : vector<16x128xbf16> to vector<16x128xf32>
    %88 = arith.addf %87, %84 : vector<16x128xf32>
    %89 = math.tanh %88 : vector<16x128xf32>
    %c0_67 = arith.constant 0 : index
    %c0_68 = arith.constant 0 : index
    %90 = vector.load %arg5[%c0_67, %c0_68] : memref<16x128xf32, #tpu.memory_space<vmem>>, vector<16x128xf32>
    tpu.vector_store %arg5[%c0_67, %c0_68], %89 {strides = array<i32>} : memref<16x128xf32, #tpu.memory_space<vmem>>, vector<16x128xf32>,
    %91 = arith.truncf %89 : vector<16x128xf32> to vector<16x128xbf16>
    %c0_69 = arith.constant 0 : index
    %c6_70 = arith.constant 6 : index
    %c0_71 = arith.constant 0 : index
    %92 = vector.load %arg4[%c0_69, %c6_70, %c0_71] : memref<16x8x128xbf16, #tpu.memory_space<vmem>>, vector<16x1x128xbf16>
    %93 = vector.shape_cast %92 : vector<16x1x128xbf16> to vector<16x128xbf16>
    %94 = vector.shape_cast %91 : vector<16x128xbf16> to vector<16x1x128xbf16>
    tpu.vector_store %arg4[%c0_69, %c6_70, %c0_71], %94 {strides = array<i32>} : memref<16x8x128xbf16, #tpu.memory_space<vmem>>, vector<16x1x128xbf16>,
    %c0_72 = arith.constant 0 : index
    %c0_73 = arith.constant 0 : index
    %95 = vector.load %arg5[%c0_72, %c0_73] : memref<16x128xf32, #tpu.memory_space<vmem>>, vector<16x128xf32>
    %96 = arith.truncf %95 : vector<16x128xf32> to vector<16x128xbf16>
    %cst_74 = arith.constant dense<0.000000e+00> : vector<16x128xf32>
    %97 = tpu.matmul %96, %3, %cst_74 {dimension_numbers = #tpu.dot_dimension_numbers<[1], [0], [0], [1], [0, 0, 1, 1], [], []>} : vector<16x128xbf16>, vector<128x128xbf16>, vector<16x128xf32> -> vector<16x128xf32>
    %c7 = arith.constant 7 : index
    %c0_75 = arith.constant 0 : index
    %c0_76 = arith.constant 0 : index
    %98 = vector.load %arg2[%c7, %c0_75, %c0_76] : memref<8x16x128xbf16, #tpu.memory_space<vmem>>, vector<1x16x128xbf16>
    %99 = vector.shape_cast %98 : vector<1x16x128xbf16> to vector<16x128xbf16>
    %100 = arith.extf %99 : vector<16x128xbf16> to vector<16x128xf32>
    %101 = arith.addf %100, %97 : vector<16x128xf32>
    %102 = math.tanh %101 : vector<16x128xf32>
    %c0_77 = arith.constant 0 : index
    %c0_78 = arith.constant 0 : index
    %103 = vector.load %arg5[%c0_77, %c0_78] : memref<16x128xf32, #tpu.memory_space<vmem>>, vector<16x128xf32>
    tpu.vector_store %arg5[%c0_77, %c0_78], %102 {strides = array<i32>} : memref<16x128xf32, #tpu.memory_space<vmem>>, vector<16x128xf32>,
    %104 = arith.truncf %102 : vector<16x128xf32> to vector<16x128xbf16>
    %c0_79 = arith.constant 0 : index
    %c7_80 = arith.constant 7 : index
    %c0_81 = arith.constant 0 : index
    %105 = vector.load %arg4[%c0_79, %c7_80, %c0_81] : memref<16x8x128xbf16, #tpu.memory_space<vmem>>, vector<16x1x128xbf16>
    %106 = vector.shape_cast %105 : vector<16x1x128xbf16> to vector<16x128xbf16>
    %107 = vector.shape_cast %104 : vector<16x128xbf16> to vector<16x1x128xbf16>
    tpu.vector_store %arg4[%c0_79, %c7_80, %c0_81], %107 {strides = array<i32>} : memref<16x8x128xbf16, #tpu.memory_space<vmem>>, vector<16x1x128xbf16>,
    return
  }
  func.func @transform_0(%arg0: i32, %arg1: i32) -> (i32, i32, i32) {
    %c0_i32 = arith.constant 0 : i32
    %c0_i32_0 = arith.constant 0 : i32
    return %arg1, %arg0, %c0_i32 : i32, i32, i32
  }
  func.func @transform_1(%arg0: i32, %arg1: i32) -> (i32, i32) {
    %c0_i32 = arith.constant 0 : i32
    %c0_i32_0 = arith.constant 0 : i32
    %c0_i32_1 = arith.constant 0 : i32
    return %c0_i32, %c0_i32_0 : i32, i32
  }
  func.func @transform_2(%arg0: i32, %arg1: i32) -> (i32, i32, i32) {
    %c0_i32 = arith.constant 0 : i32
    %c0_i32_0 = arith.constant 0 : i32
    return %arg0, %arg1, %c0_i32 : i32, i32, i32
  }
}

</mosaic_0001>

<llo_original>
// kernel: rnn_forward.3
$region0: #{rnn_forward.3}
  #allocation0 [shape = 'u32[]', space=smem, size = 0x4, offset = 0x4, fixed_abs, tag = 'smem constant byte address 0x4 - core index']
  #allocation1 [shape = 'u32[144,128]{1,0:T(1,128)}', space=vmem, size = 0x12000, scoped, tag = 'internal scratch']
  #allocation2 [shape = 'f32[128,128]{1,0:T(8,128)}', space=vmem, size = 0x10000, scoped, tag = 'scratch operand']
  %s0 = inlined_call_operand.vmem [shape: bf16[128,128], index: 0, kind: input, shape index: {}]
  %s1 = inlined_call_operand.vmem [shape: bf16[128,128], index: 1, kind: input, shape index: {}]
  %s2 = inlined_call_operand.vmem [shape: f32[1,128], index: 2, kind: input, shape index: {}]
  %s3 = inlined_call_operand.vmem [shape: bf16[128,128], index: 3, kind: output, shape index: {}]
  %s4 = sld [smem:[#allocation0]]
  $region30: #{rnn_forward.3} parent=0
    _
  %s6 = ssub.s32 1, %s4
  %s7 = scalar_select 0, %s6, %s4
  // Predicated region
  $region2: #{rnn_forward.3} parent=0 // pred_check
    _
  $region3: #{rnn_forward.3} parent=0 // pred_check_branch
    %9 = sbr.rel (0) target = $region5
  $region4: #{rnn_forward.3} parent=0 // pred_region
    _
  $region5: #{rnn_forward.3} parent=0 // pred_fallthru
    _
  // Predicated region
  $region6: #{rnn_forward.3} parent=0 // pred_check
    _
  $region7: #{rnn_forward.3} parent=0 // pred_check_branch
    %11 = sbr.rel (0) target = $region9
  $region8: #{rnn_forward.3} parent=0 // pred_region
    _
  $region9: #{rnn_forward.3} parent=0 // pred_fallthru
    _
  // Predicated region
  $region10: #{rnn_forward.3} parent=0 // pred_check
    _
  $region11: #{rnn_forward.3} parent=0 // pred_check_branch
    %13 = sbr.rel (0) target = $region13
  $region12: #{rnn_forward.3} parent=0 // pred_region
    _
  $region13: #{rnn_forward.3} parent=0 // pred_fallthru
    _
  %p15 = scmp.eq.s32.totalorder 0, 0
  // Predicated region
  $region14: #{rnn_forward.3} parent=0 // pred_check
    %p16 = pneg %p15
  $region15: #{rnn_forward.3} parent=0 // pred_check_branch
    %18 = sbr.rel (%p16) target = $region17
  $region16: #{rnn_forward.3} parent=0 // pred_region
    %19 = vst [vmem:[#allocation2] sm:$0xff] 0.0
    %20 = vst [vmem:[#allocation2 + $0x8] sm:$0xff] 0.0
    %21 = vst [vmem:[#allocation2 + $0x10] sm:$0xff] 0.0
    %22 = vst [vmem:[#allocation2 + $0x18] sm:$0xff] 0.0
    %23 = vst [vmem:[#allocation2 + $0x20] sm:$0xff] 0.0
    %24 = vst [vmem:[#allocation2 + $0x28] sm:$0xff] 0.0
    %25 = vst [vmem:[#allocation2 + $0x30] sm:$0xff] 0.0
    %26 = vst [vmem:[#allocation2 + $0x38] sm:$0xff] 0.0
    %27 = vst [vmem:[#allocation2 + $0x40] sm:$0xff] 0.0
    %28 = vst [vmem:[#allocation2 + $0x48] sm:$0xff] 0.0
    %29 = vst [vmem:[#allocation2 + $0x50] sm:$0xff] 0.0
    %30 = vst [vmem:[#allocation2 + $0x58] sm:$0xff] 0.0
    %31 = vst [vmem:[#allocation2 + $0x60] sm:$0xff] 0.0
    %32 = vst [vmem:[#allocation2 + $0x68] sm:$0xff] 0.0
    %33 = vst [vmem:[#allocation2 + $0x70] sm:$0xff] 0.0
    %34 = vst [vmem:[#allocation2 + $0x78] sm:$0xff] 0.0
  $region17: #{rnn_forward.3} parent=0 // pred_fallthru
    _
  %v35 = vld [vmem:[#allocation2] sm:$0xff]
  %v36 = vld [vmem:[#allocation2 + $0x8] sm:$0xff]
  %v37 = vld [vmem:[#allocation2 + $0x10] sm:$0xff]
  %v38 = vld [vmem:[#allocation2 + $0x18] sm:$0xff]
  %v39 = vld [vmem:[#allocation2 + $0x20] sm:$0xff]
  %v40 = vld [vmem:[#allocation2 + $0x28] sm:$0xff]
  %v41 = vld [vmem:[#allocation2 + $0x30] sm:$0xff]
  %v42 = vld [vmem:[#allocation2 + $0x38] sm:$0xff]
  %v43 = vld [vmem:[#allocation2 + $0x40] sm:$0xff]
  %v44 = vld [vmem:[#allocation2 + $0x48] sm:$0xff]
  %v45 = vld [vmem:[#allocation2 + $0x50] sm:$0xff]
  %v46 = vld [vmem:[#allocation2 + $0x58] sm:$0xff]
  %v47 = vld [vmem:[#allocation2 + $0x60] sm:$0xff]
  %v48 = vld [vmem:[#allocation2 + $0x68] sm:$0xff]
  %v49 = vld [vmem:[#allocation2 + $0x70] sm:$0xff]
  %v50 = vld [vmem:[#allocation2 + $0x78] sm:$0xff]
  %v51 = vld [vmem:[%s0] sm:$0xf]
  %v52 = vld [vmem:[%s0 + $0x4] sm:$0xf]
  %v53 = vld [vmem:[%s0 + $0x8] sm:$0xf]
  %v54 = vld [vmem:[%s0 + $0xc] sm:$0xf]
  %v55 = vld [vmem:[%s0 + $0x10] sm:$0xf]
  %v56 = vld [vmem:[%s0 + $0x14] sm:$0xf]
  %v57 = vld [vmem:[%s0 + $0x18] sm:$0xf]
  %v58 = vld [vmem:[%s0 + $0x1c] sm:$0xf]
  %v59 = vld [vmem:[%s0 + $0x20] sm:$0xf]
  %v60 = vld [vmem:[%s0 + $0x24] sm:$0xf]
  %v61 = vld [vmem:[%s0 + $0x28] sm:$0xf]
  %v62 = vld [vmem:[%s0 + $0x2c] sm:$0xf]
  %v63 = vld [vmem:[%s0 + $0x30] sm:$0xf]
  %v64 = vld [vmem:[%s0 + $0x34] sm:$0xf]
  %v65 = vld [vmem:[%s0 + $0x38] sm:$0xf]
  %v66 = vld [vmem:[%s0 + $0x3c] sm:$0xf]
  %v67 = vld [vmem:[%s1] sm:$0xf]
  %v68 = vld [vmem:[%s1 + $0x4] sm:$0xf]
  %v69 = vld [vmem:[%s1 + $0x8] sm:$0xf]
  %v70 = vld [vmem:[%s1 + $0xc] sm:$0xf]
  %v71 = vld [vmem:[%s1 + $0x10] sm:$0xf]
  %v72 = vld [vmem:[%s1 + $0x14] sm:$0xf]
  %v73 = vld [vmem:[%s1 + $0x18] sm:$0xf]
  %v74 = vld [vmem:[%s1 + $0x1c] sm:$0xf]
  %v75 = vld [vmem:[%s1 + $0x20] sm:$0xf]
  %v76 = vld [vmem:[%s1 + $0x24] sm:$0xf]
  %v77 = vld [vmem:[%s1 + $0x28] sm:$0xf]
  %v78 = vld [vmem:[%s1 + $0x2c] sm:$0xf]
  %v79 = vld [vmem:[%s1 + $0x30] sm:$0xf]
  %v80 = vld [vmem:[%s1 + $0x34] sm:$0xf]
  %v81 = vld [vmem:[%s1 + $0x38] sm:$0xf]
  %v82 = vld [vmem:[%s1 + $0x3c] sm:$0xf]
  %v99 = vunpack.c.l.b16 %v51
  %v100 = vunpack.c.l.b16 %v52
  %v101 = vunpack.c.l.b16 %v53
  %v102 = vunpack.c.l.b16 %v54
  %v103 = vunpack.c.l.b16 %v55
  %v104 = vunpack.c.l.b16 %v56
  %v105 = vunpack.c.l.b16 %v57
  %v106 = vunpack.c.l.b16 %v58
  %v107 = vunpack.c.l.b16 %v59
  %v108 = vunpack.c.l.b16 %v60
  %v109 = vunpack.c.l.b16 %v61
  %v110 = vunpack.c.l.b16 %v62
  %v111 = vunpack.c.l.b16 %v63
  %v112 = vunpack.c.l.b16 %v64
  %v113 = vunpack.c.l.b16 %v65
  %v114 = vunpack.c.l.b16 %v66
  %v115 = vpack.c.b16 %v100, %v99
  %v116 = vpack.c.b16 %v102, %v101
  %v117 = vpack.c.b16 %v104, %v103
  %v118 = vpack.c.b16 %v106, %v105
  %v119 = vpack.c.b16 %v108, %v107
  %v120 = vpack.c.b16 %v110, %v109
  %v121 = vpack.c.b16 %v112, %v111
  %v122 = vpack.c.b16 %v114, %v113
  %v147 = vunpack.c.l.b16 %v67
  %v148 = vunpack.c.l.b16 %v68
  %v149 = vunpack.c.l.b16 %v69
  %v150 = vunpack.c.l.b16 %v70
  %v151 = vunpack.c.l.b16 %v71
  %v152 = vunpack.c.l.b16 %v72
  %v153 = vunpack.c.l.b16 %v73
  %v154 = vunpack.c.l.b16 %v74
  %v155 = vunpack.c.l.b16 %v75
  %v156 = vunpack.c.l.b16 %v76
  %v157 = vunpack.c.l.b16 %v77
  %v158 = vunpack.c.l.b16 %v78
  %v159 = vunpack.c.l.b16 %v79
  %v160 = vunpack.c.l.b16 %v80
  %v161 = vunpack.c.l.b16 %v81
  %v162 = vunpack.c.l.b16 %v82
  %v163 = vpack.c.b16 %v148, %v147
  %v164 = vpack.c.b16 %v150, %v149
  %v165 = vpack.c.b16 %v152, %v151
  %v166 = vpack.c.b16 %v154, %v153
  %v167 = vpack.c.b16 %v156, %v155
  %v168 = vpack.c.b16 %v158, %v157
  %v169 = vpack.c.b16 %v160, %v159
  %v170 = vpack.c.b16 %v162, %v161
  %179 = vmatprep.subr.bf16.mxu0 0
  %180 = vmatpush1.bf16.msra.mxu0 %v163
  %181 = vmatprep.subr.bf16.mxu0 0
  %182 = vmatpush1.bf16.msra.mxu0 %v164
  %183 = vmatprep.subr.bf16.mxu0 0
  %184 = vmatpush1.bf16.msra.mxu0 %v165
  %185 = vmatprep.subr.bf16.mxu0 0
  %186 = vmatpush1.bf16.msra.mxu0 %v166
  %187 = vmatprep.subr.bf16.mxu0 0
  %188 = vmatpush1.bf16.msra.mxu0 %v167
  %189 = vmatprep.subr.bf16.mxu0 0
  %190 = vmatpush1.bf16.msra.mxu0 %v168
  %191 = vmatprep.subr.bf16.mxu0 0
  %192 = vmatpush1.bf16.msra.mxu0 %v169
  %193 = vmatprep.subr.bf16.mxu0 0
  %194 = vmatpush1.bf16.msra.mxu0 %v170
  %195 = vmatprep.subr.bf16.mxu0 0
  %196 = vmatpush1.bf16.msra.mxu0 0
  %197 = vmatprep.subr.bf16.mxu0 0
  %198 = vmatpush1.bf16.msra.mxu0 0
  %199 = vmatprep.subr.bf16.mxu0 0
  %200 = vmatpush1.bf16.msra.mxu0 0
  %201 = vmatprep.subr.bf16.mxu0 0
  %202 = vmatpush1.bf16.msra.mxu0 0
  %203 = vmatprep.subr.bf16.mxu0 0
  %204 = vmatpush1.bf16.msra.mxu0 0
  %205 = vmatprep.subr.bf16.mxu0 0
  %206 = vmatpush1.bf16.msra.mxu0 0
  %207 = vmatprep.subr.bf16.mxu0 0
  %208 = vmatpush1.bf16.msra.mxu0 0
  %209 = vmatprep.subr.bf16.mxu0 0
  %210 = vmatpush1.bf16.msra.mxu0 0
  %211 = vmatprep.mubr.bf16.mxu0 0
  %212 = vmatmul.mubr.bf16.gmra.mrb[0].mxu0 %v115
  %v213 = vpop.f32.mrb[0].mxu0
  %v214 = vadd.f32 0.0, %v213
  %v215 = vpop.f32.mrb[0].mxu0
  %v216 = vpop.f32.mrb[0].mxu0
  %v217 = vadd.f32 0.0, %v216
  %v218 = vpop.f32.mrb[0].mxu0
  %219 = vmatprep.mubr.bf16.mxu0 0
  %220 = vmatmul.mubr.bf16.gmra.mrb[0].mxu0 %v116
  %v221 = vpop.f32.mrb[0].mxu0
  %v222 = vadd.f32 0.0, %v221
  %v223 = vpop.f32.mrb[0].mxu0
  %v224 = vpop.f32.mrb[0].mxu0
  %v225 = vadd.f32 0.0, %v224
  %v226 = vpop.f32.mrb[0].mxu0
  %227 = vmatprep.mubr.bf16.mxu0 0
  %228 = vmatmul.mubr.bf16.gmra.mrb[0].mxu0 %v117
  %v229 = vpop.f32.mrb[0].mxu0
  %v230 = vadd.f32 0.0, %v229
  %v231 = vpop.f32.mrb[0].mxu0
  %v232 = vpop.f32.mrb[0].mxu0
  %v233 = vadd.f32 0.0, %v232
  %v234 = vpop.f32.mrb[0].mxu0
  %235 = vmatprep.mubr.bf16.mxu0 0
  %236 = vmatmul.mubr.bf16.gmra.mrb[0].mxu0 %v118
  %v237 = vpop.f32.mrb[0].mxu0
  %v238 = vadd.f32 0.0, %v237
  %v239 = vpop.f32.mrb[0].mxu0
  %v240 = vpop.f32.mrb[0].mxu0
  %v241 = vadd.f32 0.0, %v240
  %v242 = vpop.f32.mrb[0].mxu0
  %243 = vmatprep.mubr.bf16.mxu0 0
  %244 = vmatmul.mubr.bf16.gmra.mrb[0].mxu0 %v119
  %v245 = vpop.f32.mrb[0].mxu0
  %v246 = vadd.f32 0.0, %v245
  %v247 = vpop.f32.mrb[0].mxu0
  %v248 = vpop.f32.mrb[0].mxu0
  %v249 = vadd.f32 0.0, %v248
  %v250 = vpop.f32.mrb[0].mxu0
  %251 = vmatprep.mubr.bf16.mxu0 0
  %252 = vmatmul.mubr.bf16.gmra.mrb[0].mxu0 %v120
  %v253 = vpop.f32.mrb[0].mxu0
  %v254 = vadd.f32 0.0, %v253
  %v255 = vpop.f32.mrb[0].mxu0
  %v256 = vpop.f32.mrb[0].mxu0
  %v257 = vadd.f32 0.0, %v256
  %v258 = vpop.f32.mrb[0].mxu0
  %259 = vmatprep.mubr.bf16.mxu0 0
  %260 = vmatmul.mubr.bf16.gmra.mrb[0].mxu0 %v121
  %v261 = vpop.f32.mrb[0].mxu0
  %v262 = vadd.f32 0.0, %v261
  %v263 = vpop.f32.mrb[0].mxu0
  %v264 = vpop.f32.mrb[0].mxu0
  %v265 = vadd.f32 0.0, %v264
  %v266 = vpop.f32.mrb[0].mxu0
  %267 = vmatprep.mubr.bf16.mxu0 0
  %268 = vmatmul.mubr.bf16.gmra.mrb[0].mxu0 %v122
  %v269 = vpop.f32.mrb[0].mxu0
  %v270 = vadd.f32 0.0, %v269
  %v271 = vpop.f32.mrb[0].mxu0
  %v272 = vpop.f32.mrb[0].mxu0
  %v273 = vadd.f32 0.0, %v272
  %v274 = vpop.f32.mrb[0].mxu0
  %275 = vdwg.mxu0
  %v276 = vadd.f32 %v35, %v214
  %v277 = vadd.f32 %v36, %v217
  %v278 = vadd.f32 %v37, %v222
  %v279 = vadd.f32 %v38, %v225
  %v280 = vadd.f32 %v39, %v230
  %v281 = vadd.f32 %v40, %v233
  %v282 = vadd.f32 %v41, %v238
  %v283 = vadd.f32 %v42, %v241
  %v284 = vadd.f32 %v43, %v246
  %v285 = vadd.f32 %v44, %v249
  %v286 = vadd.f32 %v45, %v254
  %v287 = vadd.f32 %v46, %v257
  %v288 = vadd.f32 %v47, %v262
  %v289 = vadd.f32 %v48, %v265
  %v290 = vadd.f32 %v49, %v270
  %v291 = vadd.f32 %v50, %v273
  %292 = vst [vmem:[#allocation2] sm:$0xff] %v276
  %293 = vst [vmem:[#allocation2 + $0x8] sm:$0xff] %v277
  %294 = vst [vmem:[#allocation2 + $0x10] sm:$0xff] %v278
  %295 = vst [vmem:[#allocation2 + $0x18] sm:$0xff] %v279
  %296 = vst [vmem:[#allocation2 + $0x20] sm:$0xff] %v280
  %297 = vst [vmem:[#allocation2 + $0x28] sm:$0xff] %v281
  %298 = vst [vmem:[#allocation2 + $0x30] sm:$0xff] %v282
  %299 = vst [vmem:[#allocation2 + $0x38] sm:$0xff] %v283
  %300 = vst [vmem:[#allocation2 + $0x40] sm:$0xff] %v284
  %301 = vst [vmem:[#allocation2 + $0x48] sm:$0xff] %v285
  %302 = vst [vmem:[#allocation2 + $0x50] sm:$0xff] %v286
  %303 = vst [vmem:[#allocation2 + $0x58] sm:$0xff] %v287
  %304 = vst [vmem:[#allocation2 + $0x60] sm:$0xff] %v288
  %305 = vst [vmem:[#allocation2 + $0x68] sm:$0xff] %v289
  %306 = vst [vmem:[#allocation2 + $0x70] sm:$0xff] %v290
  %307 = vst [vmem:[#allocation2 + $0x78] sm:$0xff] %v291
  // Predicated region
  $region18: #{rnn_forward.3} parent=0 // pred_check
    %p308 = pneg %p15
  $region19: #{rnn_forward.3} parent=0 // pred_check_branch
    %310 = sbr.rel (%p308) target = $region21
  $region20: #{rnn_forward.3} parent=0 // pred_region
    %v311 = vld [vmem:[#allocation2] sm:$0xff]
    %v312 = vld [vmem:[#allocation2 + $0x8] sm:$0xff]
    %v313 = vld [vmem:[#allocation2 + $0x10] sm:$0xff]
    %v314 = vld [vmem:[#allocation2 + $0x18] sm:$0xff]
    %v315 = vld [vmem:[#allocation2 + $0x20] sm:$0xff]
    %v316 = vld [vmem:[#allocation2 + $0x28] sm:$0xff]
    %v317 = vld [vmem:[#allocation2 + $0x30] sm:$0xff]
    %v318 = vld [vmem:[#allocation2 + $0x38] sm:$0xff]
    %v319 = vld [vmem:[#allocation2 + $0x40] sm:$0xff]
    %v320 = vld [vmem:[#allocation2 + $0x48] sm:$0xff]
    %v321 = vld [vmem:[#allocation2 + $0x50] sm:$0xff]
    %v322 = vld [vmem:[#allocation2 + $0x58] sm:$0xff]
    %v323 = vld [vmem:[#allocation2 + $0x60] sm:$0xff]
    %v324 = vld [vmem:[#allocation2 + $0x68] sm:$0xff]
    %v325 = vld [vmem:[#allocation2 + $0x70] sm:$0xff]
    %v326 = vld [vmem:[#allocation2 + $0x78] sm:$0xff]
    %v327 = vld [vmem:[%s2] sm:$0x1]
    %v329 = vlaneseq
    %v330 = vshrl.u32 %v329, 7
    %v331 = vsub.s32 0, %v330
    %v332 = vrot.slane %v327, %v331
    %v334 = vadd.f32 %v311, %v332
    %v335 = vadd.f32 %v312, %v332
    %v336 = vadd.f32 %v313, %v332
    %v337 = vadd.f32 %v314, %v332
    %v338 = vadd.f32 %v315, %v332
    %v339 = vadd.f32 %v316, %v332
    %v340 = vadd.f32 %v317, %v332
    %v341 = vadd.f32 %v318, %v332
    %v342 = vadd.f32 %v319, %v332
    %v343 = vadd.f32 %v320, %v332
    %v344 = vadd.f32 %v321, %v332
    %v345 = vadd.f32 %v322, %v332
    %v346 = vadd.f32 %v323, %v332
    %v347 = vadd.f32 %v324, %v332
    %v348 = vadd.f32 %v325, %v332
    %v349 = vadd.f32 %v326, %v332
    %v350 = vpack.c.bf16 %v335, %v334
    %v351 = vpack.c.bf16 %v337, %v336
    %v352 = vpack.c.bf16 %v339, %v338
    %v353 = vpack.c.bf16 %v341, %v340
    %v354 = vpack.c.bf16 %v343, %v342
    %v355 = vpack.c.bf16 %v345, %v344
    %v356 = vpack.c.bf16 %v347, %v346
    %v357 = vpack.c.bf16 %v349, %v348
    %v366 = vunpack.c.l.b16 %v350
    %v367 = vunpack.c.h.b16 %v350
    %v368 = vunpack.c.l.b16 %v351
    %v369 = vunpack.c.h.b16 %v351
    %v370 = vunpack.c.l.b16 %v352
    %v371 = vunpack.c.h.b16 %v352
    %v372 = vunpack.c.l.b16 %v353
    %v373 = vunpack.c.h.b16 %v353
    %v374 = vunpack.c.l.b16 %v354
    %v375 = vunpack.c.h.b16 %v354
    %v376 = vunpack.c.l.b16 %v355
    %v377 = vunpack.c.h.b16 %v355
    %v378 = vunpack.c.l.b16 %v356
    %v379 = vunpack.c.h.b16 %v356
    %v380 = vunpack.c.l.b16 %v357
    %v381 = vunpack.c.h.b16 %v357
    %v382 = vpack.c.b16 %v366, %v366
    %v383 = vpack.c.b16 %v367, %v367
    %v384 = vpack.c.b16 %v368, %v368
    %v385 = vpack.c.b16 %v369, %v369
    %v386 = vpack.c.b16 %v370, %v370
    %v387 = vpack.c.b16 %v371, %v371
    %v388 = vpack.c.b16 %v372, %v372
    %v389 = vpack.c.b16 %v373, %v373
    %v390 = vpack.c.b16 %v374, %v374
    %v391 = vpack.c.b16 %v375, %v375
    %v392 = vpack.c.b16 %v376, %v376
    %v393 = vpack.c.b16 %v377, %v377
    %v394 = vpack.c.b16 %v378, %v378
    %v395 = vpack.c.b16 %v379, %v379
    %v396 = vpack.c.b16 %v380, %v380
    %v397 = vpack.c.b16 %v381, %v381
    %414 = vst [vmem:[%s3] sm:$0xf] %v382
    %415 = vst [vmem:[%s3 + $0x4] sm:$0xf] %v383
    %416 = vst [vmem:[%s3 + $0x8] sm:$0xf] %v384
    %417 = vst [vmem:[%s3 + $0xc] sm:$0xf] %v385
    %418 = vst [vmem:[%s3 + $0x10] sm:$0xf] %v386
    %419 = vst [vmem:[%s3 + $0x14] sm:$0xf] %v387
    %420 = vst [vmem:[%s3 + $0x18] sm:$0xf] %v388
    %421 = vst [vmem:[%s3 + $0x1c] sm:$0xf] %v389
    %422 = vst [vmem:[%s3 + $0x20] sm:$0xf] %v390
    %423 = vst [vmem:[%s3 + $0x24] sm:$0xf] %v391
    %424 = vst [vmem:[%s3 + $0x28] sm:$0xf] %v392
    %425 = vst [vmem:[%s3 + $0x2c] sm:$0xf] %v393
    %426 = vst [vmem:[%s3 + $0x30] sm:$0xf] %v394
    %427 = vst [vmem:[%s3 + $0x34] sm:$0xf] %v395
    %428 = vst [vmem:[%s3 + $0x38] sm:$0xf] %v396
    %429 = vst [vmem:[%s3 + $0x3c] sm:$0xf] %v397
  $region21: #{rnn_forward.3} parent=0 // pred_fallthru
    _
  // Predicated region
  $region22: #{rnn_forward.3} parent=0 // pred_check
    _
  $region23: #{rnn_forward.3} parent=0 // pred_check_branch
    %431 = sbr.rel (0) target = $region25
  $region24: #{rnn_forward.3} parent=0 // pred_region
    _
  $region25: #{rnn_forward.3} parent=0 // pred_fallthru
    _
  // Predicated region
  $region26: #{rnn_forward.3} parent=0 // pred_check
    _
  $region27: #{rnn_forward.3} parent=0 // pred_check_branch
    %433 = sbr.rel (0) target = $region29
  $region28: #{rnn_forward.3} parent=0 // pred_region
    _
  $region29: #{rnn_forward.3} parent=0 // pred_fallthru
    _

// kernel: rnn_forward.5
$region0: #{rnn_forward.5}
  #allocation0 [shape = 'u32[]', space=smem, size = 0x4, offset = 0x4, fixed_abs, tag = 'smem constant byte address 0x4 - core index']
  #allocation1 [shape = 'u32[144,128]{1,0:T(1,128)}', space=vmem, size = 0x12000, scoped, tag = 'internal scratch']
  #allocation2 [shape = 'f32[128,256]{1,0:T(8,128)}', space=vmem, size = 0x20000, scoped, tag = 'scratch operand']
  %s0 = inlined_call_operand.vmem [shape: bf16[128,128], index: 0, kind: input, shape index: {}]
  %s1 = inlined_call_operand.vmem [shape: bf16[128,256], index: 1, kind: input, shape index: {}]
  %s2 = inlined_call_operand.vmem [shape: f32[1,256], index: 2, kind: input, shape index: {}]
  %s3 = inlined_call_operand.vmem [shape: f32[128,256], index: 3, kind: output, shape index: {}]
  %s4 = sld [smem:[#allocation0]]
  $region30: #{rnn_forward.5} parent=0
    _
  %s6 = ssub.s32 1, %s4
  %s7 = scalar_select 0, %s6, %s4
  // Predicated region
  $region2: #{rnn_forward.5} parent=0 // pred_check
    _
  $region3: #{rnn_forward.5} parent=0 // pred_check_branch
    %9 = sbr.rel (0) target = $region5
  $region4: #{rnn_forward.5} parent=0 // pred_region
    _
  $region5: #{rnn_forward.5} parent=0 // pred_fallthru
    _
  // Predicated region
  $region6: #{rnn_forward.5} parent=0 // pred_check
    _
  $region7: #{rnn_forward.5} parent=0 // pred_check_branch
    %11 = sbr.rel (0) target = $region9
  $region8: #{rnn_forward.5} parent=0 // pred_region
    _
  $region9: #{rnn_forward.5} parent=0 // pred_fallthru
    _
  // Predicated region
  $region10: #{rnn_forward.5} parent=0 // pred_check
    _
  $region11: #{rnn_forward.5} parent=0 // pred_check_branch
    %13 = sbr.rel (0) target = $region13
  $region12: #{rnn_forward.5} parent=0 // pred_region
    _
  $region13: #{rnn_forward.5} parent=0 // pred_fallthru
    _
  %p15 = scmp.eq.s32.totalorder 0, 0
  // Predicated region
  $region14: #{rnn_forward.5} parent=0 // pred_check
    %p16 = pneg %p15
  $region15: #{rnn_forward.5} parent=0 // pred_check_branch
    %18 = sbr.rel (%p16) target = $region17
  $region16: #{rnn_forward.5} parent=0 // pred_region
    %19 = vst [vmem:[#allocation2] sm:$0xff] 0.0
    %20 = vst [vmem:[#allocation2 + $0x8] sm:$0xff] 0.0
    %21 = vst [vmem:[#allocation2 + $0x10] sm:$0xff] 0.0
    %22 = vst [vmem:[#allocation2 + $0x18] sm:$0xff] 0.0
    %23 = vst [vmem:[#allocation2 + $0x20] sm:$0xff] 0.0
    %24 = vst [vmem:[#allocation2 + $0x28] sm:$0xff] 0.0
    %25 = vst [vmem:[#allocation2 + $0x30] sm:$0xff] 0.0
    %26 = vst [vmem:[#allocation2 + $0x38] sm:$0xff] 0.0
    %27 = vst [vmem:[#allocation2 + $0x40] sm:$0xff] 0.0
    %28 = vst [vmem:[#allocation2 + $0x48] sm:$0xff] 0.0
    %29 = vst [vmem:[#allocation2 + $0x50] sm:$0xff] 0.0
    %30 = vst [vmem:[#allocation2 + $0x58] sm:$0xff] 0.0
    %31 = vst [vmem:[#allocation2 + $0x60] sm:$0xff] 0.0
    %32 = vst [vmem:[#allocation2 + $0x68] sm:$0xff] 0.0
    %33 = vst [vmem:[#allocation2 + $0x70] sm:$0xff] 0.0
    %34 = vst [vmem:[#allocation2 + $0x78] sm:$0xff] 0.0
    %35 = vst [vmem:[#allocation2 + $0x80] sm:$0xff] 0.0
    %36 = vst [vmem:[#allocation2 + $0x88] sm:$0xff] 0.0
    %37 = vst [vmem:[#allocation2 + $0x90] sm:$0xff] 0.0
    %38 = vst [vmem:[#allocation2 + $0x98] sm:$0xff] 0.0
    %39 = vst [vmem:[#allocation2 + $0xa0] sm:$0xff] 0.0
    %40 = vst [vmem:[#allocation2 + $0xa8] sm:$0xff] 0.0
    %41 = vst [vmem:[#allocation2 + $0xb0] sm:$0xff] 0.0
    %42 = vst [vmem:[#allocation2 + $0xb8] sm:$0xff] 0.0
    %43 = vst [vmem:[#allocation2 + $0xc0] sm:$0xff] 0.0
    %44 = vst [vmem:[#allocation2 + $0xc8] sm:$0xff] 0.0
    %45 = vst [vmem:[#allocation2 + $0xd0] sm:$0xff] 0.0
    %46 = vst [vmem:[#allocation2 + $0xd8] sm:$0xff] 0.0
    %47 = vst [vmem:[#allocation2 + $0xe0] sm:$0xff] 0.0
    %48 = vst [vmem:[#allocation2 + $0xe8] sm:$0xff] 0.0
    %49 = vst [vmem:[#allocation2 + $0xf0] sm:$0xff] 0.0
    %50 = vst [vmem:[#allocation2 + $0xf8] sm:$0xff] 0.0
  $region17: #{rnn_forward.5} parent=0 // pred_fallthru
    _
  %v51 = vld [vmem:[#allocation2] sm:$0xff]
  %v52 = vld [vmem:[#allocation2 + $0x8] sm:$0xff]
  %v53 = vld [vmem:[#allocation2 + $0x10] sm:$0xff]
  %v54 = vld [vmem:[#allocation2 + $0x18] sm:$0xff]
  %v55 = vld [vmem:[#allocation2 + $0x20] sm:$0xff]
  %v56 = vld [vmem:[#allocation2 + $0x28] sm:$0xff]
  %v57 = vld [vmem:[#allocation2 + $0x30] sm:$0xff]
  %v58 = vld [vmem:[#allocation2 + $0x38] sm:$0xff]
  %v59 = vld [vmem:[#allocation2 + $0x40] sm:$0xff]
  %v60 = vld [vmem:[#allocation2 + $0x48] sm:$0xff]
  %v61 = vld [vmem:[#allocation2 + $0x50] sm:$0xff]
  %v62 = vld [vmem:[#allocation2 + $0x58] sm:$0xff]
  %v63 = vld [vmem:[#allocation2 + $0x60] sm:$0xff]
  %v64 = vld [vmem:[#allocation2 + $0x68] sm:$0xff]
  %v65 = vld [vmem:[#allocation2 + $0x70] sm:$0xff]
  %v66 = vld [vmem:[#allocation2 + $0x78] sm:$0xff]
  %v67 = vld [vmem:[#allocation2 + $0x80] sm:$0xff]
  %v68 = vld [vmem:[#allocation2 + $0x88] sm:$0xff]
  %v69 = vld [vmem:[#allocation2 + $0x90] sm:$0xff]
  %v70 = vld [vmem:[#allocation2 + $0x98] sm:$0xff]
  %v71 = vld [vmem:[#allocation2 + $0xa0] sm:$0xff]
  %v72 = vld [vmem:[#allocation2 + $0xa8] sm:$0xff]
  %v73 = vld [vmem:[#allocation2 + $0xb0] sm:$0xff]
  %v74 = vld [vmem:[#allocation2 + $0xb8] sm:$0xff]
  %v75 = vld [vmem:[#allocation2 + $0xc0] sm:$0xff]
  %v76 = vld [vmem:[#allocation2 + $0xc8] sm:$0xff]
  %v77 = vld [vmem:[#allocation2 + $0xd0] sm:$0xff]
  %v78 = vld [vmem:[#allocation2 + $0xd8] sm:$0xff]
  %v79 = vld [vmem:[#allocation2 + $0xe0] sm:$0xff]
  %v80 = vld [vmem:[#allocation2 + $0xe8] sm:$0xff]
  %v81 = vld [vmem:[#allocation2 + $0xf0] sm:$0xff]
  %v82 = vld [vmem:[#allocation2 + $0xf8] sm:$0xff]
  %v83 = vld [vmem:[%s0] sm:$0xf]
  %v84 = vld [vmem:[%s0 + $0x4] sm:$0xf]
  %v85 = vld [vmem:[%s0 + $0x8] sm:$0xf]
  %v86 = vld [vmem:[%s0 + $0xc] sm:$0xf]
  %v87 = vld [vmem:[%s0 + $0x10] sm:$0xf]
  %v88 = vld [vmem:[%s0 + $0x14] sm:$0xf]
  %v89 = vld [vmem:[%s0 + $0x18] sm:$0xf]
  %v90 = vld [vmem:[%s0 + $0x1c] sm:$0xf]
  %v91 = vld [vmem:[%s0 + $0x20] sm:$0xf]
  %v92 = vld [vmem:[%s0 + $0x24] sm:$0xf]
  %v93 = vld [vmem:[%s0 + $0x28] sm:$0xf]
  %v94 = vld [vmem:[%s0 + $0x2c] sm:$0xf]
  %v95 = vld [vmem:[%s0 + $0x30] sm:$0xf]
  %v96 = vld [vmem:[%s0 + $0x34] sm:$0xf]
  %v97 = vld [vmem:[%s0 + $0x38] sm:$0xf]
  %v98 = vld [vmem:[%s0 + $0x3c] sm:$0xf]
  %v99 = vld [vmem:[%s1] sm:$0xff]
  %v100 = vld [vmem:[%s1 + $0x8] sm:$0xff]
  %v101 = vld [vmem:[%s1 + $0x10] sm:$0xff]
  %v102 = vld [vmem:[%s1 + $0x18] sm:$0xff]
  %v103 = vld [vmem:[%s1 + $0x20] sm:$0xff]
  %v104 = vld [vmem:[%s1 + $0x28] sm:$0xff]
  %v105 = vld [vmem:[%s1 + $0x30] sm:$0xff]
  %v106 = vld [vmem:[%s1 + $0x38] sm:$0xff]
  %v107 = vld [vmem:[%s1 + $0x40] sm:$0xff]
  %v108 = vld [vmem:[%s1 + $0x48] sm:$0xff]
  %v109 = vld [vmem:[%s1 + $0x50] sm:$0xff]
  %v110 = vld [vmem:[%s1 + $0x58] sm:$0xff]
  %v111 = vld [vmem:[%s1 + $0x60] sm:$0xff]
  %v112 = vld [vmem:[%s1 + $0x68] sm:$0xff]
  %v113 = vld [vmem:[%s1 + $0x70] sm:$0xff]
  %v114 = vld [vmem:[%s1 + $0x78] sm:$0xff]
  %v131 = vunpack.c.l.b16 %v83
  %v132 = vunpack.c.l.b16 %v84
  %v133 = vunpack.c.l.b16 %v85
  %v134 = vunpack.c.l.b16 %v86
  %v135 = vunpack.c.l.b16 %v87
  %v136 = vunpack.c.l.b16 %v88
  %v137 = vunpack.c.l.b16 %v89
  %v138 = vunpack.c.l.b16 %v90
  %v139 = vunpack.c.l.b16 %v91
  %v140 = vunpack.c.l.b16 %v92
  %v141 = vunpack.c.l.b16 %v93
  %v142 = vunpack.c.l.b16 %v94
  %v143 = vunpack.c.l.b16 %v95
  %v144 = vunpack.c.l.b16 %v96
  %v145 = vunpack.c.l.b16 %v97
  %v146 = vunpack.c.l.b16 %v98
  %v147 = vpack.c.b16 %v132, %v131
  %v148 = vpack.c.b16 %v134, %v133
  %v149 = vpack.c.b16 %v136, %v135
  %v150 = vpack.c.b16 %v138, %v137
  %v151 = vpack.c.b16 %v140, %v139
  %v152 = vpack.c.b16 %v142, %v141
  %v153 = vpack.c.b16 %v144, %v143
  %v154 = vpack.c.b16 %v146, %v145
  %v179 = vunpack.c.l.b16 %v99
  %v180 = vunpack.c.h.b16 %v99
  %v181 = vunpack.c.l.b16 %v100
  %v182 = vunpack.c.h.b16 %v100
  %v183 = vunpack.c.l.b16 %v101
  %v184 = vunpack.c.h.b16 %v101
  %v185 = vunpack.c.l.b16 %v102
  %v186 = vunpack.c.h.b16 %v102
  %v187 = vunpack.c.l.b16 %v103
  %v188 = vunpack.c.h.b16 %v103
  %v189 = vunpack.c.l.b16 %v104
  %v190 = vunpack.c.h.b16 %v104
  %v191 = vunpack.c.l.b16 %v105
  %v192 = vunpack.c.h.b16 %v105
  %v193 = vunpack.c.l.b16 %v106
  %v194 = vunpack.c.h.b16 %v106
  %v195 = vunpack.c.l.b16 %v107
  %v196 = vunpack.c.h.b16 %v107
  %v197 = vunpack.c.l.b16 %v108
  %v198 = vunpack.c.h.b16 %v108
  %v199 = vunpack.c.l.b16 %v109
  %v200 = vunpack.c.h.b16 %v109
  %v201 = vunpack.c.l.b16 %v110
  %v202 = vunpack.c.h.b16 %v110
  %v203 = vunpack.c.l.b16 %v111
  %v204 = vunpack.c.h.b16 %v111
  %v205 = vunpack.c.l.b16 %v112
  %v206 = vunpack.c.h.b16 %v112
  %v207 = vunpack.c.l.b16 %v113
  %v208 = vunpack.c.h.b16 %v113
  %v209 = vunpack.c.l.b16 %v114
  %v210 = vunpack.c.h.b16 %v114
  %v211 = vpack.c.b16 %v181, %v179
  %v212 = vpack.c.b16 %v182, %v180
  %v213 = vpack.c.b16 %v185, %v183
  %v214 = vpack.c.b16 %v186, %v184
  %v215 = vpack.c.b16 %v189, %v187
  %v216 = vpack.c.b16 %v190, %v188
  %v217 = vpack.c.b16 %v193, %v191
  %v218 = vpack.c.b16 %v194, %v192
  %v219 = vpack.c.b16 %v197, %v195
  %v220 = vpack.c.b16 %v198, %v196
  %v221 = vpack.c.b16 %v201, %v199
  %v222 = vpack.c.b16 %v202, %v200
  %v223 = vpack.c.b16 %v205, %v203
  %v224 = vpack.c.b16 %v206, %v204
  %v225 = vpack.c.b16 %v209, %v207
  %v226 = vpack.c.b16 %v210, %v208
  %243 = vmatprep.subr.bf16.mxu0 %v212
  %244 = vmatpush1.bf16.msra.mxu0 %v211
  %245 = vmatprep.subr.bf16.mxu0 %v214
  %246 = vmatpush1.bf16.msra.mxu0 %v213
  %247 = vmatprep.subr.bf16.mxu0 %v216
  %248 = vmatpush1.bf16.msra.mxu0 %v215
  %249 = vmatprep.subr.bf16.mxu0 %v218
  %250 = vmatpush1.bf16.msra.mxu0 %v217
  %251 = vmatprep.subr.bf16.mxu0 %v220
  %252 = vmatpush1.bf16.msra.mxu0 %v219
  %253 = vmatprep.subr.bf16.mxu0 %v222
  %254 = vmatpush1.bf16.msra.mxu0 %v221
  %255 = vmatprep.subr.bf16.mxu0 %v224
  %256 = vmatpush1.bf16.msra.mxu0 %v223
  %257 = vmatprep.subr.bf16.mxu0 %v226
  %258 = vmatpush1.bf16.msra.mxu0 %v225
  %259 = vmatprep.subr.bf16.mxu0 0
  %260 = vmatpush1.bf16.msra.mxu0 0
  %261 = vmatprep.subr.bf16.mxu0 0
  %262 = vmatpush1.bf16.msra.mxu0 0
  %263 = vmatprep.subr.bf16.mxu0 0
  %264 = vmatpush1.bf16.msra.mxu0 0
  %265 = vmatprep.subr.bf16.mxu0 0
  %266 = vmatpush1.bf16.msra.mxu0 0
  %267 = vmatprep.subr.bf16.mxu0 0
  %268 = vmatpush1.bf16.msra.mxu0 0
  %269 = vmatprep.subr.bf16.mxu0 0
  %270 = vmatpush1.bf16.msra.mxu0 0
  %271 = vmatprep.subr.bf16.mxu0 0
  %272 = vmatpush1.bf16.msra.mxu0 0
  %273 = vmatprep.subr.bf16.mxu0 0
  %274 = vmatpush1.bf16.msra.mxu0 0
  %275 = vmatprep.mubr.bf16.mxu0 0
  %276 = vmatmul.mubr.bf16.gmra.mrb[0].mxu0 %v147
  %v277 = vpop.f32.mrb[0].mxu0
  %v278 = vadd.f32 0.0, %v277
  %v279 = vpop.f32.mrb[0].mxu0
  %v280 = vadd.f32 0.0, %v279
  %v281 = vpop.f32.mrb[0].mxu0
  %v282 = vadd.f32 0.0, %v281
  %v283 = vpop.f32.mrb[0].mxu0
  %v284 = vadd.f32 0.0, %v283
  %285 = vmatprep.mubr.bf16.mxu0 0
  %286 = vmatmul.mubr.bf16.gmra.mrb[0].mxu0 %v148
  %v287 = vpop.f32.mrb[0].mxu0
  %v288 = vadd.f32 0.0, %v287
  %v289 = vpop.f32.mrb[0].mxu0
  %v290 = vadd.f32 0.0, %v289
  %v291 = vpop.f32.mrb[0].mxu0
  %v292 = vadd.f32 0.0, %v291
  %v293 = vpop.f32.mrb[0].mxu0
  %v294 = vadd.f32 0.0, %v293
  %295 = vmatprep.mubr.bf16.mxu0 0
  %296 = vmatmul.mubr.bf16.gmra.mrb[0].mxu0 %v149
  %v297 = vpop.f32.mrb[0].mxu0
  %v298 = vadd.f32 0.0, %v297
  %v299 = vpop.f32.mrb[0].mxu0
  %v300 = vadd.f32 0.0, %v299
  %v301 = vpop.f32.mrb[0].mxu0
  %v302 = vadd.f32 0.0, %v301
  %v303 = vpop.f32.mrb[0].mxu0
  %v304 = vadd.f32 0.0, %v303
  %305 = vmatprep.mubr.bf16.mxu0 0
  %306 = vmatmul.mubr.bf16.gmra.mrb[0].mxu0 %v150
  %v307 = vpop.f32.mrb[0].mxu0
  %v308 = vadd.f32 0.0, %v307
  %v309 = vpop.f32.mrb[0].mxu0
  %v310 = vadd.f32 0.0, %v309
  %v311 = vpop.f32.mrb[0].mxu0
  %v312 = vadd.f32 0.0, %v311
  %v313 = vpop.f32.mrb[0].mxu0
  %v314 = vadd.f32 0.0, %v313
  %315 = vmatprep.mubr.bf16.mxu0 0
  %316 = vmatmul.mubr.bf16.gmra.mrb[0].mxu0 %v151
  %v317 = vpop.f32.mrb[0].mxu0
  %v318 = vadd.f32 0.0, %v317
  %v319 = vpop.f32.mrb[0].mxu0
  %v320 = vadd.f32 0.0, %v319
  %v321 = vpop.f32.mrb[0].mxu0
  %v322 = vadd.f32 0.0, %v321
  %v323 = vpop.f32.mrb[0].mxu0
  %v324 = vadd.f32 0.0, %v323
  %325 = vmatprep.mubr.bf16.mxu0 0
  %326 = vmatmul.mubr.bf16.gmra.mrb[0].mxu0 %v152
  %v327 = vpop.f32.mrb[0].mxu0
  %v328 = vadd.f32 0.0, %v327
  %v329 = vpop.f32.mrb[0].mxu0
  %v330 = vadd.f32 0.0, %v329
  %v331 = vpop.f32.mrb[0].mxu0
  %v332 = vadd.f32 0.0, %v331
  %v333 = vpop.f32.mrb[0].mxu0
  %v334 = vadd.f32 0.0, %v333
  %335 = vmatprep.mubr.bf16.mxu0 0
  %336 = vmatmul.mubr.bf16.gmra.mrb[0].mxu0 %v153
  %v337 = vpop.f32.mrb[0].mxu0
  %v338 = vadd.f32 0.0, %v337
  %v339 = vpop.f32.mrb[0].mxu0
  %v340 = vadd.f32 0.0, %v339
  %v341 = vpop.f32.mrb[0].mxu0
  %v342 = vadd.f32 0.0, %v341
  %v343 = vpop.f32.mrb[0].mxu0
  %v344 = vadd.f32 0.0, %v343
  %345 = vmatprep.mubr.bf16.mxu0 0
  %346 = vmatmul.mubr.bf16.gmra.mrb[0].mxu0 %v154
  %v347 = vpop.f32.mrb[0].mxu0
  %v348 = vadd.f32 0.0, %v347
  %v349 = vpop.f32.mrb[0].mxu0
  %v350 = vadd.f32 0.0, %v349
  %v351 = vpop.f32.mrb[0].mxu0
  %v352 = vadd.f32 0.0, %v351
  %v353 = vpop.f32.mrb[0].mxu0
  %v354 = vadd.f32 0.0, %v353
  %355 = vdwg.mxu0
  %v356 = vadd.f32 %v51, %v278
  %v357 = vadd.f32 %v52, %v280
  %v358 = vadd.f32 %v53, %v282
  %v359 = vadd.f32 %v54, %v284
  %v360 = vadd.f32 %v55, %v288
  %v361 = vadd.f32 %v56, %v290
  %v362 = vadd.f32 %v57, %v292
  %v363 = vadd.f32 %v58, %v294
  %v364 = vadd.f32 %v59, %v298
  %v365 = vadd.f32 %v60, %v300
  %v366 = vadd.f32 %v61, %v302
  %v367 = vadd.f32 %v62, %v304
  %v368 = vadd.f32 %v63, %v308
  %v369 = vadd.f32 %v64, %v310
  %v370 = vadd.f32 %v65, %v312
  %v371 = vadd.f32 %v66, %v314
  %v372 = vadd.f32 %v67, %v318
  %v373 = vadd.f32 %v68, %v320
  %v374 = vadd.f32 %v69, %v322
  %v375 = vadd.f32 %v70, %v324
  %v376 = vadd.f32 %v71, %v328
  %v377 = vadd.f32 %v72, %v330
  %v378 = vadd.f32 %v73, %v332
  %v379 = vadd.f32 %v74, %v334
  %v380 = vadd.f32 %v75, %v338
  %v381 = vadd.f32 %v76, %v340
  %v382 = vadd.f32 %v77, %v342
  %v383 = vadd.f32 %v78, %v344
  %v384 = vadd.f32 %v79, %v348
  %v385 = vadd.f32 %v80, %v350
  %v386 = vadd.f32 %v81, %v352
  %v387 = vadd.f32 %v82, %v354
  %388 = vst [vmem:[#allocation2] sm:$0xff] %v356
  %389 = vst [vmem:[#allocation2 + $0x8] sm:$0xff] %v357
  %390 = vst [vmem:[#allocation2 + $0x10] sm:$0xff] %v358
  %391 = vst [vmem:[#allocation2 + $0x18] sm:$0xff] %v359
  %392 = vst [vmem:[#allocation2 + $0x20] sm:$0xff] %v360
  %393 = vst [vmem:[#allocation2 + $0x28] sm:$0xff] %v361
  %394 = vst [vmem:[#allocation2 + $0x30] sm:$0xff] %v362
  %395 = vst [vmem:[#allocation2 + $0x38] sm:$0xff] %v363
  %396 = vst [vmem:[#allocation2 + $0x40] sm:$0xff] %v364
  %397 = vst [vmem:[#allocation2 + $0x48] sm:$0xff] %v365
  %398 = vst [vmem:[#allocation2 + $0x50] sm:$0xff] %v366
  %399 = vst [vmem:[#allocation2 + $0x58] sm:$0xff] %v367
  %400 = vst [vmem:[#allocation2 + $0x60] sm:$0xff] %v368
  %401 = vst [vmem:[#allocation2 + $0x68] sm:$0xff] %v369
  %402 = vst [vmem:[#allocation2 + $0x70] sm:$0xff] %v370
  %403 = vst [vmem:[#allocation2 + $0x78] sm:$0xff] %v371
  %404 = vst [vmem:[#allocation2 + $0x80] sm:$0xff] %v372
  %405 = vst [vmem:[#allocation2 + $0x88] sm:$0xff] %v373
  %406 = vst [vmem:[#allocation2 + $0x90] sm:$0xff] %v374
  %407 = vst [vmem:[#allocation2 + $0x98] sm:$0xff] %v375
  %408 = vst [vmem:[#allocation2 + $0xa0] sm:$0xff] %v376
  %409 = vst [vmem:[#allocation2 + $0xa8] sm:$0xff] %v377
  %410 = vst [vmem:[#allocation2 + $0xb0] sm:$0xff] %v378
  %411 = vst [vmem:[#allocation2 + $0xb8] sm:$0xff] %v379
  %412 = vst [vmem:[#allocation2 + $0xc0] sm:$0xff] %v380
  %413 = vst [vmem:[#allocation2 + $0xc8] sm:$0xff] %v381
  %414 = vst [vmem:[#allocation2 + $0xd0] sm:$0xff] %v382
  %415 = vst [vmem:[#allocation2 + $0xd8] sm:$0xff] %v383
  %416 = vst [vmem:[#allocation2 + $0xe0] sm:$0xff] %v384
  %417 = vst [vmem:[#allocation2 + $0xe8] sm:$0xff] %v385
  %418 = vst [vmem:[#allocation2 + $0xf0] sm:$0xff] %v386
  %419 = vst [vmem:[#allocation2 + $0xf8] sm:$0xff] %v387
  // Predicated region
  $region18: #{rnn_forward.5} parent=0 // pred_check
    %p420 = pneg %p15
  $region19: #{rnn_forward.5} parent=0 // pred_check_branch
    %422 = sbr.rel (%p420) target = $region21
  $region20: #{rnn_forward.5} parent=0 // pred_region
    %v423 = vld [vmem:[#allocation2] sm:$0xff]
    %v424 = vld [vmem:[#allocation2 + $0x8] sm:$0xff]
    %v425 = vld [vmem:[#allocation2 + $0x10] sm:$0xff]
    %v426 = vld [vmem:[#allocation2 + $0x18] sm:$0xff]
    %v427 = vld [vmem:[#allocation2 + $0x20] sm:$0xff]
    %v428 = vld [vmem:[#allocation2 + $0x28] sm:$0xff]
    %v429 = vld [vmem:[#allocation2 + $0x30] sm:$0xff]
    %v430 = vld [vmem:[#allocation2 + $0x38] sm:$0xff]
    %v431 = vld [vmem:[#allocation2 + $0x40] sm:$0xff]
    %v432 = vld [vmem:[#allocation2 + $0x48] sm:$0xff]
    %v433 = vld [vmem:[#allocation2 + $0x50] sm:$0xff]
    %v434 = vld [vmem:[#allocation2 + $0x58] sm:$0xff]
    %v435 = vld [vmem:[#allocation2 + $0x60] sm:$0xff]
    %v436 = vld [vmem:[#allocation2 + $0x68] sm:$0xff]
    %v437 = vld [vmem:[#allocation2 + $0x70] sm:$0xff]
    %v438 = vld [vmem:[#allocation2 + $0x78] sm:$0xff]
    %v439 = vld [vmem:[#allocation2 + $0x80] sm:$0xff]
    %v440 = vld [vmem:[#allocation2 + $0x88] sm:$0xff]
    %v441 = vld [vmem:[#allocation2 + $0x90] sm:$0xff]
    %v442 = vld [vmem:[#allocation2 + $0x98] sm:$0xff]
    %v443 = vld [vmem:[#allocation2 + $0xa0] sm:$0xff]
    %v444 = vld [vmem:[#allocation2 + $0xa8] sm:$0xff]
    %v445 = vld [vmem:[#allocation2 + $0xb0] sm:$0xff]
    %v446 = vld [vmem:[#allocation2 + $0xb8] sm:$0xff]
    %v447 = vld [vmem:[#allocation2 + $0xc0] sm:$0xff]
    %v448 = vld [vmem:[#allocation2 + $0xc8] sm:$0xff]
    %v449 = vld [vmem:[#allocation2 + $0xd0] sm:$0xff]
    %v450 = vld [vmem:[#allocation2 + $0xd8] sm:$0xff]
    %v451 = vld [vmem:[#allocation2 + $0xe0] sm:$0xff]
    %v452 = vld [vmem:[#allocation2 + $0xe8] sm:$0xff]
    %v453 = vld [vmem:[#allocation2 + $0xf0] sm:$0xff]
    %v454 = vld [vmem:[#allocation2 + $0xf8] sm:$0xff]
    %v455 = vld [vmem:[%s2] sm:$0x3]
    %v457 = vlaneseq
    %v458 = vshrl.u32 %v457, 7
    %v459 = vsub.s32 0, %v458
    %v460 = vrot.slane %v455, %v459
    %v461 = vlaneseq
    %v462 = vshrl.u32 %v461, 7
    %v463 = vsub.s32 1, %v462
    %v464 = vrot.slane %v455, %v463
    %v467 = vadd.f32 %v423, %v460
    %v468 = vadd.f32 %v424, %v464
    %v469 = vadd.f32 %v425, %v460
    %v470 = vadd.f32 %v426, %v464
    %v471 = vadd.f32 %v427, %v460
    %v472 = vadd.f32 %v428, %v464
    %v473 = vadd.f32 %v429, %v460
    %v474 = vadd.f32 %v430, %v464
    %v475 = vadd.f32 %v431, %v460
    %v476 = vadd.f32 %v432, %v464
    %v477 = vadd.f32 %v433, %v460
    %v478 = vadd.f32 %v434, %v464
    %v479 = vadd.f32 %v435, %v460
    %v480 = vadd.f32 %v436, %v464
    %v481 = vadd.f32 %v437, %v460
    %v482 = vadd.f32 %v438, %v464
    %v483 = vadd.f32 %v439, %v460
    %v484 = vadd.f32 %v440, %v464
    %v485 = vadd.f32 %v441, %v460
    %v486 = vadd.f32 %v442, %v464
    %v487 = vadd.f32 %v443, %v460
    %v488 = vadd.f32 %v444, %v464
    %v489 = vadd.f32 %v445, %v460
    %v490 = vadd.f32 %v446, %v464
    %v491 = vadd.f32 %v447, %v460
    %v492 = vadd.f32 %v448, %v464
    %v493 = vadd.f32 %v449, %v460
    %v494 = vadd.f32 %v450, %v464
    %v495 = vadd.f32 %v451, %v460
    %v496 = vadd.f32 %v452, %v464
    %v497 = vadd.f32 %v453, %v460
    %v498 = vadd.f32 %v454, %v464
    %499 = vst [vmem:[%s3] sm:$0xff] %v467
    %500 = vst [vmem:[%s3 + $0x8] sm:$0xff] %v468
    %501 = vst [vmem:[%s3 + $0x10] sm:$0xff] %v469
    %502 = vst [vmem:[%s3 + $0x18] sm:$0xff] %v470
    %503 = vst [vmem:[%s3 + $0x20] sm:$0xff] %v471
    %504 = vst [vmem:[%s3 + $0x28] sm:$0xff] %v472
    %505 = vst [vmem:[%s3 + $0x30] sm:$0xff] %v473
    %506 = vst [vmem:[%s3 + $0x38] sm:$0xff] %v474
    %507 = vst [vmem:[%s3 + $0x40] sm:$0xff] %v475
    %508 = vst [vmem:[%s3 + $0x48] sm:$0xff] %v476
    %509 = vst [vmem:[%s3 + $0x50] sm:$0xff] %v477
    %510 = vst [vmem:[%s3 + $0x58] sm:$0xff] %v478
    %511 = vst [vmem:[%s3 + $0x60] sm:$0xff] %v479
    %512 = vst [vmem:[%s3 + $0x68] sm:$0xff] %v480
    %513 = vst [vmem:[%s3 + $0x70] sm:$0xff] %v481
    %514 = vst [vmem:[%s3 + $0x78] sm:$0xff] %v482
    %515 = vst [vmem:[%s3 + $0x80] sm:$0xff] %v483
    %516 = vst [vmem:[%s3 + $0x88] sm:$0xff] %v484
    %517 = vst [vmem:[%s3 + $0x90] sm:$0xff] %v485
    %518 = vst [vmem:[%s3 + $0x98] sm:$0xff] %v486
    %519 = vst [vmem:[%s3 + $0xa0] sm:$0xff] %v487
    %520 = vst [vmem:[%s3 + $0xa8] sm:$0xff] %v488
    %521 = vst [vmem:[%s3 + $0xb0] sm:$0xff] %v489
    %522 = vst [vmem:[%s3 + $0xb8] sm:$0xff] %v490
    %523 = vst [vmem:[%s3 + $0xc0] sm:$0xff] %v491
    %524 = vst [vmem:[%s3 + $0xc8] sm:$0xff] %v492
    %525 = vst [vmem:[%s3 + $0xd0] sm:$0xff] %v493
    %526 = vst [vmem:[%s3 + $0xd8] sm:$0xff] %v494
    %527 = vst [vmem:[%s3 + $0xe0] sm:$0xff] %v495
    %528 = vst [vmem:[%s3 + $0xe8] sm:$0xff] %v496
    %529 = vst [vmem:[%s3 + $0xf0] sm:$0xff] %v497
    %530 = vst [vmem:[%s3 + $0xf8] sm:$0xff] %v498
  $region21: #{rnn_forward.5} parent=0 // pred_fallthru
    _
  // Predicated region
  $region22: #{rnn_forward.5} parent=0 // pred_check
    _
  $region23: #{rnn_forward.5} parent=0 // pred_check_branch
    %532 = sbr.rel (0) target = $region25
  $region24: #{rnn_forward.5} parent=0 // pred_region
    _
  $region25: #{rnn_forward.5} parent=0 // pred_fallthru
    _
  // Predicated region
  $region26: #{rnn_forward.5} parent=0 // pred_check
    _
  $region27: #{rnn_forward.5} parent=0 // pred_check_branch
    %534 = sbr.rel (0) target = $region29
  $region28: #{rnn_forward.5} parent=0 // pred_region
    _
  $region29: #{rnn_forward.5} parent=0 // pred_fallthru
    _

// kernel: rnn_forward.4
$region0: #{rnn_forward.4}
  #allocation0 [shape = 'u32[]', space=smem, size = 0x4, offset = 0x4, fixed_abs, tag = 'smem constant byte address 0x4 - core index']
  #allocation1 [shape = 'u32[144,128]{1,0:T(1,128)}', space=vmem, size = 0x12000, scoped, tag = 'internal scratch']
  #allocation2 [shape = 'f32[16,128]{1,0:T(8,128)}', space=vmem, size = 0x2000, scoped, tag = 'scratch operand']
  %s0 = inlined_call_operand.vmem [shape: bf16[8,16,128], index: 0, kind: input, shape index: {}]
  %s1 = inlined_call_operand.vmem [shape: bf16[128,128], index: 1, kind: input, shape index: {}]
  %s2 = inlined_call_operand.vmem [shape: bf16[16,8,128], index: 2, kind: output, shape index: {}]
  %s3 = sld [smem:[#allocation0]]
  $region22: #{rnn_forward.4} parent=0
    _
  %s5 = ssub.s32 1, %s3
  %s6 = scalar_select 0, %s5, %s3
  // Predicated region
  $region2: #{rnn_forward.4} parent=0 // pred_check
    _
  $region3: #{rnn_forward.4} parent=0 // pred_check_branch
    %8 = sbr.rel (0) target = $region5
  $region4: #{rnn_forward.4} parent=0 // pred_region
    _
  $region5: #{rnn_forward.4} parent=0 // pred_fallthru
    _
  // Predicated region
  $region6: #{rnn_forward.4} parent=0 // pred_check
    _
  $region7: #{rnn_forward.4} parent=0 // pred_check_branch
    %10 = sbr.rel (0) target = $region9
  $region8: #{rnn_forward.4} parent=0 // pred_region
    _
  $region9: #{rnn_forward.4} parent=0 // pred_fallthru
    _
  %p12 = scmp.eq.s32.totalorder 0, 0
  // Predicated region
  $region10: #{rnn_forward.4} parent=0 // pred_check
    %p13 = pneg %p12
  $region11: #{rnn_forward.4} parent=0 // pred_check_branch
    %15 = sbr.rel (%p13) target = $region13
  $region12: #{rnn_forward.4} parent=0 // pred_region
    %16 = vst [vmem:[#allocation2] sm:$0xff] 0.0
    %17 = vst [vmem:[#allocation2 + $0x8] sm:$0xff] 0.0
  $region13: #{rnn_forward.4} parent=0 // pred_fallthru
    _
  %v18 = vld [vmem:[%s1] sm:$0xf]
  %v19 = vld [vmem:[%s1 + $0x4] sm:$0xf]
  %v20 = vld [vmem:[%s1 + $0x8] sm:$0xf]
  %v21 = vld [vmem:[%s1 + $0xc] sm:$0xf]
  %v22 = vld [vmem:[%s1 + $0x10] sm:$0xf]
  %v23 = vld [vmem:[%s1 + $0x14] sm:$0xf]
  %v24 = vld [vmem:[%s1 + $0x18] sm:$0xf]
  %v25 = vld [vmem:[%s1 + $0x1c] sm:$0xf]
  %v26 = vld [vmem:[%s1 + $0x20] sm:$0xf]
  %v27 = vld [vmem:[%s1 + $0x24] sm:$0xf]
  %v28 = vld [vmem:[%s1 + $0x28] sm:$0xf]
  %v29 = vld [vmem:[%s1 + $0x2c] sm:$0xf]
  %v30 = vld [vmem:[%s1 + $0x30] sm:$0xf]
  %v31 = vld [vmem:[%s1 + $0x34] sm:$0xf]
  %v32 = vld [vmem:[%s1 + $0x38] sm:$0xf]
  %v33 = vld [vmem:[%s1 + $0x3c] sm:$0xf]
  %v34 = vld [vmem:[#allocation2] sm:$0xff]
  %v35 = vld [vmem:[#allocation2 + $0x8] sm:$0xff]
  %v36 = vpack.c.bf16 %v35, %v34
  %v53 = vunpack.c.l.b16 %v18
  %v54 = vunpack.c.l.b16 %v19
  %v55 = vunpack.c.l.b16 %v20
  %v56 = vunpack.c.l.b16 %v21
  %v57 = vunpack.c.l.b16 %v22
  %v58 = vunpack.c.l.b16 %v23
  %v59 = vunpack.c.l.b16 %v24
  %v60 = vunpack.c.l.b16 %v25
  %v61 = vunpack.c.l.b16 %v26
  %v62 = vunpack.c.l.b16 %v27
  %v63 = vunpack.c.l.b16 %v28
  %v64 = vunpack.c.l.b16 %v29
  %v65 = vunpack.c.l.b16 %v30
  %v66 = vunpack.c.l.b16 %v31
  %v67 = vunpack.c.l.b16 %v32
  %v68 = vunpack.c.l.b16 %v33
  %v69 = vpack.c.b16 %v54, %v53
  %v70 = vpack.c.b16 %v56, %v55
  %v71 = vpack.c.b16 %v58, %v57
  %v72 = vpack.c.b16 %v60, %v59
  %v73 = vpack.c.b16 %v62, %v61
  %v74 = vpack.c.b16 %v64, %v63
  %v75 = vpack.c.b16 %v66, %v65
  %v76 = vpack.c.b16 %v68, %v67
  %85 = vmatprep.subr.bf16.mxu0 0
  %86 = vmatpush1.bf16.msra.mxu0 %v69
  %87 = vmatprep.subr.bf16.mxu0 0
  %88 = vmatpush1.bf16.msra.mxu0 %v70
  %89 = vmatprep.subr.bf16.mxu0 0
  %90 = vmatpush1.bf16.msra.mxu0 %v71
  %91 = vmatprep.subr.bf16.mxu0 0
  %92 = vmatpush1.bf16.msra.mxu0 %v72
  %93 = vmatprep.subr.bf16.mxu0 0
  %94 = vmatpush1.bf16.msra.mxu0 %v73
  %95 = vmatprep.subr.bf16.mxu0 0
  %96 = vmatpush1.bf16.msra.mxu0 %v74
  %97 = vmatprep.subr.bf16.mxu0 0
  %98 = vmatpush1.bf16.msra.mxu0 %v75
  %99 = vmatprep.subr.bf16.mxu0 0
  %100 = vmatpush1.bf16.msra.mxu0 %v76
  %101 = vmatprep.subr.bf16.mxu0 0
  %102 = vmatpush1.bf16.msra.mxu0 0
  %103 = vmatprep.subr.bf16.mxu0 0
  %104 = vmatpush1.bf16.msra.mxu0 0
  %105 = vmatprep.subr.bf16.mxu0 0
  %106 = vmatpush1.bf16.msra.mxu0 0
  %107 = vmatprep.subr.bf16.mxu0 0
  %108 = vmatpush1.bf16.msra.mxu0 0
  %109 = vmatprep.subr.bf16.mxu0 0
  %110 = vmatpush1.bf16.msra.mxu0 0
  %111 = vmatprep.subr.bf16.mxu0 0
  %112 = vmatpush1.bf16.msra.mxu0 0
  %113 = vmatprep.subr.bf16.mxu0 0
  %114 = vmatpush1.bf16.msra.mxu0 0
  %115 = vmatprep.subr.bf16.mxu0 0
  %116 = vmatpush1.bf16.msra.mxu0 0
  %117 = vmatprep.mubr.bf16.mxu0 0
  %118 = vmatmul.mubr.bf16.gmra.mrb[0].mxu0 %v36
  %v119 = vpop.f32.mrb[0].mxu0
  %v120 = vadd.f32 0.0, %v119
  %v121 = vpop.f32.mrb[0].mxu0
  %v122 = vpop.f32.mrb[0].mxu0
  %v123 = vadd.f32 0.0, %v122
  %v124 = vpop.f32.mrb[0].mxu0
  %125 = vdwg.mxu0
  %v126 = vld [vmem:[%s0] sm:$0xf]
  %v127 = vld [vmem:[%s0 + $0x4] sm:$0xf]
  %v128 = vunpack.c.l.bf16 %v126
  %v129 = vunpack.c.l.bf16 %v127
  %v130 = vadd.f32 %v128, %v120
  %v131 = vadd.f32 %v129, %v123
  %v132 = vtanh.pop %v130
  %v133 = vtanh.pop %v131
  %134 = vst [vmem:[#allocation2] sm:$0xff] %v132
  %135 = vst [vmem:[#allocation2 + $0x8] sm:$0xff] %v133
  %v136 = vpack.c.bf16 %v133, %v132
  %v138 = vcombine.high %v136, %v136
  %v140 = vunpack.c.l.s4 1966171168
  %v141 = vunpack.c.0.s8 %v140
  %v142 = vlaneseq
  %v143 = vshrl.u32 %v142, 7
  %v144 = vsub.s32 %v141, %v143
  %v145 = vrot.slane %v136, %v144
  %v147 = vunpack.c.l.s4 1966171168
  %v148 = vunpack.c.0.s8 %v147
  %v149 = vlaneseq
  %v150 = vshrl.u32 %v149, 7
  %v151 = vsub.s32 %v148, %v150
  %v152 = vrot.slane %v138, %v151
  %v153 = vcombine.high %v145, %v145
  %v154 = vcombine.high %v152, %v152
  %v156 = vunpack.c.l.s4 1966171168
  %v157 = vunpack.c.0.s8 %v156
  %v158 = vlaneseq
  %v159 = vshrl.u32 %v158, 7
  %v160 = vsub.s32 %v157, %v159
  %v161 = vrot.slane %v145, %v160
  %v163 = vunpack.c.l.s4 1966171168
  %v164 = vunpack.c.0.s8 %v163
  %v165 = vlaneseq
  %v166 = vshrl.u32 %v165, 7
  %v167 = vsub.s32 %v164, %v166
  %v168 = vrot.slane %v152, %v167
  %v170 = vunpack.c.l.s4 1966171168
  %v171 = vunpack.c.0.s8 %v170
  %v172 = vlaneseq
  %v173 = vshrl.u32 %v172, 7
  %v174 = vsub.s32 %v171, %v173
  %v175 = vrot.slane %v153, %v174
  %v177 = vunpack.c.l.s4 1966171168
  %v178 = vunpack.c.0.s8 %v177
  %v179 = vlaneseq
  %v180 = vshrl.u32 %v179, 7
  %v181 = vsub.s32 %v178, %v180
  %v182 = vrot.slane %v154, %v181
  %v183 = vcombine.high %v161, %v161
  %v184 = vcombine.high %v168, %v168
  %v185 = vcombine.high %v175, %v175
  %v186 = vcombine.high %v182, %v182
  %v187 = vunpack.i.l.s16 %v161
  %v188 = vunpack.i.h.s16 %v161
  %v189 = vunpack.i.l.s16 %v175
  %v190 = vunpack.i.h.s16 %v175
  %v191 = vunpack.i.l.s16 %v183
  %v192 = vunpack.i.h.s16 %v183
  %v193 = vunpack.i.l.s16 %v185
  %v194 = vunpack.i.h.s16 %v185
  %v195 = vunpack.i.l.s16 %v168
  %v196 = vunpack.i.h.s16 %v168
  %v197 = vunpack.i.l.s16 %v182
  %v198 = vunpack.i.h.s16 %v182
  %v199 = vunpack.i.l.s16 %v184
  %v200 = vunpack.i.h.s16 %v184
  %v201 = vunpack.i.l.s16 %v186
  %v202 = vunpack.i.h.s16 %v186
  %v203 = vpack.i.b16 %v187, %v187
  %v204 = vpack.i.b16 %v188, %v188
  %v205 = vpack.i.b16 %v189, %v189
  %v206 = vpack.i.b16 %v190, %v190
  %v207 = vpack.i.b16 %v191, %v191
  %v208 = vpack.i.b16 %v192, %v192
  %v209 = vpack.i.b16 %v193, %v193
  %v210 = vpack.i.b16 %v194, %v194
  %v211 = vpack.i.b16 %v195, %v195
  %v212 = vpack.i.b16 %v196, %v196
  %v213 = vpack.i.b16 %v197, %v197
  %v214 = vpack.i.b16 %v198, %v198
  %v215 = vpack.i.b16 %v199, %v199
  %v216 = vpack.i.b16 %v200, %v200
  %v217 = vpack.i.b16 %v201, %v201
  %v218 = vpack.i.b16 %v202, %v202
  %v220 = vunpack.c.l.s4 286326784
  %v221 = vunpack.c.0.s8 %v220
  %v222 = vlaneseq
  %v223 = vshrl.u32 %v222, 7
  %v224 = vsub.s32 %v221, %v223
  %v225 = vrot.slane %v203, %v224
  %v227 = vunpack.c.l.s4 286326784
  %v228 = vunpack.c.0.s8 %v227
  %v229 = vlaneseq
  %v230 = vshrl.u32 %v229, 7
  %v231 = vsub.s32 %v228, %v230
  %v232 = vrot.slane %v204, %v231
  %v234 = vunpack.c.l.s4 286326784
  %v235 = vunpack.c.0.s8 %v234
  %v236 = vlaneseq
  %v237 = vshrl.u32 %v236, 7
  %v238 = vsub.s32 %v235, %v237
  %v239 = vrot.slane %v205, %v238
  %v241 = vunpack.c.l.s4 286326784
  %v242 = vunpack.c.0.s8 %v241
  %v243 = vlaneseq
  %v244 = vshrl.u32 %v243, 7
  %v245 = vsub.s32 %v242, %v244
  %v246 = vrot.slane %v206, %v245
  %v248 = vunpack.c.l.s4 286326784
  %v249 = vunpack.c.0.s8 %v248
  %v250 = vlaneseq
  %v251 = vshrl.u32 %v250, 7
  %v252 = vsub.s32 %v249, %v251
  %v253 = vrot.slane %v207, %v252
  %v255 = vunpack.c.l.s4 286326784
  %v256 = vunpack.c.0.s8 %v255
  %v257 = vlaneseq
  %v258 = vshrl.u32 %v257, 7
  %v259 = vsub.s32 %v256, %v258
  %v260 = vrot.slane %v208, %v259
  %v262 = vunpack.c.l.s4 286326784
  %v263 = vunpack.c.0.s8 %v262
  %v264 = vlaneseq
  %v265 = vshrl.u32 %v264, 7
  %v266 = vsub.s32 %v263, %v265
  %v267 = vrot.slane %v209, %v266
  %v269 = vunpack.c.l.s4 286326784
  %v270 = vunpack.c.0.s8 %v269
  %v271 = vlaneseq
  %v272 = vshrl.u32 %v271, 7
  %v273 = vsub.s32 %v270, %v272
  %v274 = vrot.slane %v210, %v273
  %v276 = vunpack.c.l.s4 286326784
  %v277 = vunpack.c.0.s8 %v276
  %v278 = vlaneseq
  %v279 = vshrl.u32 %v278, 7
  %v280 = vsub.s32 %v277, %v279
  %v281 = vrot.slane %v211, %v280
  %v283 = vunpack.c.l.s4 286326784
  %v284 = vunpack.c.0.s8 %v283
  %v285 = vlaneseq
  %v286 = vshrl.u32 %v285, 7
  %v287 = vsub.s32 %v284, %v286
  %v288 = vrot.slane %v212, %v287
  %v290 = vunpack.c.l.s4 286326784
  %v291 = vunpack.c.0.s8 %v290
  %v292 = vlaneseq
  %v293 = vshrl.u32 %v292, 7
  %v294 = vsub.s32 %v291, %v293
  %v295 = vrot.slane %v213, %v294
  %v297 = vunpack.c.l.s4 286326784
  %v298 = vunpack.c.0.s8 %v297
  %v299 = vlaneseq
  %v300 = vshrl.u32 %v299, 7
  %v301 = vsub.s32 %v298, %v300
  %v302 = vrot.slane %v214, %v301
  %v304 = vunpack.c.l.s4 286326784
  %v305 = vunpack.c.0.s8 %v304
  %v306 = vlaneseq
  %v307 = vshrl.u32 %v306, 7
  %v308 = vsub.s32 %v305, %v307
  %v309 = vrot.slane %v215, %v308
  %v311 = vunpack.c.l.s4 286326784
  %v312 = vunpack.c.0.s8 %v311
  %v313 = vlaneseq
  %v314 = vshrl.u32 %v313, 7
  %v315 = vsub.s32 %v312, %v314
  %v316 = vrot.slane %v216, %v315
  %v318 = vunpack.c.l.s4 286326784
  %v319 = vunpack.c.0.s8 %v318
  %v320 = vlaneseq
  %v321 = vshrl.u32 %v320, 7
  %v322 = vsub.s32 %v319, %v321
  %v323 = vrot.slane %v217, %v322
  %v325 = vunpack.c.l.s4 286326784
  %v326 = vunpack.c.0.s8 %v325
  %v327 = vlaneseq
  %v328 = vshrl.u32 %v327, 7
  %v329 = vsub.s32 %v326, %v328
  %v330 = vrot.slane %v218, %v329
  %vm347 = vcmask 1040384
  %vm348 = vsmask.f32 256
  %vm349 = vmand %vm347, %vm348
  %v350 = vld [vmem:[%s2] sm:$0x1]
  %v351 = vsel %vm349, %v225, %v350
  %352 = vst [vmem:[%s2] sm:$0x1] %v351
  %v353 = vld [vmem:[%s2 + $0x4] sm:$0x1]
  %v354 = vsel %vm349, %v232, %v353
  %355 = vst [vmem:[%s2 + $0x4] sm:$0x1] %v354
  %v356 = vld [vmem:[%s2 + $0x8] sm:$0x1]
  %v357 = vsel %vm349, %v239, %v356
  %358 = vst [vmem:[%s2 + $0x8] sm:$0x1] %v357
  %v359 = vld [vmem:[%s2 + $0xc] sm:$0x1]
  %v360 = vsel %vm349, %v246, %v359
  %361 = vst [vmem:[%s2 + $0xc] sm:$0x1] %v360
  %v362 = vld [vmem:[%s2 + $0x10] sm:$0x1]
  %v363 = vsel %vm349, %v253, %v362
  %364 = vst [vmem:[%s2 + $0x10] sm:$0x1] %v363
  %v365 = vld [vmem:[%s2 + $0x14] sm:$0x1]
  %v366 = vsel %vm349, %v260, %v365
  %367 = vst [vmem:[%s2 + $0x14] sm:$0x1] %v366
  %v368 = vld [vmem:[%s2 + $0x18] sm:$0x1]
  %v369 = vsel %vm349, %v267, %v368
  %370 = vst [vmem:[%s2 + $0x18] sm:$0x1] %v369
  %v371 = vld [vmem:[%s2 + $0x1c] sm:$0x1]
  %v372 = vsel %vm349, %v274, %v371
  %373 = vst [vmem:[%s2 + $0x1c] sm:$0x1] %v372
  %v374 = vld [vmem:[%s2 + $0x20] sm:$0x1]
  %v375 = vsel %vm349, %v281, %v374
  %376 = vst [vmem:[%s2 + $0x20] sm:$0x1] %v375
  %v377 = vld [vmem:[%s2 + $0x24] sm:$0x1]
  %v378 = vsel %vm349, %v288, %v377
  %379 = vst [vmem:[%s2 + $0x24] sm:$0x1] %v378
  %v380 = vld [vmem:[%s2 + $0x28] sm:$0x1]
  %v381 = vsel %vm349, %v295, %v380
  %382 = vst [vmem:[%s2 + $0x28] sm:$0x1] %v381
  %v383 = vld [vmem:[%s2 + $0x2c] sm:$0x1]
  %v384 = vsel %vm349, %v302, %v383
  %385 = vst [vmem:[%s2 + $0x2c] sm:$0x1] %v384
  %v386 = vld [vmem:[%s2 + $0x30] sm:$0x1]
  %v387 = vsel %vm349, %v309, %v386
  %388 = vst [vmem:[%s2 + $0x30] sm:$0x1] %v387
  %v389 = vld [vmem:[%s2 + $0x34] sm:$0x1]
  %v390 = vsel %vm349, %v316, %v389
  %391 = vst [vmem:[%s2 + $0x34] sm:$0x1] %v390
  %v392 = vld [vmem:[%s2 + $0x38] sm:$0x1]
  %v393 = vsel %vm349, %v323, %v392
  %394 = vst [vmem:[%s2 + $0x38] sm:$0x1] %v393
  %v395 = vld [vmem:[%s2 + $0x3c] sm:$0x1]
  %v396 = vsel %vm349, %v330, %v395
  %397 = vst [vmem:[%s2 + $0x3c] sm:$0x1] %v396
  %v398 = vld [vmem:[#allocation2] sm:$0xff]
  %v399 = vld [vmem:[#allocation2 + $0x8] sm:$0xff]
  %v400 = vpack.c.bf16 %v399, %v398
  %401 = vmatprep.subr.bf16.mxu0 0
  %402 = vmatpush1.bf16.msra.mxu0 %v69
  %403 = vmatprep.subr.bf16.mxu0 0
  %404 = vmatpush1.bf16.msra.mxu0 %v70
  %405 = vmatprep.subr.bf16.mxu0 0
  %406 = vmatpush1.bf16.msra.mxu0 %v71
  %407 = vmatprep.subr.bf16.mxu0 0
  %408 = vmatpush1.bf16.msra.mxu0 %v72
  %409 = vmatprep.subr.bf16.mxu0 0
  %410 = vmatpush1.bf16.msra.mxu0 %v73
  %411 = vmatprep.subr.bf16.mxu0 0
  %412 = vmatpush1.bf16.msra.mxu0 %v74
  %413 = vmatprep.subr.bf16.mxu0 0
  %414 = vmatpush1.bf16.msra.mxu0 %v75
  %415 = vmatprep.subr.bf16.mxu0 0
  %416 = vmatpush1.bf16.msra.mxu0 %v76
  %417 = vmatprep.subr.bf16.mxu0 0
  %418 = vmatpush1.bf16.msra.mxu0 0
  %419 = vmatprep.subr.bf16.mxu0 0
  %420 = vmatpush1.bf16.msra.mxu0 0
  %421 = vmatprep.subr.bf16.mxu0 0
  %422 = vmatpush1.bf16.msra.mxu0 0
  %423 = vmatprep.subr.bf16.mxu0 0
  %424 = vmatpush1.bf16.msra.mxu0 0
  %425 = vmatprep.subr.bf16.mxu0 0
  %426 = vmatpush1.bf16.msra.mxu0 0
  %427 = vmatprep.subr.bf16.mxu0 0
  %428 = vmatpush1.bf16.msra.mxu0 0
  %429 = vmatprep.subr.bf16.mxu0 0
  %430 = vmatpush1.bf16.msra.mxu0 0
  %431 = vmatprep.subr.bf16.mxu0 0
  %432 = vmatpush1.bf16.msra.mxu0 0
  %433 = vmatprep.mubr.bf16.mxu0 0
  %434 = vmatmul.mubr.bf16.gmra.mrb[0].mxu0 %v400
  %v435 = vpop.f32.mrb[0].mxu0
  %v436 = vadd.f32 0.0, %v435
  %v437 = vpop.f32.mrb[0].mxu0
  %v438 = vpop.f32.mrb[0].mxu0
  %v439 = vadd.f32 0.0, %v438
  %v440 = vpop.f32.mrb[0].mxu0
  %441 = vdwg.mxu0
  %s442 = scalar_lea.vmem %s0, 8
  %v443 = vld [vmem:[%s442] sm:$0xf]
  %v444 = vld [vmem:[%s442 + $0x4] sm:$0xf]
  %v445 = vunpack.c.l.bf16 %v443
  %v446 = vunpack.c.l.bf16 %v444
  %v447 = vadd.f32 %v445, %v436
  %v448 = vadd.f32 %v446, %v439
  %v449 = vtanh.pop %v447
  %v450 = vtanh.pop %v448
  %451 = vst [vmem:[#allocation2] sm:$0xff] %v449
  %452 = vst [vmem:[#allocation2 + $0x8] sm:$0xff] %v450
  %v453 = vpack.c.bf16 %v450, %v449
  %v455 = vcombine.high %v453, %v453
  %v457 = vunpack.c.l.s4 1966171168
  %v458 = vunpack.c.0.s8 %v457
  %v459 = vlaneseq
  %v460 = vshrl.u32 %v459, 7
  %v461 = vsub.s32 %v458, %v460
  %v462 = vrot.slane %v453, %v461
  %v464 = vunpack.c.l.s4 1966171168
  %v465 = vunpack.c.0.s8 %v464
  %v466 = vlaneseq
  %v467 = vshrl.u32 %v466, 7
  %v468 = vsub.s32 %v465, %v467
  %v469 = vrot.slane %v455, %v468
  %v470 = vcombine.high %v462, %v462
  %v471 = vcombine.high %v469, %v469
  %v473 = vunpack.c.l.s4 1966171168
  %v474 = vunpack.c.0.s8 %v473
  %v475 = vlaneseq
  %v476 = vshrl.u32 %v475, 7
  %v477 = vsub.s32 %v474, %v476
  %v478 = vrot.slane %v462, %v477
  %v480 = vunpack.c.l.s4 1966171168
  %v481 = vunpack.c.0.s8 %v480
  %v482 = vlaneseq
  %v483 = vshrl.u32 %v482, 7
  %v484 = vsub.s32 %v481, %v483
  %v485 = vrot.slane %v469, %v484
  %v487 = vunpack.c.l.s4 1966171168
  %v488 = vunpack.c.0.s8 %v487
  %v489 = vlaneseq
  %v490 = vshrl.u32 %v489, 7
  %v491 = vsub.s32 %v488, %v490
  %v492 = vrot.slane %v470, %v491
  %v494 = vunpack.c.l.s4 1966171168
  %v495 = vunpack.c.0.s8 %v494
  %v496 = vlaneseq
  %v497 = vshrl.u32 %v496, 7
  %v498 = vsub.s32 %v495, %v497
  %v499 = vrot.slane %v471, %v498
  %v500 = vcombine.high %v478, %v478
  %v501 = vcombine.high %v485, %v485
  %v502 = vcombine.high %v492, %v492
  %v503 = vcombine.high %v499, %v499
  %v504 = vunpack.i.l.s16 %v478
  %v505 = vunpack.i.h.s16 %v478
  %v506 = vunpack.i.l.s16 %v492
  %v507 = vunpack.i.h.s16 %v492
  %v508 = vunpack.i.l.s16 %v500
  %v509 = vunpack.i.h.s16 %v500
  %v510 = vunpack.i.l.s16 %v502
  %v511 = vunpack.i.h.s16 %v502
  %v512 = vunpack.i.l.s16 %v485
  %v513 = vunpack.i.h.s16 %v485
  %v514 = vunpack.i.l.s16 %v499
  %v515 = vunpack.i.h.s16 %v499
  %v516 = vunpack.i.l.s16 %v501
  %v517 = vunpack.i.h.s16 %v501
  %v518 = vunpack.i.l.s16 %v503
  %v519 = vunpack.i.h.s16 %v503
  %v520 = vpack.i.b16 %v504, %v504
  %v521 = vpack.i.b16 %v505, %v505
  %v522 = vpack.i.b16 %v506, %v506
  %v523 = vpack.i.b16 %v507, %v507
  %v524 = vpack.i.b16 %v508, %v508
  %v525 = vpack.i.b16 %v509, %v509
  %v526 = vpack.i.b16 %v510, %v510
  %v527 = vpack.i.b16 %v511, %v511
  %v528 = vpack.i.b16 %v512, %v512
  %v529 = vpack.i.b16 %v513, %v513
  %v530 = vpack.i.b16 %v514, %v514
  %v531 = vpack.i.b16 %v515, %v515
  %v532 = vpack.i.b16 %v516, %v516
  %v533 = vpack.i.b16 %v517, %v517
  %v534 = vpack.i.b16 %v518, %v518
  %v535 = vpack.i.b16 %v519, %v519
  %v537 = vunpack.c.l.s4 286326784
  %v538 = vunpack.c.0.s8 %v537
  %v539 = vlaneseq
  %v540 = vshrl.u32 %v539, 7
  %v541 = vsub.s32 %v538, %v540
  %v542 = vrot.slane %v520, %v541
  %v544 = vunpack.c.l.s4 286326784
  %v545 = vunpack.c.0.s8 %v544
  %v546 = vlaneseq
  %v547 = vshrl.u32 %v546, 7
  %v548 = vsub.s32 %v545, %v547
  %v549 = vrot.slane %v521, %v548
  %v551 = vunpack.c.l.s4 286326784
  %v552 = vunpack.c.0.s8 %v551
  %v553 = vlaneseq
  %v554 = vshrl.u32 %v553, 7
  %v555 = vsub.s32 %v552, %v554
  %v556 = vrot.slane %v522, %v555
  %v558 = vunpack.c.l.s4 286326784
  %v559 = vunpack.c.0.s8 %v558
  %v560 = vlaneseq
  %v561 = vshrl.u32 %v560, 7
  %v562 = vsub.s32 %v559, %v561
  %v563 = vrot.slane %v523, %v562
  %v565 = vunpack.c.l.s4 286326784
  %v566 = vunpack.c.0.s8 %v565
  %v567 = vlaneseq
  %v568 = vshrl.u32 %v567, 7
  %v569 = vsub.s32 %v566, %v568
  %v570 = vrot.slane %v524, %v569
  %v572 = vunpack.c.l.s4 286326784
  %v573 = vunpack.c.0.s8 %v572
  %v574 = vlaneseq
  %v575 = vshrl.u32 %v574, 7
  %v576 = vsub.s32 %v573, %v575
  %v577 = vrot.slane %v525, %v576
  %v579 = vunpack.c.l.s4 286326784
  %v580 = vunpack.c.0.s8 %v579
  %v581 = vlaneseq
  %v582 = vshrl.u32 %v581, 7
  %v583 = vsub.s32 %v580, %v582
  %v584 = vrot.slane %v526, %v583
  %v586 = vunpack.c.l.s4 286326784
  %v587 = vunpack.c.0.s8 %v586
  %v588 = vlaneseq
  %v589 = vshrl.u32 %v588, 7
  %v590 = vsub.s32 %v587, %v589
  %v591 = vrot.slane %v527, %v590
  %v593 = vunpack.c.l.s4 286326784
  %v594 = vunpack.c.0.s8 %v593
  %v595 = vlaneseq
  %v596 = vshrl.u32 %v595, 7
  %v597 = vsub.s32 %v594, %v596
  %v598 = vrot.slane %v528, %v597
  %v600 = vunpack.c.l.s4 286326784
  %v601 = vunpack.c.0.s8 %v600
  %v602 = vlaneseq
  %v603 = vshrl.u32 %v602, 7
  %v604 = vsub.s32 %v601, %v603
  %v605 = vrot.slane %v529, %v604
  %v607 = vunpack.c.l.s4 286326784
  %v608 = vunpack.c.0.s8 %v607
  %v609 = vlaneseq
  %v610 = vshrl.u32 %v609, 7
  %v611 = vsub.s32 %v608, %v610
  %v612 = vrot.slane %v530, %v611
  %v614 = vunpack.c.l.s4 286326784
  %v615 = vunpack.c.0.s8 %v614
  %v616 = vlaneseq
  %v617 = vshrl.u32 %v616, 7
  %v618 = vsub.s32 %v615, %v617
  %v619 = vrot.slane %v531, %v618
  %v621 = vunpack.c.l.s4 286326784
  %v622 = vunpack.c.0.s8 %v621
  %v623 = vlaneseq
  %v624 = vshrl.u32 %v623, 7
  %v625 = vsub.s32 %v622, %v624
  %v626 = vrot.slane %v532, %v625
  %v628 = vunpack.c.l.s4 286326784
  %v629 = vunpack.c.0.s8 %v628
  %v630 = vlaneseq
  %v631 = vshrl.u32 %v630, 7
  %v632 = vsub.s32 %v629, %v631
  %v633 = vrot.slane %v533, %v632
  %v635 = vunpack.c.l.s4 286326784
  %v636 = vunpack.c.0.s8 %v635
  %v637 = vlaneseq
  %v638 = vshrl.u32 %v637, 7
  %v639 = vsub.s32 %v636, %v638
  %v640 = vrot.slane %v534, %v639
  %v642 = vunpack.c.l.s4 286326784
  %v643 = vunpack.c.0.s8 %v642
  %v644 = vlaneseq
  %v645 = vshrl.u32 %v644, 7
  %v646 = vsub.s32 %v643, %v645
  %v647 = vrot.slane %v535, %v646
  %vm664 = vsmask.f32 7938
  %vm665 = vmand %vm347, %vm664
  %v666 = vld [vmem:[%s2] sm:$0x1]
  %v667 = vsel %vm665, %v542, %v666
  %668 = vst [vmem:[%s2] sm:$0x1] %v667
  %v669 = vld [vmem:[%s2 + $0x4] sm:$0x1]
  %v670 = vsel %vm665, %v549, %v669
  %671 = vst [vmem:[%s2 + $0x4] sm:$0x1] %v670
  %v672 = vld [vmem:[%s2 + $0x8] sm:$0x1]
  %v673 = vsel %vm665, %v556, %v672
  %674 = vst [vmem:[%s2 + $0x8] sm:$0x1] %v673
  %v675 = vld [vmem:[%s2 + $0xc] sm:$0x1]
  %v676 = vsel %vm665, %v563, %v675
  %677 = vst [vmem:[%s2 + $0xc] sm:$0x1] %v676
  %v678 = vld [vmem:[%s2 + $0x10] sm:$0x1]
  %v679 = vsel %vm665, %v570, %v678
  %680 = vst [vmem:[%s2 + $0x10] sm:$0x1] %v679
  %v681 = vld [vmem:[%s2 + $0x14] sm:$0x1]
  %v682 = vsel %vm665, %v577, %v681
  %683 = vst [vmem:[%s2 + $0x14] sm:$0x1] %v682
  %v684 = vld [vmem:[%s2 + $0x18] sm:$0x1]
  %v685 = vsel %vm665, %v584, %v684
  %686 = vst [vmem:[%s2 + $0x18] sm:$0x1] %v685
  %v687 = vld [vmem:[%s2 + $0x1c] sm:$0x1]
  %v688 = vsel %vm665, %v591, %v687
  %689 = vst [vmem:[%s2 + $0x1c] sm:$0x1] %v688
  %v690 = vld [vmem:[%s2 + $0x20] sm:$0x1]
  %v691 = vsel %vm665, %v598, %v690
  %692 = vst [vmem:[%s2 + $0x20] sm:$0x1] %v691
  %v693 = vld [vmem:[%s2 + $0x24] sm:$0x1]
  %v694 = vsel %vm665, %v605, %v693
  %695 = vst [vmem:[%s2 + $0x24] sm:$0x1] %v694
  %v696 = vld [vmem:[%s2 + $0x28] sm:$0x1]
  %v697 = vsel %vm665, %v612, %v696
  %698 = vst [vmem:[%s2 + $0x28] sm:$0x1] %v697
  %v699 = vld [vmem:[%s2 + $0x2c] sm:$0x1]
  %v700 = vsel %vm665, %v619, %v699
  %701 = vst [vmem:[%s2 + $0x2c] sm:$0x1] %v700
  %v702 = vld [vmem:[%s2 + $0x30] sm:$0x1]
  %v703 = vsel %vm665, %v626, %v702
  %704 = vst [vmem:[%s2 + $0x30] sm:$0x1] %v703
  %v705 = vld [vmem:[%s2 + $0x34] sm:$0x1]
  %v706 = vsel %vm665, %v633, %v705
  %707 = vst [vmem:[%s2 + $0x34] sm:$0x1] %v706
  %v708 = vld [vmem:[%s2 + $0x38] sm:$0x1]
  %v709 = vsel %vm665, %v640, %v708
  %710 = vst [vmem:[%s2 + $0x38] sm:$0x1] %v709
  %v711 = vld [vmem:[%s2 + $0x3c] sm:$0x1]
  %v712 = vsel %vm665, %v647, %v711
  %713 = vst [vmem:[%s2 + $0x3c] sm:$0x1] %v712
  %v714 = vld [vmem:[#allocation2] sm:$0xff]
  %v715 = vld [vmem:[#allocation2 + $0x8] sm:$0xff]
  %v716 = vpack.c.bf16 %v715, %v714
  %717 = vmatprep.subr.bf16.mxu0 0
  %718 = vmatpush1.bf16.msra.mxu0 %v69
  %719 = vmatprep.subr.bf16.mxu0 0
  %720 = vmatpush1.bf16.msra.mxu0 %v70
  %721 = vmatprep.subr.bf16.mxu0 0
  %722 = vmatpush1.bf16.msra.mxu0 %v71
  %723 = vmatprep.subr.bf16.mxu0 0
  %724 = vmatpush1.bf16.msra.mxu0 %v72
  %725 = vmatprep.subr.bf16.mxu0 0
  %726 = vmatpush1.bf16.msra.mxu0 %v73
  %727 = vmatprep.subr.bf16.mxu0 0
  %728 = vmatpush1.bf16.msra.mxu0 %v74
  %729 = vmatprep.subr.bf16.mxu0 0
  %730 = vmatpush1.bf16.msra.mxu0 %v75
  %731 = vmatprep.subr.bf16.mxu0 0
  %732 = vmatpush1.bf16.msra.mxu0 %v76
  %733 = vmatprep.subr.bf16.mxu0 0
  %734 = vmatpush1.bf16.msra.mxu0 0
  %735 = vmatprep.subr.bf16.mxu0 0
  %736 = vmatpush1.bf16.msra.mxu0 0
  %737 = vmatprep.subr.bf16.mxu0 0
  %738 = vmatpush1.bf16.msra.mxu0 0
  %739 = vmatprep.subr.bf16.mxu0 0
  %740 = vmatpush1.bf16.msra.mxu0 0
  %741 = vmatprep.subr.bf16.mxu0 0
  %742 = vmatpush1.bf16.msra.mxu0 0
  %743 = vmatprep.subr.bf16.mxu0 0
  %744 = vmatpush1.bf16.msra.mxu0 0
  %745 = vmatprep.subr.bf16.mxu0 0
  %746 = vmatpush1.bf16.msra.mxu0 0
  %747 = vmatprep.subr.bf16.mxu0 0
  %748 = vmatpush1.bf16.msra.mxu0 0
  %749 = vmatprep.mubr.bf16.mxu0 0
  %750 = vmatmul.mubr.bf16.gmra.mrb[0].mxu0 %v716
  %v751 = vpop.f32.mrb[0].mxu0
  %v752 = vadd.f32 0.0, %v751
  %v753 = vpop.f32.mrb[0].mxu0
  %v754 = vpop.f32.mrb[0].mxu0
  %v755 = vadd.f32 0.0, %v754
  %v756 = vpop.f32.mrb[0].mxu0
  %757 = vdwg.mxu0
  %s758 = scalar_lea.vmem %s0, 16
  %v759 = vld [vmem:[%s758] sm:$0xf]
  %v760 = vld [vmem:[%s758 + $0x4] sm:$0xf]
  %v761 = vunpack.c.l.bf16 %v759
  %v762 = vunpack.c.l.bf16 %v760
  %v763 = vadd.f32 %v761, %v752
  %v764 = vadd.f32 %v762, %v755
  %v765 = vtanh.pop %v763
  %v766 = vtanh.pop %v764
  %767 = vst [vmem:[#allocation2] sm:$0xff] %v765
  %768 = vst [vmem:[#allocation2 + $0x8] sm:$0xff] %v766
  %v769 = vpack.c.bf16 %v766, %v765
  %v771 = vcombine.high %v769, %v769
  %v773 = vunpack.c.l.s4 1966171168
  %v774 = vunpack.c.0.s8 %v773
  %v775 = vlaneseq
  %v776 = vshrl.u32 %v775, 7
  %v777 = vsub.s32 %v774, %v776
  %v778 = vrot.slane %v769, %v777
  %v780 = vunpack.c.l.s4 1966171168
  %v781 = vunpack.c.0.s8 %v780
  %v782 = vlaneseq
  %v783 = vshrl.u32 %v782, 7
  %v784 = vsub.s32 %v781, %v783
  %v785 = vrot.slane %v771, %v784
  %v786 = vcombine.high %v778, %v778
  %v787 = vcombine.high %v785, %v785
  %v789 = vunpack.c.l.s4 1966171168
  %v790 = vunpack.c.0.s8 %v789
  %v791 = vlaneseq
  %v792 = vshrl.u32 %v791, 7
  %v793 = vsub.s32 %v790, %v792
  %v794 = vrot.slane %v778, %v793
  %v796 = vunpack.c.l.s4 1966171168
  %v797 = vunpack.c.0.s8 %v796
  %v798 = vlaneseq
  %v799 = vshrl.u32 %v798, 7
  %v800 = vsub.s32 %v797, %v799
  %v801 = vrot.slane %v785, %v800
  %v803 = vunpack.c.l.s4 1966171168
  %v804 = vunpack.c.0.s8 %v803
  %v805 = vlaneseq
  %v806 = vshrl.u32 %v805, 7
  %v807 = vsub.s32 %v804, %v806
  %v808 = vrot.slane %v786, %v807
  %v810 = vunpack.c.l.s4 1966171168
  %v811 = vunpack.c.0.s8 %v810
  %v812 = vlaneseq
  %v813 = vshrl.u32 %v812, 7
  %v814 = vsub.s32 %v811, %v813
  %v815 = vrot.slane %v787, %v814
  %v816 = vcombine.high %v794, %v794
  %v817 = vcombine.high %v801, %v801
  %v818 = vcombine.high %v808, %v808
  %v819 = vcombine.high %v815, %v815
  %v820 = vunpack.i.l.s16 %v794
  %v821 = vunpack.i.h.s16 %v794
  %v822 = vunpack.i.l.s16 %v808
  %v823 = vunpack.i.h.s16 %v808
  %v824 = vunpack.i.l.s16 %v816
  %v825 = vunpack.i.h.s16 %v816
  %v826 = vunpack.i.l.s16 %v818
  %v827 = vunpack.i.h.s16 %v818
  %v828 = vunpack.i.l.s16 %v801
  %v829 = vunpack.i.h.s16 %v801
  %v830 = vunpack.i.l.s16 %v815
  %v831 = vunpack.i.h.s16 %v815
  %v832 = vunpack.i.l.s16 %v817
  %v833 = vunpack.i.h.s16 %v817
  %v834 = vunpack.i.l.s16 %v819
  %v835 = vunpack.i.h.s16 %v819
  %v836 = vpack.i.b16 %v820, %v820
  %v837 = vpack.i.b16 %v821, %v821
  %v838 = vpack.i.b16 %v822, %v822
  %v839 = vpack.i.b16 %v823, %v823
  %v840 = vpack.i.b16 %v824, %v824
  %v841 = vpack.i.b16 %v825, %v825
  %v842 = vpack.i.b16 %v826, %v826
  %v843 = vpack.i.b16 %v827, %v827
  %v844 = vpack.i.b16 %v828, %v828
  %v845 = vpack.i.b16 %v829, %v829
  %v846 = vpack.i.b16 %v830, %v830
  %v847 = vpack.i.b16 %v831, %v831
  %v848 = vpack.i.b16 %v832, %v832
  %v849 = vpack.i.b16 %v833, %v833
  %v850 = vpack.i.b16 %v834, %v834
  %v851 = vpack.i.b16 %v835, %v835
  %v853 = vunpack.c.l.s4 286326784
  %v854 = vunpack.c.0.s8 %v853
  %v855 = vlaneseq
  %v856 = vshrl.u32 %v855, 7
  %v857 = vsub.s32 %v854, %v856
  %v858 = vrot.slane %v836, %v857
  %v860 = vunpack.c.l.s4 286326784
  %v861 = vunpack.c.0.s8 %v860
  %v862 = vlaneseq
  %v863 = vshrl.u32 %v862, 7
  %v864 = vsub.s32 %v861, %v863
  %v865 = vrot.slane %v837, %v864
  %v867 = vunpack.c.l.s4 286326784
  %v868 = vunpack.c.0.s8 %v867
  %v869 = vlaneseq
  %v870 = vshrl.u32 %v869, 7
  %v871 = vsub.s32 %v868, %v870
  %v872 = vrot.slane %v838, %v871
  %v874 = vunpack.c.l.s4 286326784
  %v875 = vunpack.c.0.s8 %v874
  %v876 = vlaneseq
  %v877 = vshrl.u32 %v876, 7
  %v878 = vsub.s32 %v875, %v877
  %v879 = vrot.slane %v839, %v878
  %v881 = vunpack.c.l.s4 286326784
  %v882 = vunpack.c.0.s8 %v881
  %v883 = vlaneseq
  %v884 = vshrl.u32 %v883, 7
  %v885 = vsub.s32 %v882, %v884
  %v886 = vrot.slane %v840, %v885
  %v888 = vunpack.c.l.s4 286326784
  %v889 = vunpack.c.0.s8 %v888
  %v890 = vlaneseq
  %v891 = vshrl.u32 %v890, 7
  %v892 = vsub.s32 %v889, %v891
  %v893 = vrot.slane %v841, %v892
  %v895 = vunpack.c.l.s4 286326784
  %v896 = vunpack.c.0.s8 %v895
  %v897 = vlaneseq
  %v898 = vshrl.u32 %v897, 7
  %v899 = vsub.s32 %v896, %v898
  %v900 = vrot.slane %v842, %v899
  %v902 = vunpack.c.l.s4 286326784
  %v903 = vunpack.c.0.s8 %v902
  %v904 = vlaneseq
  %v905 = vshrl.u32 %v904, 7
  %v906 = vsub.s32 %v903, %v905
  %v907 = vrot.slane %v843, %v906
  %v909 = vunpack.c.l.s4 286326784
  %v910 = vunpack.c.0.s8 %v909
  %v911 = vlaneseq
  %v912 = vshrl.u32 %v911, 7
  %v913 = vsub.s32 %v910, %v912
  %v914 = vrot.slane %v844, %v913
  %v916 = vunpack.c.l.s4 286326784
  %v917 = vunpack.c.0.s8 %v916
  %v918 = vlaneseq
  %v919 = vshrl.u32 %v918, 7
  %v920 = vsub.s32 %v917, %v919
  %v921 = vrot.slane %v845, %v920
  %v923 = vunpack.c.l.s4 286326784
  %v924 = vunpack.c.0.s8 %v923
  %v925 = vlaneseq
  %v926 = vshrl.u32 %v925, 7
  %v927 = vsub.s32 %v924, %v926
  %v928 = vrot.slane %v846, %v927
  %v930 = vunpack.c.l.s4 286326784
  %v931 = vunpack.c.0.s8 %v930
  %v932 = vlaneseq
  %v933 = vshrl.u32 %v932, 7
  %v934 = vsub.s32 %v931, %v933
  %v935 = vrot.slane %v847, %v934
  %v937 = vunpack.c.l.s4 286326784
  %v938 = vunpack.c.0.s8 %v937
  %v939 = vlaneseq
  %v940 = vshrl.u32 %v939, 7
  %v941 = vsub.s32 %v938, %v940
  %v942 = vrot.slane %v848, %v941
  %v944 = vunpack.c.l.s4 286326784
  %v945 = vunpack.c.0.s8 %v944
  %v946 = vlaneseq
  %v947 = vshrl.u32 %v946, 7
  %v948 = vsub.s32 %v945, %v947
  %v949 = vrot.slane %v849, %v948
  %v951 = vunpack.c.l.s4 286326784
  %v952 = vunpack.c.0.s8 %v951
  %v953 = vlaneseq
  %v954 = vshrl.u32 %v953, 7
  %v955 = vsub.s32 %v952, %v954
  %v956 = vrot.slane %v850, %v955
  %v958 = vunpack.c.l.s4 286326784
  %v959 = vunpack.c.0.s8 %v958
  %v960 = vlaneseq
  %v961 = vshrl.u32 %v960, 7
  %v962 = vsub.s32 %v959, %v961
  %v963 = vrot.slane %v851, %v962
  %vm980 = vcmask 1041409
  %vm981 = vsmask.f32 1280
  %vm982 = vmand %vm980, %vm981
  %v983 = vld [vmem:[%s2] sm:$0x2]
  %v984 = vsel %vm982, %v858, %v983
  %985 = vst [vmem:[%s2] sm:$0x2] %v984
  %v986 = vld [vmem:[%s2 + $0x4] sm:$0x2]
  %v987 = vsel %vm982, %v865, %v986
  %988 = vst [vmem:[%s2 + $0x4] sm:$0x2] %v987
  %v989 = vld [vmem:[%s2 + $0x8] sm:$0x2]
  %v990 = vsel %vm982, %v872, %v989
  %991 = vst [vmem:[%s2 + $0x8] sm:$0x2] %v990
  %v992 = vld [vmem:[%s2 + $0xc] sm:$0x2]
  %v993 = vsel %vm982, %v879, %v992
  %994 = vst [vmem:[%s2 + $0xc] sm:$0x2] %v993
  %v995 = vld [vmem:[%s2 + $0x10] sm:$0x2]
  %v996 = vsel %vm982, %v886, %v995
  %997 = vst [vmem:[%s2 + $0x10] sm:$0x2] %v996
  %v998 = vld [vmem:[%s2 + $0x14] sm:$0x2]
  %v999 = vsel %vm982, %v893, %v998
  %1000 = vst [vmem:[%s2 + $0x14] sm:$0x2] %v999
  %v1001 = vld [vmem:[%s2 + $0x18] sm:$0x2]
  %v1002 = vsel %vm982, %v900, %v1001
  %1003 = vst [vmem:[%s2 + $0x18] sm:$0x2] %v1002
  %v1004 = vld [vmem:[%s2 + $0x1c] sm:$0x2]
  %v1005 = vsel %vm982, %v907, %v1004
  %1006 = vst [vmem:[%s2 + $0x1c] sm:$0x2] %v1005
  %v1007 = vld [vmem:[%s2 + $0x20] sm:$0x2]
  %v1008 = vsel %vm982, %v914, %v1007
  %1009 = vst [vmem:[%s2 + $0x20] sm:$0x2] %v1008
  %v1010 = vld [vmem:[%s2 + $0x24] sm:$0x2]
  %v1011 = vsel %vm982, %v921, %v1010
  %1012 = vst [vmem:[%s2 + $0x24] sm:$0x2] %v1011
  %v1013 = vld [vmem:[%s2 + $0x28] sm:$0x2]
  %v1014 = vsel %vm982, %v928, %v1013
  %1015 = vst [vmem:[%s2 + $0x28] sm:$0x2] %v1014
  %v1016 = vld [vmem:[%s2 + $0x2c] sm:$0x2]
  %v1017 = vsel %vm982, %v935, %v1016
  %1018 = vst [vmem:[%s2 + $0x2c] sm:$0x2] %v1017
  %v1019 = vld [vmem:[%s2 + $0x30] sm:$0x2]
  %v1020 = vsel %vm982, %v942, %v1019
  %1021 = vst [vmem:[%s2 + $0x30] sm:$0x2] %v1020
  %v1022 = vld [vmem:[%s2 + $0x34] sm:$0x2]
  %v1023 = vsel %vm982, %v949, %v1022
  %1024 = vst [vmem:[%s2 + $0x34] sm:$0x2] %v1023
  %v1025 = vld [vmem:[%s2 + $0x38] sm:$0x2]
  %v1026 = vsel %vm982, %v956, %v1025
  %1027 = vst [vmem:[%s2 + $0x38] sm:$0x2] %v1026
  %v1028 = vld [vmem:[%s2 + $0x3c] sm:$0x2]
  %v1029 = vsel %vm982, %v963, %v1028
  %1030 = vst [vmem:[%s2 + $0x3c] sm:$0x2] %v1029
  %v1031 = vld [vmem:[#allocation2] sm:$0xff]
  %v1032 = vld [vmem:[#allocation2 + $0x8] sm:$0xff]
  %v1033 = vpack.c.bf16 %v1032, %v1031
  %1034 = vmatprep.subr.bf16.mxu0 0
  %1035 = vmatpush1.bf16.msra.mxu0 %v69
  %1036 = vmatprep.subr.bf16.mxu0 0
  %1037 = vmatpush1.bf16.msra.mxu0 %v70
  %1038 = vmatprep.subr.bf16.mxu0 0
  %1039 = vmatpush1.bf16.msra.mxu0 %v71
  %1040 = vmatprep.subr.bf16.mxu0 0
  %1041 = vmatpush1.bf16.msra.mxu0 %v72
  %1042 = vmatprep.subr.bf16.mxu0 0
  %1043 = vmatpush1.bf16.msra.mxu0 %v73
  %1044 = vmatprep.subr.bf16.mxu0 0
  %1045 = vmatpush1.bf16.msra.mxu0 %v74
  %1046 = vmatprep.subr.bf16.mxu0 0
  %1047 = vmatpush1.bf16.msra.mxu0 %v75
  %1048 = vmatprep.subr.bf16.mxu0 0
  %1049 = vmatpush1.bf16.msra.mxu0 %v76
  %1050 = vmatprep.subr.bf16.mxu0 0
  %1051 = vmatpush1.bf16.msra.mxu0 0
  %1052 = vmatprep.subr.bf16.mxu0 0
  %1053 = vmatpush1.bf16.msra.mxu0 0
  %1054 = vmatprep.subr.bf16.mxu0 0
  %1055 = vmatpush1.bf16.msra.mxu0 0
  %1056 = vmatprep.subr.bf16.mxu0 0
  %1057 = vmatpush1.bf16.msra.mxu0 0
  %1058 = vmatprep.subr.bf16.mxu0 0
  %1059 = vmatpush1.bf16.msra.mxu0 0
  %1060 = vmatprep.subr.bf16.mxu0 0
  %1061 = vmatpush1.bf16.msra.mxu0 0
  %1062 = vmatprep.subr.bf16.mxu0 0
  %1063 = vmatpush1.bf16.msra.mxu0 0
  %1064 = vmatprep.subr.bf16.mxu0 0
  %1065 = vmatpush1.bf16.msra.mxu0 0
  %1066 = vmatprep.mubr.bf16.mxu0 0
  %1067 = vmatmul.mubr.bf16.gmra.mrb[0].mxu0 %v1033
  %v1068 = vpop.f32.mrb[0].mxu0
  %v1069 = vadd.f32 0.0, %v1068
  %v1070 = vpop.f32.mrb[0].mxu0
  %v1071 = vpop.f32.mrb[0].mxu0
  %v1072 = vadd.f32 0.0, %v1071
  %v1073 = vpop.f32.mrb[0].mxu0
  %1074 = vdwg.mxu0
  %s1075 = scalar_lea.vmem %s0, 24
  %v1076 = vld [vmem:[%s1075] sm:$0xf]
  %v1077 = vld [vmem:[%s1075 + $0x4] sm:$0xf]
  %v1078 = vunpack.c.l.bf16 %v1076
  %v1079 = vunpack.c.l.bf16 %v1077
  %v1080 = vadd.f32 %v1078, %v1069
  %v1081 = vadd.f32 %v1079, %v1072
  %v1082 = vtanh.pop %v1080
  %v1083 = vtanh.pop %v1081
  %1084 = vst [vmem:[#allocation2] sm:$0xff] %v1082
  %1085 = vst [vmem:[#allocation2 + $0x8] sm:$0xff] %v1083
  %v1086 = vpack.c.bf16 %v1083, %v1082
  %v1088 = vcombine.high %v1086, %v1086
  %v1090 = vunpack.c.l.s4 1966171168
  %v1091 = vunpack.c.0.s8 %v1090
  %v1092 = vlaneseq
  %v1093 = vshrl.u32 %v1092, 7
  %v1094 = vsub.s32 %v1091, %v1093
  %v1095 = vrot.slane %v1086, %v1094
  %v1097 = vunpack.c.l.s4 1966171168
  %v1098 = vunpack.c.0.s8 %v1097
  %v1099 = vlaneseq
  %v1100 = vshrl.u32 %v1099, 7
  %v1101 = vsub.s32 %v1098, %v1100
  %v1102 = vrot.slane %v1088, %v1101
  %v1103 = vcombine.high %v1095, %v1095
  %v1104 = vcombine.high %v1102, %v1102
  %v1106 = vunpack.c.l.s4 1966171168
  %v1107 = vunpack.c.0.s8 %v1106
  %v1108 = vlaneseq
  %v1109 = vshrl.u32 %v1108, 7
  %v1110 = vsub.s32 %v1107, %v1109
  %v1111 = vrot.slane %v1095, %v1110
  %v1113 = vunpack.c.l.s4 1966171168
  %v1114 = vunpack.c.0.s8 %v1113
  %v1115 = vlaneseq
  %v1116 = vshrl.u32 %v1115, 7
  %v1117 = vsub.s32 %v1114, %v1116
  %v1118 = vrot.slane %v1102, %v1117
  %v1120 = vunpack.c.l.s4 1966171168
  %v1121 = vunpack.c.0.s8 %v1120
  %v1122 = vlaneseq
  %v1123 = vshrl.u32 %v1122, 7
  %v1124 = vsub.s32 %v1121, %v1123
  %v1125 = vrot.slane %v1103, %v1124
  %v1127 = vunpack.c.l.s4 1966171168
  %v1128 = vunpack.c.0.s8 %v1127
  %v1129 = vlaneseq
  %v1130 = vshrl.u32 %v1129, 7
  %v1131 = vsub.s32 %v1128, %v1130
  %v1132 = vrot.slane %v1104, %v1131
  %v1133 = vcombine.high %v1111, %v1111
  %v1134 = vcombine.high %v1118, %v1118
  %v1135 = vcombine.high %v1125, %v1125
  %v1136 = vcombine.high %v1132, %v1132
  %v1137 = vunpack.i.l.s16 %v1111
  %v1138 = vunpack.i.h.s16 %v1111
  %v1139 = vunpack.i.l.s16 %v1125
  %v1140 = vunpack.i.h.s16 %v1125
  %v1141 = vunpack.i.l.s16 %v1133
  %v1142 = vunpack.i.h.s16 %v1133
  %v1143 = vunpack.i.l.s16 %v1135
  %v1144 = vunpack.i.h.s16 %v1135
  %v1145 = vunpack.i.l.s16 %v1118
  %v1146 = vunpack.i.h.s16 %v1118
  %v1147 = vunpack.i.l.s16 %v1132
  %v1148 = vunpack.i.h.s16 %v1132
  %v1149 = vunpack.i.l.s16 %v1134
  %v1150 = vunpack.i.h.s16 %v1134
  %v1151 = vunpack.i.l.s16 %v1136
  %v1152 = vunpack.i.h.s16 %v1136
  %v1153 = vpack.i.b16 %v1137, %v1137
  %v1154 = vpack.i.b16 %v1138, %v1138
  %v1155 = vpack.i.b16 %v1139, %v1139
  %v1156 = vpack.i.b16 %v1140, %v1140
  %v1157 = vpack.i.b16 %v1141, %v1141
  %v1158 = vpack.i.b16 %v1142, %v1142
  %v1159 = vpack.i.b16 %v1143, %v1143
  %v1160 = vpack.i.b16 %v1144, %v1144
  %v1161 = vpack.i.b16 %v1145, %v1145
  %v1162 = vpack.i.b16 %v1146, %v1146
  %v1163 = vpack.i.b16 %v1147, %v1147
  %v1164 = vpack.i.b16 %v1148, %v1148
  %v1165 = vpack.i.b16 %v1149, %v1149
  %v1166 = vpack.i.b16 %v1150, %v1150
  %v1167 = vpack.i.b16 %v1151, %v1151
  %v1168 = vpack.i.b16 %v1152, %v1152
  %v1170 = vunpack.c.l.s4 286326784
  %v1171 = vunpack.c.0.s8 %v1170
  %v1172 = vlaneseq
  %v1173 = vshrl.u32 %v1172, 7
  %v1174 = vsub.s32 %v1171, %v1173
  %v1175 = vrot.slane %v1153, %v1174
  %v1177 = vunpack.c.l.s4 286326784
  %v1178 = vunpack.c.0.s8 %v1177
  %v1179 = vlaneseq
  %v1180 = vshrl.u32 %v1179, 7
  %v1181 = vsub.s32 %v1178, %v1180
  %v1182 = vrot.slane %v1154, %v1181
  %v1184 = vunpack.c.l.s4 286326784
  %v1185 = vunpack.c.0.s8 %v1184
  %v1186 = vlaneseq
  %v1187 = vshrl.u32 %v1186, 7
  %v1188 = vsub.s32 %v1185, %v1187
  %v1189 = vrot.slane %v1155, %v1188
  %v1191 = vunpack.c.l.s4 286326784
  %v1192 = vunpack.c.0.s8 %v1191
  %v1193 = vlaneseq
  %v1194 = vshrl.u32 %v1193, 7
  %v1195 = vsub.s32 %v1192, %v1194
  %v1196 = vrot.slane %v1156, %v1195
  %v1198 = vunpack.c.l.s4 286326784
  %v1199 = vunpack.c.0.s8 %v1198
  %v1200 = vlaneseq
  %v1201 = vshrl.u32 %v1200, 7
  %v1202 = vsub.s32 %v1199, %v1201
  %v1203 = vrot.slane %v1157, %v1202
  %v1205 = vunpack.c.l.s4 286326784
  %v1206 = vunpack.c.0.s8 %v1205
  %v1207 = vlaneseq
  %v1208 = vshrl.u32 %v1207, 7
  %v1209 = vsub.s32 %v1206, %v1208
  %v1210 = vrot.slane %v1158, %v1209
  %v1212 = vunpack.c.l.s4 286326784
  %v1213 = vunpack.c.0.s8 %v1212
  %v1214 = vlaneseq
  %v1215 = vshrl.u32 %v1214, 7
  %v1216 = vsub.s32 %v1213, %v1215
  %v1217 = vrot.slane %v1159, %v1216
  %v1219 = vunpack.c.l.s4 286326784
  %v1220 = vunpack.c.0.s8 %v1219
  %v1221 = vlaneseq
  %v1222 = vshrl.u32 %v1221, 7
  %v1223 = vsub.s32 %v1220, %v1222
  %v1224 = vrot.slane %v1160, %v1223
  %v1226 = vunpack.c.l.s4 286326784
  %v1227 = vunpack.c.0.s8 %v1226
  %v1228 = vlaneseq
  %v1229 = vshrl.u32 %v1228, 7
  %v1230 = vsub.s32 %v1227, %v1229
  %v1231 = vrot.slane %v1161, %v1230
  %v1233 = vunpack.c.l.s4 286326784
  %v1234 = vunpack.c.0.s8 %v1233
  %v1235 = vlaneseq
  %v1236 = vshrl.u32 %v1235, 7
  %v1237 = vsub.s32 %v1234, %v1236
  %v1238 = vrot.slane %v1162, %v1237
  %v1240 = vunpack.c.l.s4 286326784
  %v1241 = vunpack.c.0.s8 %v1240
  %v1242 = vlaneseq
  %v1243 = vshrl.u32 %v1242, 7
  %v1244 = vsub.s32 %v1241, %v1243
  %v1245 = vrot.slane %v1163, %v1244
  %v1247 = vunpack.c.l.s4 286326784
  %v1248 = vunpack.c.0.s8 %v1247
  %v1249 = vlaneseq
  %v1250 = vshrl.u32 %v1249, 7
  %v1251 = vsub.s32 %v1248, %v1250
  %v1252 = vrot.slane %v1164, %v1251
  %v1254 = vunpack.c.l.s4 286326784
  %v1255 = vunpack.c.0.s8 %v1254
  %v1256 = vlaneseq
  %v1257 = vshrl.u32 %v1256, 7
  %v1258 = vsub.s32 %v1255, %v1257
  %v1259 = vrot.slane %v1165, %v1258
  %v1261 = vunpack.c.l.s4 286326784
  %v1262 = vunpack.c.0.s8 %v1261
  %v1263 = vlaneseq
  %v1264 = vshrl.u32 %v1263, 7
  %v1265 = vsub.s32 %v1262, %v1264
  %v1266 = vrot.slane %v1166, %v1265
  %v1268 = vunpack.c.l.s4 286326784
  %v1269 = vunpack.c.0.s8 %v1268
  %v1270 = vlaneseq
  %v1271 = vshrl.u32 %v1270, 7
  %v1272 = vsub.s32 %v1269, %v1271
  %v1273 = vrot.slane %v1167, %v1272
  %v1275 = vunpack.c.l.s4 286326784
  %v1276 = vunpack.c.0.s8 %v1275
  %v1277 = vlaneseq
  %v1278 = vshrl.u32 %v1277, 7
  %v1279 = vsub.s32 %v1276, %v1278
  %v1280 = vrot.slane %v1168, %v1279
  %vm1297 = vsmask.f32 7942
  %vm1298 = vmand %vm980, %vm1297
  %v1299 = vld [vmem:[%s2] sm:$0x2]
  %v1300 = vsel %vm1298, %v1175, %v1299
  %1301 = vst [vmem:[%s2] sm:$0x2] %v1300
  %v1302 = vld [vmem:[%s2 + $0x4] sm:$0x2]
  %v1303 = vsel %vm1298, %v1182, %v1302
  %1304 = vst [vmem:[%s2 + $0x4] sm:$0x2] %v1303
  %v1305 = vld [vmem:[%s2 + $0x8] sm:$0x2]
  %v1306 = vsel %vm1298, %v1189, %v1305
  %1307 = vst [vmem:[%s2 + $0x8] sm:$0x2] %v1306
  %v1308 = vld [vmem:[%s2 + $0xc] sm:$0x2]
  %v1309 = vsel %vm1298, %v1196, %v1308
  %1310 = vst [vmem:[%s2 + $0xc] sm:$0x2] %v1309
  %v1311 = vld [vmem:[%s2 + $0x10] sm:$0x2]
  %v1312 = vsel %vm1298, %v1203, %v1311
  %1313 = vst [vmem:[%s2 + $0x10] sm:$0x2] %v1312
  %v1314 = vld [vmem:[%s2 + $0x14] sm:$0x2]
  %v1315 = vsel %vm1298, %v1210, %v1314
  %1316 = vst [vmem:[%s2 + $0x14] sm:$0x2] %v1315
  %v1317 = vld [vmem:[%s2 + $0x18] sm:$0x2]
  %v1318 = vsel %vm1298, %v1217, %v1317
  %1319 = vst [vmem:[%s2 + $0x18] sm:$0x2] %v1318
  %v1320 = vld [vmem:[%s2 + $0x1c] sm:$0x2]
  %v1321 = vsel %vm1298, %v1224, %v1320
  %1322 = vst [vmem:[%s2 + $0x1c] sm:$0x2] %v1321
  %v1323 = vld [vmem:[%s2 + $0x20] sm:$0x2]
  %v1324 = vsel %vm1298, %v1231, %v1323
  %1325 = vst [vmem:[%s2 + $0x20] sm:$0x2] %v1324
  %v1326 = vld [vmem:[%s2 + $0x24] sm:$0x2]
  %v1327 = vsel %vm1298, %v1238, %v1326
  %1328 = vst [vmem:[%s2 + $0x24] sm:$0x2] %v1327
  %v1329 = vld [vmem:[%s2 + $0x28] sm:$0x2]
  %v1330 = vsel %vm1298, %v1245, %v1329
  %1331 = vst [vmem:[%s2 + $0x28] sm:$0x2] %v1330
  %v1332 = vld [vmem:[%s2 + $0x2c] sm:$0x2]
  %v1333 = vsel %vm1298, %v1252, %v1332
  %1334 = vst [vmem:[%s2 + $0x2c] sm:$0x2] %v1333
  %v1335 = vld [vmem:[%s2 + $0x30] sm:$0x2]
  %v1336 = vsel %vm1298, %v1259, %v1335
  %1337 = vst [vmem:[%s2 + $0x30] sm:$0x2] %v1336
  %v1338 = vld [vmem:[%s2 + $0x34] sm:$0x2]
  %v1339 = vsel %vm1298, %v1266, %v1338
  %1340 = vst [vmem:[%s2 + $0x34] sm:$0x2] %v1339
  %v1341 = vld [vmem:[%s2 + $0x38] sm:$0x2]
  %v1342 = vsel %vm1298, %v1273, %v1341
  %1343 = vst [vmem:[%s2 + $0x38] sm:$0x2] %v1342
  %v1344 = vld [vmem:[%s2 + $0x3c] sm:$0x2]
  %v1345 = vsel %vm1298, %v1280, %v1344
  %1346 = vst [vmem:[%s2 + $0x3c] sm:$0x2] %v1345
  %v1347 = vld [vmem:[#allocation2] sm:$0xff]
  %v1348 = vld [vmem:[#allocation2 + $0x8] sm:$0xff]
  %v1349 = vpack.c.bf16 %v1348, %v1347
  %1350 = vmatprep.subr.bf16.mxu0 0
  %1351 = vmatpush1.bf16.msra.mxu0 %v69
  %1352 = vmatprep.subr.bf16.mxu0 0
  %1353 = vmatpush1.bf16.msra.mxu0 %v70
  %1354 = vmatprep.subr.bf16.mxu0 0
  %1355 = vmatpush1.bf16.msra.mxu0 %v71
  %1356 = vmatprep.subr.bf16.mxu0 0
  %1357 = vmatpush1.bf16.msra.mxu0 %v72
  %1358 = vmatprep.subr.bf16.mxu0 0
  %1359 = vmatpush1.bf16.msra.mxu0 %v73
  %1360 = vmatprep.subr.bf16.mxu0 0
  %1361 = vmatpush1.bf16.msra.mxu0 %v74
  %1362 = vmatprep.subr.bf16.mxu0 0
  %1363 = vmatpush1.bf16.msra.mxu0 %v75
  %1364 = vmatprep.subr.bf16.mxu0 0
  %1365 = vmatpush1.bf16.msra.mxu0 %v76
  %1366 = vmatprep.subr.bf16.mxu0 0
  %1367 = vmatpush1.bf16.msra.mxu0 0
  %1368 = vmatprep.subr.bf16.mxu0 0
  %1369 = vmatpush1.bf16.msra.mxu0 0
  %1370 = vmatprep.subr.bf16.mxu0 0
  %1371 = vmatpush1.bf16.msra.mxu0 0
  %1372 = vmatprep.subr.bf16.mxu0 0
  %1373 = vmatpush1.bf16.msra.mxu0 0
  %1374 = vmatprep.subr.bf16.mxu0 0
  %1375 = vmatpush1.bf16.msra.mxu0 0
  %1376 = vmatprep.subr.bf16.mxu0 0
  %1377 = vmatpush1.bf16.msra.mxu0 0
  %1378 = vmatprep.subr.bf16.mxu0 0
  %1379 = vmatpush1.bf16.msra.mxu0 0
  %1380 = vmatprep.subr.bf16.mxu0 0
  %1381 = vmatpush1.bf16.msra.mxu0 0
  %1382 = vmatprep.mubr.bf16.mxu0 0
  %1383 = vmatmul.mubr.bf16.gmra.mrb[0].mxu0 %v1349
  %v1384 = vpop.f32.mrb[0].mxu0
  %v1385 = vadd.f32 0.0, %v1384
  %v1386 = vpop.f32.mrb[0].mxu0
  %v1387 = vpop.f32.mrb[0].mxu0
  %v1388 = vadd.f32 0.0, %v1387
  %v1389 = vpop.f32.mrb[0].mxu0
  %1390 = vdwg.mxu0
  %s1391 = scalar_lea.vmem %s0, 32
  %v1392 = vld [vmem:[%s1391] sm:$0xf]
  %v1393 = vld [vmem:[%s1391 + $0x4] sm:$0xf]
  %v1394 = vunpack.c.l.bf16 %v1392
  %v1395 = vunpack.c.l.bf16 %v1393
  %v1396 = vadd.f32 %v1394, %v1385
  %v1397 = vadd.f32 %v1395, %v1388
  %v1398 = vtanh.pop %v1396
  %v1399 = vtanh.pop %v1397
  %1400 = vst [vmem:[#allocation2] sm:$0xff] %v1398
  %1401 = vst [vmem:[#allocation2 + $0x8] sm:$0xff] %v1399
  %v1402 = vpack.c.bf16 %v1399, %v1398
  %v1404 = vcombine.high %v1402, %v1402
  %v1406 = vunpack.c.l.s4 1966171168
  %v1407 = vunpack.c.0.s8 %v1406
  %v1408 = vlaneseq
  %v1409 = vshrl.u32 %v1408, 7
  %v1410 = vsub.s32 %v1407, %v1409
  %v1411 = vrot.slane %v1402, %v1410
  %v1413 = vunpack.c.l.s4 1966171168
  %v1414 = vunpack.c.0.s8 %v1413
  %v1415 = vlaneseq
  %v1416 = vshrl.u32 %v1415, 7
  %v1417 = vsub.s32 %v1414, %v1416
  %v1418 = vrot.slane %v1404, %v1417
  %v1419 = vcombine.high %v1411, %v1411
  %v1420 = vcombine.high %v1418, %v1418
  %v1422 = vunpack.c.l.s4 1966171168
  %v1423 = vunpack.c.0.s8 %v1422
  %v1424 = vlaneseq
  %v1425 = vshrl.u32 %v1424, 7
  %v1426 = vsub.s32 %v1423, %v1425
  %v1427 = vrot.slane %v1411, %v1426
  %v1429 = vunpack.c.l.s4 1966171168
  %v1430 = vunpack.c.0.s8 %v1429
  %v1431 = vlaneseq
  %v1432 = vshrl.u32 %v1431, 7
  %v1433 = vsub.s32 %v1430, %v1432
  %v1434 = vrot.slane %v1418, %v1433
  %v1436 = vunpack.c.l.s4 1966171168
  %v1437 = vunpack.c.0.s8 %v1436
  %v1438 = vlaneseq
  %v1439 = vshrl.u32 %v1438, 7
  %v1440 = vsub.s32 %v1437, %v1439
  %v1441 = vrot.slane %v1419, %v1440
  %v1443 = vunpack.c.l.s4 1966171168
  %v1444 = vunpack.c.0.s8 %v1443
  %v1445 = vlaneseq
  %v1446 = vshrl.u32 %v1445, 7
  %v1447 = vsub.s32 %v1444, %v1446
  %v1448 = vrot.slane %v1420, %v1447
  %v1449 = vcombine.high %v1427, %v1427
  %v1450 = vcombine.high %v1434, %v1434
  %v1451 = vcombine.high %v1441, %v1441
  %v1452 = vcombine.high %v1448, %v1448
  %v1453 = vunpack.i.l.s16 %v1427
  %v1454 = vunpack.i.h.s16 %v1427
  %v1455 = vunpack.i.l.s16 %v1441
  %v1456 = vunpack.i.h.s16 %v1441
  %v1457 = vunpack.i.l.s16 %v1449
  %v1458 = vunpack.i.h.s16 %v1449
  %v1459 = vunpack.i.l.s16 %v1451
  %v1460 = vunpack.i.h.s16 %v1451
  %v1461 = vunpack.i.l.s16 %v1434
  %v1462 = vunpack.i.h.s16 %v1434
  %v1463 = vunpack.i.l.s16 %v1448
  %v1464 = vunpack.i.h.s16 %v1448
  %v1465 = vunpack.i.l.s16 %v1450
  %v1466 = vunpack.i.h.s16 %v1450
  %v1467 = vunpack.i.l.s16 %v1452
  %v1468 = vunpack.i.h.s16 %v1452
  %v1469 = vpack.i.b16 %v1453, %v1453
  %v1470 = vpack.i.b16 %v1454, %v1454
  %v1471 = vpack.i.b16 %v1455, %v1455
  %v1472 = vpack.i.b16 %v1456, %v1456
  %v1473 = vpack.i.b16 %v1457, %v1457
  %v1474 = vpack.i.b16 %v1458, %v1458
  %v1475 = vpack.i.b16 %v1459, %v1459
  %v1476 = vpack.i.b16 %v1460, %v1460
  %v1477 = vpack.i.b16 %v1461, %v1461
  %v1478 = vpack.i.b16 %v1462, %v1462
  %v1479 = vpack.i.b16 %v1463, %v1463
  %v1480 = vpack.i.b16 %v1464, %v1464
  %v1481 = vpack.i.b16 %v1465, %v1465
  %v1482 = vpack.i.b16 %v1466, %v1466
  %v1483 = vpack.i.b16 %v1467, %v1467
  %v1484 = vpack.i.b16 %v1468, %v1468
  %v1486 = vunpack.c.l.s4 286326784
  %v1487 = vunpack.c.0.s8 %v1486
  %v1488 = vlaneseq
  %v1489 = vshrl.u32 %v1488, 7
  %v1490 = vsub.s32 %v1487, %v1489
  %v1491 = vrot.slane %v1469, %v1490
  %v1493 = vunpack.c.l.s4 286326784
  %v1494 = vunpack.c.0.s8 %v1493
  %v1495 = vlaneseq
  %v1496 = vshrl.u32 %v1495, 7
  %v1497 = vsub.s32 %v1494, %v1496
  %v1498 = vrot.slane %v1470, %v1497
  %v1500 = vunpack.c.l.s4 286326784
  %v1501 = vunpack.c.0.s8 %v1500
  %v1502 = vlaneseq
  %v1503 = vshrl.u32 %v1502, 7
  %v1504 = vsub.s32 %v1501, %v1503
  %v1505 = vrot.slane %v1471, %v1504
  %v1507 = vunpack.c.l.s4 286326784
  %v1508 = vunpack.c.0.s8 %v1507
  %v1509 = vlaneseq
  %v1510 = vshrl.u32 %v1509, 7
  %v1511 = vsub.s32 %v1508, %v1510
  %v1512 = vrot.slane %v1472, %v1511
  %v1514 = vunpack.c.l.s4 286326784
  %v1515 = vunpack.c.0.s8 %v1514
  %v1516 = vlaneseq
  %v1517 = vshrl.u32 %v1516, 7
  %v1518 = vsub.s32 %v1515, %v1517
  %v1519 = vrot.slane %v1473, %v1518
  %v1521 = vunpack.c.l.s4 286326784
  %v1522 = vunpack.c.0.s8 %v1521
  %v1523 = vlaneseq
  %v1524 = vshrl.u32 %v1523, 7
  %v1525 = vsub.s32 %v1522, %v1524
  %v1526 = vrot.slane %v1474, %v1525
  %v1528 = vunpack.c.l.s4 286326784
  %v1529 = vunpack.c.0.s8 %v1528
  %v1530 = vlaneseq
  %v1531 = vshrl.u32 %v1530, 7
  %v1532 = vsub.s32 %v1529, %v1531
  %v1533 = vrot.slane %v1475, %v1532
  %v1535 = vunpack.c.l.s4 286326784
  %v1536 = vunpack.c.0.s8 %v1535
  %v1537 = vlaneseq
  %v1538 = vshrl.u32 %v1537, 7
  %v1539 = vsub.s32 %v1536, %v1538
  %v1540 = vrot.slane %v1476, %v1539
  %v1542 = vunpack.c.l.s4 286326784
  %v1543 = vunpack.c.0.s8 %v1542
  %v1544 = vlaneseq
  %v1545 = vshrl.u32 %v1544, 7
  %v1546 = vsub.s32 %v1543, %v1545
  %v1547 = vrot.slane %v1477, %v1546
  %v1549 = vunpack.c.l.s4 286326784
  %v1550 = vunpack.c.0.s8 %v1549
  %v1551 = vlaneseq
  %v1552 = vshrl.u32 %v1551, 7
  %v1553 = vsub.s32 %v1550, %v1552
  %v1554 = vrot.slane %v1478, %v1553
  %v1556 = vunpack.c.l.s4 286326784
  %v1557 = vunpack.c.0.s8 %v1556
  %v1558 = vlaneseq
  %v1559 = vshrl.u32 %v1558, 7
  %v1560 = vsub.s32 %v1557, %v1559
  %v1561 = vrot.slane %v1479, %v1560
  %v1563 = vunpack.c.l.s4 286326784
  %v1564 = vunpack.c.0.s8 %v1563
  %v1565 = vlaneseq
  %v1566 = vshrl.u32 %v1565, 7
  %v1567 = vsub.s32 %v1564, %v1566
  %v1568 = vrot.slane %v1480, %v1567
  %v1570 = vunpack.c.l.s4 286326784
  %v1571 = vunpack.c.0.s8 %v1570
  %v1572 = vlaneseq
  %v1573 = vshrl.u32 %v1572, 7
  %v1574 = vsub.s32 %v1571, %v1573
  %v1575 = vrot.slane %v1481, %v1574
  %v1577 = vunpack.c.l.s4 286326784
  %v1578 = vunpack.c.0.s8 %v1577
  %v1579 = vlaneseq
  %v1580 = vshrl.u32 %v1579, 7
  %v1581 = vsub.s32 %v1578, %v1580
  %v1582 = vrot.slane %v1482, %v1581
  %v1584 = vunpack.c.l.s4 286326784
  %v1585 = vunpack.c.0.s8 %v1584
  %v1586 = vlaneseq
  %v1587 = vshrl.u32 %v1586, 7
  %v1588 = vsub.s32 %v1585, %v1587
  %v1589 = vrot.slane %v1483, %v1588
  %v1591 = vunpack.c.l.s4 286326784
  %v1592 = vunpack.c.0.s8 %v1591
  %v1593 = vlaneseq
  %v1594 = vshrl.u32 %v1593, 7
  %v1595 = vsub.s32 %v1592, %v1594
  %v1596 = vrot.slane %v1484, %v1595
  %vm1613 = vcmask 1042434
  %vm1614 = vsmask.f32 2304
  %vm1615 = vmand %vm1613, %vm1614
  %v1616 = vld [vmem:[%s2] sm:$0x4]
  %v1617 = vsel %vm1615, %v1491, %v1616
  %1618 = vst [vmem:[%s2] sm:$0x4] %v1617
  %v1619 = vld [vmem:[%s2 + $0x4] sm:$0x4]
  %v1620 = vsel %vm1615, %v1498, %v1619
  %1621 = vst [vmem:[%s2 + $0x4] sm:$0x4] %v1620
  %v1622 = vld [vmem:[%s2 + $0x8] sm:$0x4]
  %v1623 = vsel %vm1615, %v1505, %v1622
  %1624 = vst [vmem:[%s2 + $0x8] sm:$0x4] %v1623
  %v1625 = vld [vmem:[%s2 + $0xc] sm:$0x4]
  %v1626 = vsel %vm1615, %v1512, %v1625
  %1627 = vst [vmem:[%s2 + $0xc] sm:$0x4] %v1626
  %v1628 = vld [vmem:[%s2 + $0x10] sm:$0x4]
  %v1629 = vsel %vm1615, %v1519, %v1628
  %1630 = vst [vmem:[%s2 + $0x10] sm:$0x4] %v1629
  %v1631 = vld [vmem:[%s2 + $0x14] sm:$0x4]
  %v1632 = vsel %vm1615, %v1526, %v1631
  %1633 = vst [vmem:[%s2 + $0x14] sm:$0x4] %v1632
  %v1634 = vld [vmem:[%s2 + $0x18] sm:$0x4]
  %v1635 = vsel %vm1615, %v1533, %v1634
  %1636 = vst [vmem:[%s2 + $0x18] sm:$0x4] %v1635
  %v1637 = vld [vmem:[%s2 + $0x1c] sm:$0x4]
  %v1638 = vsel %vm1615, %v1540, %v1637
  %1639 = vst [vmem:[%s2 + $0x1c] sm:$0x4] %v1638
  %v1640 = vld [vmem:[%s2 + $0x20] sm:$0x4]
  %v1641 = vsel %vm1615, %v1547, %v1640
  %1642 = vst [vmem:[%s2 + $0x20] sm:$0x4] %v1641
  %v1643 = vld [vmem:[%s2 + $0x24] sm:$0x4]
  %v1644 = vsel %vm1615, %v1554, %v1643
  %1645 = vst [vmem:[%s2 + $0x24] sm:$0x4] %v1644
  %v1646 = vld [vmem:[%s2 + $0x28] sm:$0x4]
  %v1647 = vsel %vm1615, %v1561, %v1646
  %1648 = vst [vmem:[%s2 + $0x28] sm:$0x4] %v1647
  %v1649 = vld [vmem:[%s2 + $0x2c] sm:$0x4]
  %v1650 = vsel %vm1615, %v1568, %v1649
  %1651 = vst [vmem:[%s2 + $0x2c] sm:$0x4] %v1650
  %v1652 = vld [vmem:[%s2 + $0x30] sm:$0x4]
  %v1653 = vsel %vm1615, %v1575, %v1652
  %1654 = vst [vmem:[%s2 + $0x30] sm:$0x4] %v1653
  %v1655 = vld [vmem:[%s2 + $0x34] sm:$0x4]
  %v1656 = vsel %vm1615, %v1582, %v1655
  %1657 = vst [vmem:[%s2 + $0x34] sm:$0x4] %v1656
  %v1658 = vld [vmem:[%s2 + $0x38] sm:$0x4]
  %v1659 = vsel %vm1615, %v1589, %v1658
  %1660 = vst [vmem:[%s2 + $0x38] sm:$0x4] %v1659
  %v1661 = vld [vmem:[%s2 + $0x3c] sm:$0x4]
  %v1662 = vsel %vm1615, %v1596, %v1661
  %1663 = vst [vmem:[%s2 + $0x3c] sm:$0x4] %v1662
  %v1664 = vld [vmem:[#allocation2] sm:$0xff]
  %v1665 = vld [vmem:[#allocation2 + $0x8] sm:$0xff]
  %v1666 = vpack.c.bf16 %v1665, %v1664
  %1667 = vmatprep.subr.bf16.mxu0 0
  %1668 = vmatpush1.bf16.msra.mxu0 %v69
  %1669 = vmatprep.subr.bf16.mxu0 0
  %1670 = vmatpush1.bf16.msra.mxu0 %v70
  %1671 = vmatprep.subr.bf16.mxu0 0
  %1672 = vmatpush1.bf16.msra.mxu0 %v71
  %1673 = vmatprep.subr.bf16.mxu0 0
  %1674 = vmatpush1.bf16.msra.mxu0 %v72
  %1675 = vmatprep.subr.bf16.mxu0 0
  %1676 = vmatpush1.bf16.msra.mxu0 %v73
  %1677 = vmatprep.subr.bf16.mxu0 0
  %1678 = vmatpush1.bf16.msra.mxu0 %v74
  %1679 = vmatprep.subr.bf16.mxu0 0
  %1680 = vmatpush1.bf16.msra.mxu0 %v75
  %1681 = vmatprep.subr.bf16.mxu0 0
  %1682 = vmatpush1.bf16.msra.mxu0 %v76
  %1683 = vmatprep.subr.bf16.mxu0 0
  %1684 = vmatpush1.bf16.msra.mxu0 0
  %1685 = vmatprep.subr.bf16.mxu0 0
  %1686 = vmatpush1.bf16.msra.mxu0 0
  %1687 = vmatprep.subr.bf16.mxu0 0
  %1688 = vmatpush1.bf16.msra.mxu0 0
  %1689 = vmatprep.subr.bf16.mxu0 0
  %1690 = vmatpush1.bf16.msra.mxu0 0
  %1691 = vmatprep.subr.bf16.mxu0 0
  %1692 = vmatpush1.bf16.msra.mxu0 0
  %1693 = vmatprep.subr.bf16.mxu0 0
  %1694 = vmatpush1.bf16.msra.mxu0 0
  %1695 = vmatprep.subr.bf16.mxu0 0
  %1696 = vmatpush1.bf16.msra.mxu0 0
  %1697 = vmatprep.subr.bf16.mxu0 0
  %1698 = vmatpush1.bf16.msra.mxu0 0
  %1699 = vmatprep.mubr.bf16.mxu0 0
  %1700 = vmatmul.mubr.bf16.gmra.mrb[0].mxu0 %v1666
  %v1701 = vpop.f32.mrb[0].mxu0
  %v1702 = vadd.f32 0.0, %v1701
  %v1703 = vpop.f32.mrb[0].mxu0
  %v1704 = vpop.f32.mrb[0].mxu0
  %v1705 = vadd.f32 0.0, %v1704
  %v1706 = vpop.f32.mrb[0].mxu0
  %1707 = vdwg.mxu0
  %s1708 = scalar_lea.vmem %s0, 40
  %v1709 = vld [vmem:[%s1708] sm:$0xf]
  %v1710 = vld [vmem:[%s1708 + $0x4] sm:$0xf]
  %v1711 = vunpack.c.l.bf16 %v1709
  %v1712 = vunpack.c.l.bf16 %v1710
  %v1713 = vadd.f32 %v1711, %v1702
  %v1714 = vadd.f32 %v1712, %v1705
  %v1715 = vtanh.pop %v1713
  %v1716 = vtanh.pop %v1714
  %1717 = vst [vmem:[#allocation2] sm:$0xff] %v1715
  %1718 = vst [vmem:[#allocation2 + $0x8] sm:$0xff] %v1716
  %v1719 = vpack.c.bf16 %v1716, %v1715
  %v1721 = vcombine.high %v1719, %v1719
  %v1723 = vunpack.c.l.s4 1966171168
  %v1724 = vunpack.c.0.s8 %v1723
  %v1725 = vlaneseq
  %v1726 = vshrl.u32 %v1725, 7
  %v1727 = vsub.s32 %v1724, %v1726
  %v1728 = vrot.slane %v1719, %v1727
  %v1730 = vunpack.c.l.s4 1966171168
  %v1731 = vunpack.c.0.s8 %v1730
  %v1732 = vlaneseq
  %v1733 = vshrl.u32 %v1732, 7
  %v1734 = vsub.s32 %v1731, %v1733
  %v1735 = vrot.slane %v1721, %v1734
  %v1736 = vcombine.high %v1728, %v1728
  %v1737 = vcombine.high %v1735, %v1735
  %v1739 = vunpack.c.l.s4 1966171168
  %v1740 = vunpack.c.0.s8 %v1739
  %v1741 = vlaneseq
  %v1742 = vshrl.u32 %v1741, 7
  %v1743 = vsub.s32 %v1740, %v1742
  %v1744 = vrot.slane %v1728, %v1743
  %v1746 = vunpack.c.l.s4 1966171168
  %v1747 = vunpack.c.0.s8 %v1746
  %v1748 = vlaneseq
  %v1749 = vshrl.u32 %v1748, 7
  %v1750 = vsub.s32 %v1747, %v1749
  %v1751 = vrot.slane %v1735, %v1750
  %v1753 = vunpack.c.l.s4 1966171168
  %v1754 = vunpack.c.0.s8 %v1753
  %v1755 = vlaneseq
  %v1756 = vshrl.u32 %v1755, 7
  %v1757 = vsub.s32 %v1754, %v1756
  %v1758 = vrot.slane %v1736, %v1757
  %v1760 = vunpack.c.l.s4 1966171168
  %v1761 = vunpack.c.0.s8 %v1760
  %v1762 = vlaneseq
  %v1763 = vshrl.u32 %v1762, 7
  %v1764 = vsub.s32 %v1761, %v1763
  %v1765 = vrot.slane %v1737, %v1764
  %v1766 = vcombine.high %v1744, %v1744
  %v1767 = vcombine.high %v1751, %v1751
  %v1768 = vcombine.high %v1758, %v1758
  %v1769 = vcombine.high %v1765, %v1765
  %v1770 = vunpack.i.l.s16 %v1744
  %v1771 = vunpack.i.h.s16 %v1744
  %v1772 = vunpack.i.l.s16 %v1758
  %v1773 = vunpack.i.h.s16 %v1758
  %v1774 = vunpack.i.l.s16 %v1766
  %v1775 = vunpack.i.h.s16 %v1766
  %v1776 = vunpack.i.l.s16 %v1768
  %v1777 = vunpack.i.h.s16 %v1768
  %v1778 = vunpack.i.l.s16 %v1751
  %v1779 = vunpack.i.h.s16 %v1751
  %v1780 = vunpack.i.l.s16 %v1765
  %v1781 = vunpack.i.h.s16 %v1765
  %v1782 = vunpack.i.l.s16 %v1767
  %v1783 = vunpack.i.h.s16 %v1767
  %v1784 = vunpack.i.l.s16 %v1769
  %v1785 = vunpack.i.h.s16 %v1769
  %v1786 = vpack.i.b16 %v1770, %v1770
  %v1787 = vpack.i.b16 %v1771, %v1771
  %v1788 = vpack.i.b16 %v1772, %v1772
  %v1789 = vpack.i.b16 %v1773, %v1773
  %v1790 = vpack.i.b16 %v1774, %v1774
  %v1791 = vpack.i.b16 %v1775, %v1775
  %v1792 = vpack.i.b16 %v1776, %v1776
  %v1793 = vpack.i.b16 %v1777, %v1777
  %v1794 = vpack.i.b16 %v1778, %v1778
  %v1795 = vpack.i.b16 %v1779, %v1779
  %v1796 = vpack.i.b16 %v1780, %v1780
  %v1797 = vpack.i.b16 %v1781, %v1781
  %v1798 = vpack.i.b16 %v1782, %v1782
  %v1799 = vpack.i.b16 %v1783, %v1783
  %v1800 = vpack.i.b16 %v1784, %v1784
  %v1801 = vpack.i.b16 %v1785, %v1785
  %v1803 = vunpack.c.l.s4 286326784
  %v1804 = vunpack.c.0.s8 %v1803
  %v1805 = vlaneseq
  %v1806 = vshrl.u32 %v1805, 7
  %v1807 = vsub.s32 %v1804, %v1806
  %v1808 = vrot.slane %v1786, %v1807
  %v1810 = vunpack.c.l.s4 286326784
  %v1811 = vunpack.c.0.s8 %v1810
  %v1812 = vlaneseq
  %v1813 = vshrl.u32 %v1812, 7
  %v1814 = vsub.s32 %v1811, %v1813
  %v1815 = vrot.slane %v1787, %v1814
  %v1817 = vunpack.c.l.s4 286326784
  %v1818 = vunpack.c.0.s8 %v1817
  %v1819 = vlaneseq
  %v1820 = vshrl.u32 %v1819, 7
  %v1821 = vsub.s32 %v1818, %v1820
  %v1822 = vrot.slane %v1788, %v1821
  %v1824 = vunpack.c.l.s4 286326784
  %v1825 = vunpack.c.0.s8 %v1824
  %v1826 = vlaneseq
  %v1827 = vshrl.u32 %v1826, 7
  %v1828 = vsub.s32 %v1825, %v1827
  %v1829 = vrot.slane %v1789, %v1828
  %v1831 = vunpack.c.l.s4 286326784
  %v1832 = vunpack.c.0.s8 %v1831
  %v1833 = vlaneseq
  %v1834 = vshrl.u32 %v1833, 7
  %v1835 = vsub.s32 %v1832, %v1834
  %v1836 = vrot.slane %v1790, %v1835
  %v1838 = vunpack.c.l.s4 286326784
  %v1839 = vunpack.c.0.s8 %v1838
  %v1840 = vlaneseq
  %v1841 = vshrl.u32 %v1840, 7
  %v1842 = vsub.s32 %v1839, %v1841
  %v1843 = vrot.slane %v1791, %v1842
  %v1845 = vunpack.c.l.s4 286326784
  %v1846 = vunpack.c.0.s8 %v1845
  %v1847 = vlaneseq
  %v1848 = vshrl.u32 %v1847, 7
  %v1849 = vsub.s32 %v1846, %v1848
  %v1850 = vrot.slane %v1792, %v1849
  %v1852 = vunpack.c.l.s4 286326784
  %v1853 = vunpack.c.0.s8 %v1852
  %v1854 = vlaneseq
  %v1855 = vshrl.u32 %v1854, 7
  %v1856 = vsub.s32 %v1853, %v1855
  %v1857 = vrot.slane %v1793, %v1856
  %v1859 = vunpack.c.l.s4 286326784
  %v1860 = vunpack.c.0.s8 %v1859
  %v1861 = vlaneseq
  %v1862 = vshrl.u32 %v1861, 7
  %v1863 = vsub.s32 %v1860, %v1862
  %v1864 = vrot.slane %v1794, %v1863
  %v1866 = vunpack.c.l.s4 286326784
  %v1867 = vunpack.c.0.s8 %v1866
  %v1868 = vlaneseq
  %v1869 = vshrl.u32 %v1868, 7
  %v1870 = vsub.s32 %v1867, %v1869
  %v1871 = vrot.slane %v1795, %v1870
  %v1873 = vunpack.c.l.s4 286326784
  %v1874 = vunpack.c.0.s8 %v1873
  %v1875 = vlaneseq
  %v1876 = vshrl.u32 %v1875, 7
  %v1877 = vsub.s32 %v1874, %v1876
  %v1878 = vrot.slane %v1796, %v1877
  %v1880 = vunpack.c.l.s4 286326784
  %v1881 = vunpack.c.0.s8 %v1880
  %v1882 = vlaneseq
  %v1883 = vshrl.u32 %v1882, 7
  %v1884 = vsub.s32 %v1881, %v1883
  %v1885 = vrot.slane %v1797, %v1884
  %v1887 = vunpack.c.l.s4 286326784
  %v1888 = vunpack.c.0.s8 %v1887
  %v1889 = vlaneseq
  %v1890 = vshrl.u32 %v1889, 7
  %v1891 = vsub.s32 %v1888, %v1890
  %v1892 = vrot.slane %v1798, %v1891
  %v1894 = vunpack.c.l.s4 286326784
  %v1895 = vunpack.c.0.s8 %v1894
  %v1896 = vlaneseq
  %v1897 = vshrl.u32 %v1896, 7
  %v1898 = vsub.s32 %v1895, %v1897
  %v1899 = vrot.slane %v1799, %v1898
  %v1901 = vunpack.c.l.s4 286326784
  %v1902 = vunpack.c.0.s8 %v1901
  %v1903 = vlaneseq
  %v1904 = vshrl.u32 %v1903, 7
  %v1905 = vsub.s32 %v1902, %v1904
  %v1906 = vrot.slane %v1800, %v1905
  %v1908 = vunpack.c.l.s4 286326784
  %v1909 = vunpack.c.0.s8 %v1908
  %v1910 = vlaneseq
  %v1911 = vshrl.u32 %v1910, 7
  %v1912 = vsub.s32 %v1909, %v1911
  %v1913 = vrot.slane %v1801, %v1912
  %vm1930 = vsmask.f32 7946
  %vm1931 = vmand %vm1613, %vm1930
  %v1932 = vld [vmem:[%s2] sm:$0x4]
  %v1933 = vsel %vm1931, %v1808, %v1932
  %1934 = vst [vmem:[%s2] sm:$0x4] %v1933
  %v1935 = vld [vmem:[%s2 + $0x4] sm:$0x4]
  %v1936 = vsel %vm1931, %v1815, %v1935
  %1937 = vst [vmem:[%s2 + $0x4] sm:$0x4] %v1936
  %v1938 = vld [vmem:[%s2 + $0x8] sm:$0x4]
  %v1939 = vsel %vm1931, %v1822, %v1938
  %1940 = vst [vmem:[%s2 + $0x8] sm:$0x4] %v1939
  %v1941 = vld [vmem:[%s2 + $0xc] sm:$0x4]
  %v1942 = vsel %vm1931, %v1829, %v1941
  %1943 = vst [vmem:[%s2 + $0xc] sm:$0x4] %v1942
  %v1944 = vld [vmem:[%s2 + $0x10] sm:$0x4]
  %v1945 = vsel %vm1931, %v1836, %v1944
  %1946 = vst [vmem:[%s2 + $0x10] sm:$0x4] %v1945
  %v1947 = vld [vmem:[%s2 + $0x14] sm:$0x4]
  %v1948 = vsel %vm1931, %v1843, %v1947
  %1949 = vst [vmem:[%s2 + $0x14] sm:$0x4] %v1948
  %v1950 = vld [vmem:[%s2 + $0x18] sm:$0x4]
  %v1951 = vsel %vm1931, %v1850, %v1950
  %1952 = vst [vmem:[%s2 + $0x18] sm:$0x4] %v1951
  %v1953 = vld [vmem:[%s2 + $0x1c] sm:$0x4]
  %v1954 = vsel %vm1931, %v1857, %v1953
  %1955 = vst [vmem:[%s2 + $0x1c] sm:$0x4] %v1954
  %v1956 = vld [vmem:[%s2 + $0x20] sm:$0x4]
  %v1957 = vsel %vm1931, %v1864, %v1956
  %1958 = vst [vmem:[%s2 + $0x20] sm:$0x4] %v1957
  %v1959 = vld [vmem:[%s2 + $0x24] sm:$0x4]
  %v1960 = vsel %vm1931, %v1871, %v1959
  %1961 = vst [vmem:[%s2 + $0x24] sm:$0x4] %v1960
  %v1962 = vld [vmem:[%s2 + $0x28] sm:$0x4]
  %v1963 = vsel %vm1931, %v1878, %v1962
  %1964 = vst [vmem:[%s2 + $0x28] sm:$0x4] %v1963
  %v1965 = vld [vmem:[%s2 + $0x2c] sm:$0x4]
  %v1966 = vsel %vm1931, %v1885, %v1965
  %1967 = vst [vmem:[%s2 + $0x2c] sm:$0x4] %v1966
  %v1968 = vld [vmem:[%s2 + $0x30] sm:$0x4]
  %v1969 = vsel %vm1931, %v1892, %v1968
  %1970 = vst [vmem:[%s2 + $0x30] sm:$0x4] %v1969
  %v1971 = vld [vmem:[%s2 + $0x34] sm:$0x4]
  %v1972 = vsel %vm1931, %v1899, %v1971
  %1973 = vst [vmem:[%s2 + $0x34] sm:$0x4] %v1972
  %v1974 = vld [vmem:[%s2 + $0x38] sm:$0x4]
  %v1975 = vsel %vm1931, %v1906, %v1974
  %1976 = vst [vmem:[%s2 + $0x38] sm:$0x4] %v1975
  %v1977 = vld [vmem:[%s2 + $0x3c] sm:$0x4]
  %v1978 = vsel %vm1931, %v1913, %v1977
  %1979 = vst [vmem:[%s2 + $0x3c] sm:$0x4] %v1978
  %v1980 = vld [vmem:[#allocation2] sm:$0xff]
  %v1981 = vld [vmem:[#allocation2 + $0x8] sm:$0xff]
  %v1982 = vpack.c.bf16 %v1981, %v1980
  %1983 = vmatprep.subr.bf16.mxu0 0
  %1984 = vmatpush1.bf16.msra.mxu0 %v69
  %1985 = vmatprep.subr.bf16.mxu0 0
  %1986 = vmatpush1.bf16.msra.mxu0 %v70
  %1987 = vmatprep.subr.bf16.mxu0 0
  %1988 = vmatpush1.bf16.msra.mxu0 %v71
  %1989 = vmatprep.subr.bf16.mxu0 0
  %1990 = vmatpush1.bf16.msra.mxu0 %v72
  %1991 = vmatprep.subr.bf16.mxu0 0
  %1992 = vmatpush1.bf16.msra.mxu0 %v73
  %1993 = vmatprep.subr.bf16.mxu0 0
  %1994 = vmatpush1.bf16.msra.mxu0 %v74
  %1995 = vmatprep.subr.bf16.mxu0 0
  %1996 = vmatpush1.bf16.msra.mxu0 %v75
  %1997 = vmatprep.subr.bf16.mxu0 0
  %1998 = vmatpush1.bf16.msra.mxu0 %v76
  %1999 = vmatprep.subr.bf16.mxu0 0
  %2000 = vmatpush1.bf16.msra.mxu0 0
  %2001 = vmatprep.subr.bf16.mxu0 0
  %2002 = vmatpush1.bf16.msra.mxu0 0
  %2003 = vmatprep.subr.bf16.mxu0 0
  %2004 = vmatpush1.bf16.msra.mxu0 0
  %2005 = vmatprep.subr.bf16.mxu0 0
  %2006 = vmatpush1.bf16.msra.mxu0 0
  %2007 = vmatprep.subr.bf16.mxu0 0
  %2008 = vmatpush1.bf16.msra.mxu0 0
  %2009 = vmatprep.subr.bf16.mxu0 0
  %2010 = vmatpush1.bf16.msra.mxu0 0
  %2011 = vmatprep.subr.bf16.mxu0 0
  %2012 = vmatpush1.bf16.msra.mxu0 0
  %2013 = vmatprep.subr.bf16.mxu0 0
  %2014 = vmatpush1.bf16.msra.mxu0 0
  %2015 = vmatprep.mubr.bf16.mxu0 0
  %2016 = vmatmul.mubr.bf16.gmra.mrb[0].mxu0 %v1982
  %v2017 = vpop.f32.mrb[0].mxu0
  %v2018 = vadd.f32 0.0, %v2017
  %v2019 = vpop.f32.mrb[0].mxu0
  %v2020 = vpop.f32.mrb[0].mxu0
  %v2021 = vadd.f32 0.0, %v2020
  %v2022 = vpop.f32.mrb[0].mxu0
  %2023 = vdwg.mxu0
  %s2024 = scalar_lea.vmem %s0, 48
  %v2025 = vld [vmem:[%s2024] sm:$0xf]
  %v2026 = vld [vmem:[%s2024 + $0x4] sm:$0xf]
  %v2027 = vunpack.c.l.bf16 %v2025
  %v2028 = vunpack.c.l.bf16 %v2026
  %v2029 = vadd.f32 %v2027, %v2018
  %v2030 = vadd.f32 %v2028, %v2021
  %v2031 = vtanh.pop %v2029
  %v2032 = vtanh.pop %v2030
  %2033 = vst [vmem:[#allocation2] sm:$0xff] %v2031
  %2034 = vst [vmem:[#allocation2 + $0x8] sm:$0xff] %v2032
  %v2035 = vpack.c.bf16 %v2032, %v2031
  %v2037 = vcombine.high %v2035, %v2035
  %v2039 = vunpack.c.l.s4 1966171168
  %v2040 = vunpack.c.0.s8 %v2039
  %v2041 = vlaneseq
  %v2042 = vshrl.u32 %v2041, 7
  %v2043 = vsub.s32 %v2040, %v2042
  %v2044 = vrot.slane %v2035, %v2043
  %v2046 = vunpack.c.l.s4 1966171168
  %v2047 = vunpack.c.0.s8 %v2046
  %v2048 = vlaneseq
  %v2049 = vshrl.u32 %v2048, 7
  %v2050 = vsub.s32 %v2047, %v2049
  %v2051 = vrot.slane %v2037, %v2050
  %v2052 = vcombine.high %v2044, %v2044
  %v2053 = vcombine.high %v2051, %v2051
  %v2055 = vunpack.c.l.s4 1966171168
  %v2056 = vunpack.c.0.s8 %v2055
  %v2057 = vlaneseq
  %v2058 = vshrl.u32 %v2057, 7
  %v2059 = vsub.s32 %v2056, %v2058
  %v2060 = vrot.slane %v2044, %v2059
  %v2062 = vunpack.c.l.s4 1966171168
  %v2063 = vunpack.c.0.s8 %v2062
  %v2064 = vlaneseq
  %v2065 = vshrl.u32 %v2064, 7
  %v2066 = vsub.s32 %v2063, %v2065
  %v2067 = vrot.slane %v2051, %v2066
  %v2069 = vunpack.c.l.s4 1966171168
  %v2070 = vunpack.c.0.s8 %v2069
  %v2071 = vlaneseq
  %v2072 = vshrl.u32 %v2071, 7
  %v2073 = vsub.s32 %v2070, %v2072
  %v2074 = vrot.slane %v2052, %v2073
  %v2076 = vunpack.c.l.s4 1966171168
  %v2077 = vunpack.c.0.s8 %v2076
  %v2078 = vlaneseq
  %v2079 = vshrl.u32 %v2078, 7
  %v2080 = vsub.s32 %v2077, %v2079
  %v2081 = vrot.slane %v2053, %v2080
  %v2082 = vcombine.high %v2060, %v2060
  %v2083 = vcombine.high %v2067, %v2067
  %v2084 = vcombine.high %v2074, %v2074
  %v2085 = vcombine.high %v2081, %v2081
  %v2086 = vunpack.i.l.s16 %v2060
  %v2087 = vunpack.i.h.s16 %v2060
  %v2088 = vunpack.i.l.s16 %v2074
  %v2089 = vunpack.i.h.s16 %v2074
  %v2090 = vunpack.i.l.s16 %v2082
  %v2091 = vunpack.i.h.s16 %v2082
  %v2092 = vunpack.i.l.s16 %v2084
  %v2093 = vunpack.i.h.s16 %v2084
  %v2094 = vunpack.i.l.s16 %v2067
  %v2095 = vunpack.i.h.s16 %v2067
  %v2096 = vunpack.i.l.s16 %v2081
  %v2097 = vunpack.i.h.s16 %v2081
  %v2098 = vunpack.i.l.s16 %v2083
  %v2099 = vunpack.i.h.s16 %v2083
  %v2100 = vunpack.i.l.s16 %v2085
  %v2101 = vunpack.i.h.s16 %v2085
  %v2102 = vpack.i.b16 %v2086, %v2086
  %v2103 = vpack.i.b16 %v2087, %v2087
  %v2104 = vpack.i.b16 %v2088, %v2088
  %v2105 = vpack.i.b16 %v2089, %v2089
  %v2106 = vpack.i.b16 %v2090, %v2090
  %v2107 = vpack.i.b16 %v2091, %v2091
  %v2108 = vpack.i.b16 %v2092, %v2092
  %v2109 = vpack.i.b16 %v2093, %v2093
  %v2110 = vpack.i.b16 %v2094, %v2094
  %v2111 = vpack.i.b16 %v2095, %v2095
  %v2112 = vpack.i.b16 %v2096, %v2096
  %v2113 = vpack.i.b16 %v2097, %v2097
  %v2114 = vpack.i.b16 %v2098, %v2098
  %v2115 = vpack.i.b16 %v2099, %v2099
  %v2116 = vpack.i.b16 %v2100, %v2100
  %v2117 = vpack.i.b16 %v2101, %v2101
  %v2119 = vunpack.c.l.s4 286326784
  %v2120 = vunpack.c.0.s8 %v2119
  %v2121 = vlaneseq
  %v2122 = vshrl.u32 %v2121, 7
  %v2123 = vsub.s32 %v2120, %v2122
  %v2124 = vrot.slane %v2102, %v2123
  %v2126 = vunpack.c.l.s4 286326784
  %v2127 = vunpack.c.0.s8 %v2126
  %v2128 = vlaneseq
  %v2129 = vshrl.u32 %v2128, 7
  %v2130 = vsub.s32 %v2127, %v2129
  %v2131 = vrot.slane %v2103, %v2130
  %v2133 = vunpack.c.l.s4 286326784
  %v2134 = vunpack.c.0.s8 %v2133
  %v2135 = vlaneseq
  %v2136 = vshrl.u32 %v2135, 7
  %v2137 = vsub.s32 %v2134, %v2136
  %v2138 = vrot.slane %v2104, %v2137
  %v2140 = vunpack.c.l.s4 286326784
  %v2141 = vunpack.c.0.s8 %v2140
  %v2142 = vlaneseq
  %v2143 = vshrl.u32 %v2142, 7
  %v2144 = vsub.s32 %v2141, %v2143
  %v2145 = vrot.slane %v2105, %v2144
  %v2147 = vunpack.c.l.s4 286326784
  %v2148 = vunpack.c.0.s8 %v2147
  %v2149 = vlaneseq
  %v2150 = vshrl.u32 %v2149, 7
  %v2151 = vsub.s32 %v2148, %v2150
  %v2152 = vrot.slane %v2106, %v2151
  %v2154 = vunpack.c.l.s4 286326784
  %v2155 = vunpack.c.0.s8 %v2154
  %v2156 = vlaneseq
  %v2157 = vshrl.u32 %v2156, 7
  %v2158 = vsub.s32 %v2155, %v2157
  %v2159 = vrot.slane %v2107, %v2158
  %v2161 = vunpack.c.l.s4 286326784
  %v2162 = vunpack.c.0.s8 %v2161
  %v2163 = vlaneseq
  %v2164 = vshrl.u32 %v2163, 7
  %v2165 = vsub.s32 %v2162, %v2164
  %v2166 = vrot.slane %v2108, %v2165
  %v2168 = vunpack.c.l.s4 286326784
  %v2169 = vunpack.c.0.s8 %v2168
  %v2170 = vlaneseq
  %v2171 = vshrl.u32 %v2170, 7
  %v2172 = vsub.s32 %v2169, %v2171
  %v2173 = vrot.slane %v2109, %v2172
  %v2175 = vunpack.c.l.s4 286326784
  %v2176 = vunpack.c.0.s8 %v2175
  %v2177 = vlaneseq
  %v2178 = vshrl.u32 %v2177, 7
  %v2179 = vsub.s32 %v2176, %v2178
  %v2180 = vrot.slane %v2110, %v2179
  %v2182 = vunpack.c.l.s4 286326784
  %v2183 = vunpack.c.0.s8 %v2182
  %v2184 = vlaneseq
  %v2185 = vshrl.u32 %v2184, 7
  %v2186 = vsub.s32 %v2183, %v2185
  %v2187 = vrot.slane %v2111, %v2186
  %v2189 = vunpack.c.l.s4 286326784
  %v2190 = vunpack.c.0.s8 %v2189
  %v2191 = vlaneseq
  %v2192 = vshrl.u32 %v2191, 7
  %v2193 = vsub.s32 %v2190, %v2192
  %v2194 = vrot.slane %v2112, %v2193
  %v2196 = vunpack.c.l.s4 286326784
  %v2197 = vunpack.c.0.s8 %v2196
  %v2198 = vlaneseq
  %v2199 = vshrl.u32 %v2198, 7
  %v2200 = vsub.s32 %v2197, %v2199
  %v2201 = vrot.slane %v2113, %v2200
  %v2203 = vunpack.c.l.s4 286326784
  %v2204 = vunpack.c.0.s8 %v2203
  %v2205 = vlaneseq
  %v2206 = vshrl.u32 %v2205, 7
  %v2207 = vsub.s32 %v2204, %v2206
  %v2208 = vrot.slane %v2114, %v2207
  %v2210 = vunpack.c.l.s4 286326784
  %v2211 = vunpack.c.0.s8 %v2210
  %v2212 = vlaneseq
  %v2213 = vshrl.u32 %v2212, 7
  %v2214 = vsub.s32 %v2211, %v2213
  %v2215 = vrot.slane %v2115, %v2214
  %v2217 = vunpack.c.l.s4 286326784
  %v2218 = vunpack.c.0.s8 %v2217
  %v2219 = vlaneseq
  %v2220 = vshrl.u32 %v2219, 7
  %v2221 = vsub.s32 %v2218, %v2220
  %v2222 = vrot.slane %v2116, %v2221
  %v2224 = vunpack.c.l.s4 286326784
  %v2225 = vunpack.c.0.s8 %v2224
  %v2226 = vlaneseq
  %v2227 = vshrl.u32 %v2226, 7
  %v2228 = vsub.s32 %v2225, %v2227
  %v2229 = vrot.slane %v2117, %v2228
  %vm2246 = vcmask 1043459
  %vm2247 = vsmask.f32 3328
  %vm2248 = vmand %vm2246, %vm2247
  %v2249 = vld [vmem:[%s2] sm:$0x8]
  %v2250 = vsel %vm2248, %v2124, %v2249
  %2251 = vst [vmem:[%s2] sm:$0x8] %v2250
  %v2252 = vld [vmem:[%s2 + $0x4] sm:$0x8]
  %v2253 = vsel %vm2248, %v2131, %v2252
  %2254 = vst [vmem:[%s2 + $0x4] sm:$0x8] %v2253
  %v2255 = vld [vmem:[%s2 + $0x8] sm:$0x8]
  %v2256 = vsel %vm2248, %v2138, %v2255
  %2257 = vst [vmem:[%s2 + $0x8] sm:$0x8] %v2256
  %v2258 = vld [vmem:[%s2 + $0xc] sm:$0x8]
  %v2259 = vsel %vm2248, %v2145, %v2258
  %2260 = vst [vmem:[%s2 + $0xc] sm:$0x8] %v2259
  %v2261 = vld [vmem:[%s2 + $0x10] sm:$0x8]
  %v2262 = vsel %vm2248, %v2152, %v2261
  %2263 = vst [vmem:[%s2 + $0x10] sm:$0x8] %v2262
  %v2264 = vld [vmem:[%s2 + $0x14] sm:$0x8]
  %v2265 = vsel %vm2248, %v2159, %v2264
  %2266 = vst [vmem:[%s2 + $0x14] sm:$0x8] %v2265
  %v2267 = vld [vmem:[%s2 + $0x18] sm:$0x8]
  %v2268 = vsel %vm2248, %v2166, %v2267
  %2269 = vst [vmem:[%s2 + $0x18] sm:$0x8] %v2268
  %v2270 = vld [vmem:[%s2 + $0x1c] sm:$0x8]
  %v2271 = vsel %vm2248, %v2173, %v2270
  %2272 = vst [vmem:[%s2 + $0x1c] sm:$0x8] %v2271
  %v2273 = vld [vmem:[%s2 + $0x20] sm:$0x8]
  %v2274 = vsel %vm2248, %v2180, %v2273
  %2275 = vst [vmem:[%s2 + $0x20] sm:$0x8] %v2274
  %v2276 = vld [vmem:[%s2 + $0x24] sm:$0x8]
  %v2277 = vsel %vm2248, %v2187, %v2276
  %2278 = vst [vmem:[%s2 + $0x24] sm:$0x8] %v2277
  %v2279 = vld [vmem:[%s2 + $0x28] sm:$0x8]
  %v2280 = vsel %vm2248, %v2194, %v2279
  %2281 = vst [vmem:[%s2 + $0x28] sm:$0x8] %v2280
  %v2282 = vld [vmem:[%s2 + $0x2c] sm:$0x8]
  %v2283 = vsel %vm2248, %v2201, %v2282
  %2284 = vst [vmem:[%s2 + $0x2c] sm:$0x8] %v2283
  %v2285 = vld [vmem:[%s2 + $0x30] sm:$0x8]
  %v2286 = vsel %vm2248, %v2208, %v2285
  %2287 = vst [vmem:[%s2 + $0x30] sm:$0x8] %v2286
  %v2288 = vld [vmem:[%s2 + $0x34] sm:$0x8]
  %v2289 = vsel %vm2248, %v2215, %v2288
  %2290 = vst [vmem:[%s2 + $0x34] sm:$0x8] %v2289
  %v2291 = vld [vmem:[%s2 + $0x38] sm:$0x8]
  %v2292 = vsel %vm2248, %v2222, %v2291
  %2293 = vst [vmem:[%s2 + $0x38] sm:$0x8] %v2292
  %v2294 = vld [vmem:[%s2 + $0x3c] sm:$0x8]
  %v2295 = vsel %vm2248, %v2229, %v2294
  %2296 = vst [vmem:[%s2 + $0x3c] sm:$0x8] %v2295
  %v2297 = vld [vmem:[#allocation2] sm:$0xff]
  %v2298 = vld [vmem:[#allocation2 + $0x8] sm:$0xff]
  %v2299 = vpack.c.bf16 %v2298, %v2297
  %2300 = vmatprep.subr.bf16.mxu0 0
  %2301 = vmatpush1.bf16.msra.mxu0 %v69
  %2302 = vmatprep.subr.bf16.mxu0 0
  %2303 = vmatpush1.bf16.msra.mxu0 %v70
  %2304 = vmatprep.subr.bf16.mxu0 0
  %2305 = vmatpush1.bf16.msra.mxu0 %v71
  %2306 = vmatprep.subr.bf16.mxu0 0
  %2307 = vmatpush1.bf16.msra.mxu0 %v72
  %2308 = vmatprep.subr.bf16.mxu0 0
  %2309 = vmatpush1.bf16.msra.mxu0 %v73
  %2310 = vmatprep.subr.bf16.mxu0 0
  %2311 = vmatpush1.bf16.msra.mxu0 %v74
  %2312 = vmatprep.subr.bf16.mxu0 0
  %2313 = vmatpush1.bf16.msra.mxu0 %v75
  %2314 = vmatprep.subr.bf16.mxu0 0
  %2315 = vmatpush1.bf16.msra.mxu0 %v76
  %2316 = vmatprep.subr.bf16.mxu0 0
  %2317 = vmatpush1.bf16.msra.mxu0 0
  %2318 = vmatprep.subr.bf16.mxu0 0
  %2319 = vmatpush1.bf16.msra.mxu0 0
  %2320 = vmatprep.subr.bf16.mxu0 0
  %2321 = vmatpush1.bf16.msra.mxu0 0
  %2322 = vmatprep.subr.bf16.mxu0 0
  %2323 = vmatpush1.bf16.msra.mxu0 0
  %2324 = vmatprep.subr.bf16.mxu0 0
  %2325 = vmatpush1.bf16.msra.mxu0 0
  %2326 = vmatprep.subr.bf16.mxu0 0
  %2327 = vmatpush1.bf16.msra.mxu0 0
  %2328 = vmatprep.subr.bf16.mxu0 0
  %2329 = vmatpush1.bf16.msra.mxu0 0
  %2330 = vmatprep.subr.bf16.mxu0 0
  %2331 = vmatpush1.bf16.msra.mxu0 0
  %2332 = vmatprep.mubr.bf16.mxu0 0
  %2333 = vmatmul.mubr.bf16.gmra.mrb[0].mxu0 %v2299
  %v2334 = vpop.f32.mrb[0].mxu0
  %v2335 = vadd.f32 0.0, %v2334
  %v2336 = vpop.f32.mrb[0].mxu0
  %v2337 = vpop.f32.mrb[0].mxu0
  %v2338 = vadd.f32 0.0, %v2337
  %v2339 = vpop.f32.mrb[0].mxu0
  %2340 = vdwg.mxu0
  %s2341 = scalar_lea.vmem %s0, 56
  %v2342 = vld [vmem:[%s2341] sm:$0xf]
  %v2343 = vld [vmem:[%s2341 + $0x4] sm:$0xf]
  %v2344 = vunpack.c.l.bf16 %v2342
  %v2345 = vunpack.c.l.bf16 %v2343
  %v2346 = vadd.f32 %v2344, %v2335
  %v2347 = vadd.f32 %v2345, %v2338
  %v2348 = vtanh.pop %v2346
  %v2349 = vtanh.pop %v2347
  %2350 = vst [vmem:[#allocation2] sm:$0xff] %v2348
  %2351 = vst [vmem:[#allocation2 + $0x8] sm:$0xff] %v2349
  %v2352 = vpack.c.bf16 %v2349, %v2348
  %v2354 = vcombine.high %v2352, %v2352
  %v2356 = vunpack.c.l.s4 1966171168
  %v2357 = vunpack.c.0.s8 %v2356
  %v2358 = vlaneseq
  %v2359 = vshrl.u32 %v2358, 7
  %v2360 = vsub.s32 %v2357, %v2359
  %v2361 = vrot.slane %v2352, %v2360
  %v2363 = vunpack.c.l.s4 1966171168
  %v2364 = vunpack.c.0.s8 %v2363
  %v2365 = vlaneseq
  %v2366 = vshrl.u32 %v2365, 7
  %v2367 = vsub.s32 %v2364, %v2366
  %v2368 = vrot.slane %v2354, %v2367
  %v2369 = vcombine.high %v2361, %v2361
  %v2370 = vcombine.high %v2368, %v2368
  %v2372 = vunpack.c.l.s4 1966171168
  %v2373 = vunpack.c.0.s8 %v2372
  %v2374 = vlaneseq
  %v2375 = vshrl.u32 %v2374, 7
  %v2376 = vsub.s32 %v2373, %v2375
  %v2377 = vrot.slane %v2361, %v2376
  %v2379 = vunpack.c.l.s4 1966171168
  %v2380 = vunpack.c.0.s8 %v2379
  %v2381 = vlaneseq
  %v2382 = vshrl.u32 %v2381, 7
  %v2383 = vsub.s32 %v2380, %v2382
  %v2384 = vrot.slane %v2368, %v2383
  %v2386 = vunpack.c.l.s4 1966171168
  %v2387 = vunpack.c.0.s8 %v2386
  %v2388 = vlaneseq
  %v2389 = vshrl.u32 %v2388, 7
  %v2390 = vsub.s32 %v2387, %v2389
  %v2391 = vrot.slane %v2369, %v2390
  %v2393 = vunpack.c.l.s4 1966171168
  %v2394 = vunpack.c.0.s8 %v2393
  %v2395 = vlaneseq
  %v2396 = vshrl.u32 %v2395, 7
  %v2397 = vsub.s32 %v2394, %v2396
  %v2398 = vrot.slane %v2370, %v2397
  %v2399 = vcombine.high %v2377, %v2377
  %v2400 = vcombine.high %v2384, %v2384
  %v2401 = vcombine.high %v2391, %v2391
  %v2402 = vcombine.high %v2398, %v2398
  %v2403 = vunpack.i.l.s16 %v2377
  %v2404 = vunpack.i.h.s16 %v2377
  %v2405 = vunpack.i.l.s16 %v2391
  %v2406 = vunpack.i.h.s16 %v2391
  %v2407 = vunpack.i.l.s16 %v2399
  %v2408 = vunpack.i.h.s16 %v2399
  %v2409 = vunpack.i.l.s16 %v2401
  %v2410 = vunpack.i.h.s16 %v2401
  %v2411 = vunpack.i.l.s16 %v2384
  %v2412 = vunpack.i.h.s16 %v2384
  %v2413 = vunpack.i.l.s16 %v2398
  %v2414 = vunpack.i.h.s16 %v2398
  %v2415 = vunpack.i.l.s16 %v2400
  %v2416 = vunpack.i.h.s16 %v2400
  %v2417 = vunpack.i.l.s16 %v2402
  %v2418 = vunpack.i.h.s16 %v2402
  %v2419 = vpack.i.b16 %v2403, %v2403
  %v2420 = vpack.i.b16 %v2404, %v2404
  %v2421 = vpack.i.b16 %v2405, %v2405
  %v2422 = vpack.i.b16 %v2406, %v2406
  %v2423 = vpack.i.b16 %v2407, %v2407
  %v2424 = vpack.i.b16 %v2408, %v2408
  %v2425 = vpack.i.b16 %v2409, %v2409
  %v2426 = vpack.i.b16 %v2410, %v2410
  %v2427 = vpack.i.b16 %v2411, %v2411
  %v2428 = vpack.i.b16 %v2412, %v2412
  %v2429 = vpack.i.b16 %v2413, %v2413
  %v2430 = vpack.i.b16 %v2414, %v2414
  %v2431 = vpack.i.b16 %v2415, %v2415
  %v2432 = vpack.i.b16 %v2416, %v2416
  %v2433 = vpack.i.b16 %v2417, %v2417
  %v2434 = vpack.i.b16 %v2418, %v2418
  %v2436 = vunpack.c.l.s4 286326784
  %v2437 = vunpack.c.0.s8 %v2436
  %v2438 = vlaneseq
  %v2439 = vshrl.u32 %v2438, 7
  %v2440 = vsub.s32 %v2437, %v2439
  %v2441 = vrot.slane %v2419, %v2440
  %v2443 = vunpack.c.l.s4 286326784
  %v2444 = vunpack.c.0.s8 %v2443
  %v2445 = vlaneseq
  %v2446 = vshrl.u32 %v2445, 7
  %v2447 = vsub.s32 %v2444, %v2446
  %v2448 = vrot.slane %v2420, %v2447
  %v2450 = vunpack.c.l.s4 286326784
  %v2451 = vunpack.c.0.s8 %v2450
  %v2452 = vlaneseq
  %v2453 = vshrl.u32 %v2452, 7
  %v2454 = vsub.s32 %v2451, %v2453
  %v2455 = vrot.slane %v2421, %v2454
  %v2457 = vunpack.c.l.s4 286326784
  %v2458 = vunpack.c.0.s8 %v2457
  %v2459 = vlaneseq
  %v2460 = vshrl.u32 %v2459, 7
  %v2461 = vsub.s32 %v2458, %v2460
  %v2462 = vrot.slane %v2422, %v2461
  %v2464 = vunpack.c.l.s4 286326784
  %v2465 = vunpack.c.0.s8 %v2464
  %v2466 = vlaneseq
  %v2467 = vshrl.u32 %v2466, 7
  %v2468 = vsub.s32 %v2465, %v2467
  %v2469 = vrot.slane %v2423, %v2468
  %v2471 = vunpack.c.l.s4 286326784
  %v2472 = vunpack.c.0.s8 %v2471
  %v2473 = vlaneseq
  %v2474 = vshrl.u32 %v2473, 7
  %v2475 = vsub.s32 %v2472, %v2474
  %v2476 = vrot.slane %v2424, %v2475
  %v2478 = vunpack.c.l.s4 286326784
  %v2479 = vunpack.c.0.s8 %v2478
  %v2480 = vlaneseq
  %v2481 = vshrl.u32 %v2480, 7
  %v2482 = vsub.s32 %v2479, %v2481
  %v2483 = vrot.slane %v2425, %v2482
  %v2485 = vunpack.c.l.s4 286326784
  %v2486 = vunpack.c.0.s8 %v2485
  %v2487 = vlaneseq
  %v2488 = vshrl.u32 %v2487, 7
  %v2489 = vsub.s32 %v2486, %v2488
  %v2490 = vrot.slane %v2426, %v2489
  %v2492 = vunpack.c.l.s4 286326784
  %v2493 = vunpack.c.0.s8 %v2492
  %v2494 = vlaneseq
  %v2495 = vshrl.u32 %v2494, 7
  %v2496 = vsub.s32 %v2493, %v2495
  %v2497 = vrot.slane %v2427, %v2496
  %v2499 = vunpack.c.l.s4 286326784
  %v2500 = vunpack.c.0.s8 %v2499
  %v2501 = vlaneseq
  %v2502 = vshrl.u32 %v2501, 7
  %v2503 = vsub.s32 %v2500, %v2502
  %v2504 = vrot.slane %v2428, %v2503
  %v2506 = vunpack.c.l.s4 286326784
  %v2507 = vunpack.c.0.s8 %v2506
  %v2508 = vlaneseq
  %v2509 = vshrl.u32 %v2508, 7
  %v2510 = vsub.s32 %v2507, %v2509
  %v2511 = vrot.slane %v2429, %v2510
  %v2513 = vunpack.c.l.s4 286326784
  %v2514 = vunpack.c.0.s8 %v2513
  %v2515 = vlaneseq
  %v2516 = vshrl.u32 %v2515, 7
  %v2517 = vsub.s32 %v2514, %v2516
  %v2518 = vrot.slane %v2430, %v2517
  %v2520 = vunpack.c.l.s4 286326784
  %v2521 = vunpack.c.0.s8 %v2520
  %v2522 = vlaneseq
  %v2523 = vshrl.u32 %v2522, 7
  %v2524 = vsub.s32 %v2521, %v2523
  %v2525 = vrot.slane %v2431, %v2524
  %v2527 = vunpack.c.l.s4 286326784
  %v2528 = vunpack.c.0.s8 %v2527
  %v2529 = vlaneseq
  %v2530 = vshrl.u32 %v2529, 7
  %v2531 = vsub.s32 %v2528, %v2530
  %v2532 = vrot.slane %v2432, %v2531
  %v2534 = vunpack.c.l.s4 286326784
  %v2535 = vunpack.c.0.s8 %v2534
  %v2536 = vlaneseq
  %v2537 = vshrl.u32 %v2536, 7
  %v2538 = vsub.s32 %v2535, %v2537
  %v2539 = vrot.slane %v2433, %v2538
  %v2541 = vunpack.c.l.s4 286326784
  %v2542 = vunpack.c.0.s8 %v2541
  %v2543 = vlaneseq
  %v2544 = vshrl.u32 %v2543, 7
  %v2545 = vsub.s32 %v2542, %v2544
  %v2546 = vrot.slane %v2434, %v2545
  %vm2563 = vsmask.f32 7950
  %vm2564 = vmand %vm2246, %vm2563
  %v2565 = vld [vmem:[%s2] sm:$0x8]
  %v2566 = vsel %vm2564, %v2441, %v2565
  %2567 = vst [vmem:[%s2] sm:$0x8] %v2566
  %v2568 = vld [vmem:[%s2 + $0x4] sm:$0x8]
  %v2569 = vsel %vm2564, %v2448, %v2568
  %2570 = vst [vmem:[%s2 + $0x4] sm:$0x8] %v2569
  %v2571 = vld [vmem:[%s2 + $0x8] sm:$0x8]
  %v2572 = vsel %vm2564, %v2455, %v2571
  %2573 = vst [vmem:[%s2 + $0x8] sm:$0x8] %v2572
  %v2574 = vld [vmem:[%s2 + $0xc] sm:$0x8]
  %v2575 = vsel %vm2564, %v2462, %v2574
  %2576 = vst [vmem:[%s2 + $0xc] sm:$0x8] %v2575
  %v2577 = vld [vmem:[%s2 + $0x10] sm:$0x8]
  %v2578 = vsel %vm2564, %v2469, %v2577
  %2579 = vst [vmem:[%s2 + $0x10] sm:$0x8] %v2578
  %v2580 = vld [vmem:[%s2 + $0x14] sm:$0x8]
  %v2581 = vsel %vm2564, %v2476, %v2580
  %2582 = vst [vmem:[%s2 + $0x14] sm:$0x8] %v2581
  %v2583 = vld [vmem:[%s2 + $0x18] sm:$0x8]
  %v2584 = vsel %vm2564, %v2483, %v2583
  %2585 = vst [vmem:[%s2 + $0x18] sm:$0x8] %v2584
  %v2586 = vld [vmem:[%s2 + $0x1c] sm:$0x8]
  %v2587 = vsel %vm2564, %v2490, %v2586
  %2588 = vst [vmem:[%s2 + $0x1c] sm:$0x8] %v2587
  %v2589 = vld [vmem:[%s2 + $0x20] sm:$0x8]
  %v2590 = vsel %vm2564, %v2497, %v2589
  %2591 = vst [vmem:[%s2 + $0x20] sm:$0x8] %v2590
  %v2592 = vld [vmem:[%s2 + $0x24] sm:$0x8]
  %v2593 = vsel %vm2564, %v2504, %v2592
  %2594 = vst [vmem:[%s2 + $0x24] sm:$0x8] %v2593
  %v2595 = vld [vmem:[%s2 + $0x28] sm:$0x8]
  %v2596 = vsel %vm2564, %v2511, %v2595
  %2597 = vst [vmem:[%s2 + $0x28] sm:$0x8] %v2596
  %v2598 = vld [vmem:[%s2 + $0x2c] sm:$0x8]
  %v2599 = vsel %vm2564, %v2518, %v2598
  %2600 = vst [vmem:[%s2 + $0x2c] sm:$0x8] %v2599
  %v2601 = vld [vmem:[%s2 + $0x30] sm:$0x8]
  %v2602 = vsel %vm2564, %v2525, %v2601
  %2603 = vst [vmem:[%s2 + $0x30] sm:$0x8] %v2602
  %v2604 = vld [vmem:[%s2 + $0x34] sm:$0x8]
  %v2605 = vsel %vm2564, %v2532, %v2604
  %2606 = vst [vmem:[%s2 + $0x34] sm:$0x8] %v2605
  %v2607 = vld [vmem:[%s2 + $0x38] sm:$0x8]
  %v2608 = vsel %vm2564, %v2539, %v2607
  %2609 = vst [vmem:[%s2 + $0x38] sm:$0x8] %v2608
  %v2610 = vld [vmem:[%s2 + $0x3c] sm:$0x8]
  %v2611 = vsel %vm2564, %v2546, %v2610
  %2612 = vst [vmem:[%s2 + $0x3c] sm:$0x8] %v2611
  // Predicated region
  $region14: #{rnn_forward.4} parent=0 // pred_check
    _
  $region15: #{rnn_forward.4} parent=0 // pred_check_branch
    %2614 = sbr.rel (0) target = $region17
  $region16: #{rnn_forward.4} parent=0 // pred_region
    _
  $region17: #{rnn_forward.4} parent=0 // pred_fallthru
    _
  // Predicated region
  $region18: #{rnn_forward.4} parent=0 // pred_check
    _
  $region19: #{rnn_forward.4} parent=0 // pred_check_branch
    %2616 = sbr.rel (0) target = $region21
  $region20: #{rnn_forward.4} parent=0 // pred_region
    _
  $region21: #{rnn_forward.4} parent=0 // pred_fallthru
    _

</llo_original>
